<compile_context>
chip_gen: v6e
topology: v6e:2x2x1
jax: 0.10.0
libtpu: 0.0.40
codegen_flags: <defaults>
</compile_context>

<pallas_src>
import math

import jax
import jax.numpy as jnp
from jax.experimental import pallas as pl
from jax.experimental.pallas import tpu as pltpu


def _gelu_exact(v):
    # nn.GELU() default = exact (erf-based) GELU, computed in f32.
    return 0.5 * v * (1.0 + jax.lax.erf(v * (1.0 / math.sqrt(2.0))))


def _round_up(n, m):
    return ((n + m - 1) // m) * m


# ----------------------------------------------------------------------------
# Kernel
# ----------------------------------------------------------------------------
def aesthetic_head_kernel(
    x_ref,
    w1_ref, b1_ref,
    w2_ref, b2_ref,
    w3_ref, b3_ref,
    w45_ref, b45_ref,
    o_ref,
):
    x = x_ref[...]                                  # (TB, 768) f32

    h = jnp.dot(x, w1_ref[...].astype(jnp.float32),
                preferred_element_type=jnp.float32) + b1_ref[...]
    h = _gelu_exact(h)

    h = jnp.dot(h, w2_ref[...].astype(jnp.float32),
                preferred_element_type=jnp.float32) + b2_ref[...]
    h = _gelu_exact(h)

    h = jnp.dot(h, w3_ref[...].astype(jnp.float32),
                preferred_element_type=jnp.float32) + b3_ref[...]
    h = _gelu_exact(h)

    # Folded (64 -> 16 -> 1) linear pair: single (64, 1) matmul.
    h = jnp.dot(h, w45_ref[...].astype(jnp.float32),
                preferred_element_type=jnp.float32) + b45_ref[...]

    o_ref[...] = h.astype(o_ref.dtype)              # (TB, 1)


# ----------------------------------------------------------------------------
# Wrapper
# ----------------------------------------------------------------------------
def pack_params(params, weight_dtype=jnp.bfloat16):
    """Fold the last two linears and cast weights to `weight_dtype`.

    params: list of 5 (W_(in,out), b_(1,out)) f32 pairs (PyTorch weights
    pre-transposed to (in_features, out_features)).
    Returns 4 (W, b) pairs: W in weight_dtype, b in f32.
    """
    (w1, b1), (w2, b2), (w3, b3), (w4, b4), (w5, b5) = params
    w45 = w4 @ w5                    # (64, 1)
    b45 = b4 @ w5 + b5               # (1, 1)
    return [
        (w1.astype(weight_dtype), b1.astype(jnp.float32)),
        (w2.astype(weight_dtype), b2.astype(jnp.float32)),
        (w3.astype(weight_dtype), b3.astype(jnp.float32)),
        (w45.astype(weight_dtype), b45.astype(jnp.float32)),
    ]


def aesthetic_head_forward(x, packed_params, tb=None):
    """x: (B, 768) float32; packed_params: output of pack_params()."""
    B, D = x.shape
    assert D == 768, D

    # Batch tile: multiples of 8 (sublane), capped at 512 (keeps the f32 x
    # tile + double buffer + resident bf16 weights far below even v7x's
    # scoped-VMEM default).
    if tb is None:
        tb = min(512, _round_up(B, 8))
    Bp = _round_up(B, tb)
    if Bp != B:
        x = jnp.pad(x, ((0, Bp - B), (0, 0)))

    flat_args = [x]
    for w, b in packed_params:
        flat_args.extend([w, b])

    # x / out are tiled over the batch; weights & biases use full-array blocks
    # with constant index_maps so they are DMA'd once and stay VMEM-resident
    # across all grid steps.
    x_spec = pl.BlockSpec((tb, D), lambda i: (i, 0))
    const_specs = []
    for w, b in packed_params:
        const_specs.append(pl.BlockSpec(w.shape, lambda i: (0, 0)))
        const_specs.append(pl.BlockSpec(b.shape, lambda i: (0, 0)))
    out_spec = pl.BlockSpec((tb, 1), lambda i: (i, 0))

    out = pl.pallas_call(
        aesthetic_head_kernel,
        out_shape=jax.ShapeDtypeStruct((Bp, 1), jnp.float32),
        grid_spec=pltpu.PrefetchScalarGridSpec(
            num_scalar_prefetch=0,
            grid=(Bp // tb,),
            in_specs=[x_spec] + const_specs,
            out_specs=out_spec,
        ),
        compiler_params=pltpu.CompilerParams(
            dimension_semantics=("parallel",),   # shard batch tiles over v7x's 2 TCs
        ),
    )(*flat_args)

    return out[:B]


# ----------------------------------------------------------------------------
# Init + references
# ----------------------------------------------------------------------------
def init_params(key):
    """Deterministic init mimicking PyTorch Linear default (U[-1/sqrt(fan_in), +])."""
    dims = [768, 1024, 128, 64, 16, 1]
    params = []
    for i in range(len(dims) - 1):
        fan_in, fan_out = dims[i], dims[i + 1]
        key, kw, kb = jax.random.split(key, 3)
        bound = 1.0 / math.sqrt(fan_in)
        w = jax.random.uniform(
            kw, (fan_in, fan_out), dtype=jnp.float32, minval=-bound, maxval=bound
        )
        b = jax.random.uniform(
            kb, (1, fan_out), dtype=jnp.float32, minval=-bound, maxval=bound
        )
        params.append((w, b))
    return params


def reference_forward_f32(x, params):
    """Pure-f32 reference of the original 5-layer module."""
    h = x
    for i, (w, b) in enumerate(params):
        h = h @ w + b
        if i < 3:  # GELU after the first three linears only
            h = _gelu_exact(h)
    return h


def reference_forward_packed(x, packed_params):
    """Reference using the same folded / bf16-rounded weights as the kernel."""
    h = x
    for i, (w, b) in enumerate(packed_params):
        h = h @ w.astype(jnp.float32) + b
        if i < 3:
            h = _gelu_exact(h)
    return h


if __name__ == "__main__":
    key = jax.random.PRNGKey(0)
    key, kx = jax.random.split(key)

    B = 8
    x = jax.random.normal(kx, (B, 768), dtype=jnp.float32)
    params = init_params(key)
    packed = pack_params(params)

    out = aesthetic_head_forward(x, packed)
    out = jax.block_until_ready(out)
    assert out.shape == (B, 1), out.shape

    # Tight check vs. a reference that uses the exact same folded/bf16 weights.
    ref_packed = reference_forward_packed(x, packed)
    assert jnp.allclose(out, ref_packed, atol=1e-4, rtol=1e-4), (
        float(jnp.max(jnp.abs(out - ref_packed)))
    )

    # Loose sanity check vs. the original full-f32 module (bf16 weight storage
    # introduces small, bounded error on this head).
    ref_f32 = reference_forward_f32(x, params)
    assert jnp.max(jnp.abs(out - ref_f32)) < 5e-2, (
        float(jnp.max(jnp.abs(out - ref_f32)))
    )

    print("KERNEL_OK")
</pallas_src>

<mosaic_0001>
module attributes {stable_mosaic.version = 11 : i64} {
  func.func @aesthetic_head_kernel(%arg0: i32, %arg1: memref<8x768xf32, #tpu.memory_space<vmem>>, %arg2: memref<768x1024xbf16, #tpu.memory_space<vmem>>, %arg3: memref<1x1024xf32, #tpu.memory_space<vmem>>, %arg4: memref<1024x128xbf16, #tpu.memory_space<vmem>>, %arg5: memref<1x128xf32, #tpu.memory_space<vmem>>, %arg6: memref<128x64xbf16, #tpu.memory_space<vmem>>, %arg7: memref<1x64xf32, #tpu.memory_space<vmem>>, %arg8: memref<64x1xbf16, #tpu.memory_space<vmem>>, %arg9: memref<1x1xf32, #tpu.memory_space<vmem>>, %arg10: memref<8x1xf32, #tpu.memory_space<vmem>>) attributes {dimension_semantics = [#tpu.dimension_semantics<parallel>], iteration_bounds = array<i64: 1>, scalar_prefetch = 0 : i64, scratch_operands = 0 : i64, tpu.core_type = #tpu.core_type<tc>, window_params = [{transform_indices = @transform_0, window_bounds = array<i64: 8, 768>}, {pipeline_mode = #tpu.pipeline_mode<synchronous>, transform_indices = @transform_1, window_bounds = array<i64: 768, 1024>}, {pipeline_mode = #tpu.pipeline_mode<synchronous>, transform_indices = @transform_2, window_bounds = array<i64: 1, 1024>}, {pipeline_mode = #tpu.pipeline_mode<synchronous>, transform_indices = @transform_3, window_bounds = array<i64: 1024, 128>}, {pipeline_mode = #tpu.pipeline_mode<synchronous>, transform_indices = @transform_4, window_bounds = array<i64: 1, 128>}, {pipeline_mode = #tpu.pipeline_mode<synchronous>, transform_indices = @transform_5, window_bounds = array<i64: 128, 64>}, {pipeline_mode = #tpu.pipeline_mode<synchronous>, transform_indices = @transform_6, window_bounds = array<i64: 1, 64>}, {pipeline_mode = #tpu.pipeline_mode<synchronous>, transform_indices = @transform_7, window_bounds = array<i64: 64, 1>}, {pipeline_mode = #tpu.pipeline_mode<synchronous>, transform_indices = @transform_8, window_bounds = array<i64: 1, 1>}, {transform_indices = @transform_9, window_bounds = array<i64: 8, 1>}]} {
    %c0 = arith.constant 0 : index
    %c0_0 = arith.constant 0 : index
    %0 = vector.load %arg1[%c0, %c0_0] : memref<8x768xf32, #tpu.memory_space<vmem>>, vector<8x768xf32>
    %c0_1 = arith.constant 0 : index
    %c0_2 = arith.constant 0 : index
    %1 = vector.load %arg2[%c0_1, %c0_2] : memref<768x1024xbf16, #tpu.memory_space<vmem>>, vector<768x1024xbf16>
    %2 = arith.extf %1 : vector<768x1024xbf16> to vector<768x1024xf32>
    %cst = arith.constant dense<0.000000e+00> : vector<8x1024xf32>
    %3 = tpu.matmul %0, %2, %cst {dimension_numbers = #tpu.dot_dimension_numbers<[1], [0], [0], [1], [0, 0, 1, 1], [], []>} : vector<8x768xf32>, vector<768x1024xf32>, vector<8x1024xf32> -> vector<8x1024xf32>
    %c0_3 = arith.constant 0 : index
    %c0_4 = arith.constant 0 : index
    %4 = vector.load %arg3[%c0_3, %c0_4] : memref<1x1024xf32, #tpu.memory_space<vmem>>, vector<1x1024xf32>
    %5 = vector.broadcast %4 : vector<1x1024xf32> to vector<8x1024xf32>
    %6 = arith.addf %3, %5 : vector<8x1024xf32>
    %cst_5 = arith.constant 5.000000e-01 : f32
    %7 = vector.broadcast %cst_5 : f32 to vector<8x1024xf32>
    %8 = arith.mulf %7, %6 : vector<8x1024xf32>
    %cst_6 = arith.constant 0.707106769 : f32
    %9 = vector.broadcast %cst_6 : f32 to vector<8x1024xf32>
    %10 = arith.mulf %6, %9 : vector<8x1024xf32>
    %11 = math.erf %10 : vector<8x1024xf32>
    %cst_7 = arith.constant 1.000000e+00 : f32
    %12 = vector.broadcast %cst_7 : f32 to vector<8x1024xf32>
    %13 = arith.addf %12, %11 : vector<8x1024xf32>
    %14 = arith.mulf %8, %13 : vector<8x1024xf32>
    %c0_8 = arith.constant 0 : index
    %c0_9 = arith.constant 0 : index
    %15 = vector.load %arg4[%c0_8, %c0_9] : memref<1024x128xbf16, #tpu.memory_space<vmem>>, vector<1024x128xbf16>
    %16 = arith.extf %15 : vector<1024x128xbf16> to vector<1024x128xf32>
    %cst_10 = arith.constant dense<0.000000e+00> : vector<8x128xf32>
    %17 = tpu.matmul %14, %16, %cst_10 {dimension_numbers = #tpu.dot_dimension_numbers<[1], [0], [0], [1], [0, 0, 1, 1], [], []>} : vector<8x1024xf32>, vector<1024x128xf32>, vector<8x128xf32> -> vector<8x128xf32>
    %c0_11 = arith.constant 0 : index
    %c0_12 = arith.constant 0 : index
    %18 = vector.load %arg5[%c0_11, %c0_12] : memref<1x128xf32, #tpu.memory_space<vmem>>, vector<1x128xf32>
    %19 = vector.broadcast %18 : vector<1x128xf32> to vector<8x128xf32>
    %20 = arith.addf %17, %19 : vector<8x128xf32>
    %cst_13 = arith.constant 5.000000e-01 : f32
    %21 = vector.broadcast %cst_13 : f32 to vector<8x128xf32>
    %22 = arith.mulf %21, %20 : vector<8x128xf32>
    %cst_14 = arith.constant 0.707106769 : f32
    %23 = vector.broadcast %cst_14 : f32 to vector<8x128xf32>
    %24 = arith.mulf %20, %23 : vector<8x128xf32>
    %25 = math.erf %24 : vector<8x128xf32>
    %cst_15 = arith.constant 1.000000e+00 : f32
    %26 = vector.broadcast %cst_15 : f32 to vector<8x128xf32>
    %27 = arith.addf %26, %25 : vector<8x128xf32>
    %28 = arith.mulf %22, %27 : vector<8x128xf32>
    %c0_16 = arith.constant 0 : index
    %c0_17 = arith.constant 0 : index
    %29 = vector.load %arg6[%c0_16, %c0_17] : memref<128x64xbf16, #tpu.memory_space<vmem>>, vector<128x64xbf16>
    %30 = arith.extf %29 : vector<128x64xbf16> to vector<128x64xf32>
    %cst_18 = arith.constant dense<0.000000e+00> : vector<8x64xf32>
    %31 = tpu.matmul %28, %30, %cst_18 {dimension_numbers = #tpu.dot_dimension_numbers<[1], [0], [0], [1], [0, 0, 1, 1], [], []>} : vector<8x128xf32>, vector<128x64xf32>, vector<8x64xf32> -> vector<8x64xf32>
    %c0_19 = arith.constant 0 : index
    %c0_20 = arith.constant 0 : index
    %32 = vector.load %arg7[%c0_19, %c0_20] : memref<1x64xf32, #tpu.memory_space<vmem>>, vector<1x64xf32>
    %33 = vector.broadcast %32 : vector<1x64xf32> to vector<8x64xf32>
    %34 = arith.addf %31, %33 : vector<8x64xf32>
    %cst_21 = arith.constant 5.000000e-01 : f32
    %35 = vector.broadcast %cst_21 : f32 to vector<8x64xf32>
    %36 = arith.mulf %35, %34 : vector<8x64xf32>
    %cst_22 = arith.constant 0.707106769 : f32
    %37 = vector.broadcast %cst_22 : f32 to vector<8x64xf32>
    %38 = arith.mulf %34, %37 : vector<8x64xf32>
    %39 = math.erf %38 : vector<8x64xf32>
    %cst_23 = arith.constant 1.000000e+00 : f32
    %40 = vector.broadcast %cst_23 : f32 to vector<8x64xf32>
    %41 = arith.addf %40, %39 : vector<8x64xf32>
    %42 = arith.mulf %36, %41 : vector<8x64xf32>
    %c0_24 = arith.constant 0 : index
    %c0_25 = arith.constant 0 : index
    %43 = vector.load %arg8[%c0_24, %c0_25] : memref<64x1xbf16, #tpu.memory_space<vmem>>, vector<64x1xbf16>
    %44 = arith.extf %43 : vector<64x1xbf16> to vector<64x1xf32>
    %cst_26 = arith.constant dense<0.000000e+00> : vector<8x1xf32>
    %45 = tpu.matmul %42, %44, %cst_26 {dimension_numbers = #tpu.dot_dimension_numbers<[1], [0], [0], [1], [0, 0, 1, 1], [], []>} : vector<8x64xf32>, vector<64x1xf32>, vector<8x1xf32> -> vector<8x1xf32>
    %c0_27 = arith.constant 0 : index
    %c0_28 = arith.constant 0 : index
    %46 = vector.load %arg9[%c0_27, %c0_28] : memref<1x1xf32, #tpu.memory_space<vmem>>, vector<1x1xf32>
    %47 = vector.broadcast %46 : vector<1x1xf32> to vector<8x1xf32>
    %48 = arith.addf %45, %47 : vector<8x1xf32>
    %c0_29 = arith.constant 0 : index
    %c0_30 = arith.constant 0 : index
    %49 = vector.load %arg10[%c0_29, %c0_30] : memref<8x1xf32, #tpu.memory_space<vmem>>, vector<8x1xf32>
    tpu.vector_store %arg10[%c0_29, %c0_30], %48 {strides = array<i32>} : memref<8x1xf32, #tpu.memory_space<vmem>>, vector<8x1xf32>,
    return
  }
  func.func @transform_0(%arg0: i32) -> (i32, i32) {
    %c0_i32 = arith.constant 0 : i32
    %c0_i32_0 = arith.constant 0 : i32
    return %arg0, %c0_i32 : i32, i32
  }
  func.func @transform_1(%arg0: i32) -> (i32, i32) {
    %c0_i32 = arith.constant 0 : i32
    %c0_i32_0 = arith.constant 0 : i32
    %c0_i32_1 = arith.constant 0 : i32
    return %c0_i32, %c0_i32_0 : i32, i32
  }
  func.func @transform_2(%arg0: i32) -> (i32, i32) {
    %c0_i32 = arith.constant 0 : i32
    %c0_i32_0 = arith.constant 0 : i32
    %c0_i32_1 = arith.constant 0 : i32
    return %c0_i32, %c0_i32_0 : i32, i32
  }
  func.func @transform_3(%arg0: i32) -> (i32, i32) {
    %c0_i32 = arith.constant 0 : i32
    %c0_i32_0 = arith.constant 0 : i32
    %c0_i32_1 = arith.constant 0 : i32
    return %c0_i32, %c0_i32_0 : i32, i32
  }
  func.func @transform_4(%arg0: i32) -> (i32, i32) {
    %c0_i32 = arith.constant 0 : i32
    %c0_i32_0 = arith.constant 0 : i32
    %c0_i32_1 = arith.constant 0 : i32
    return %c0_i32, %c0_i32_0 : i32, i32
  }
  func.func @transform_5(%arg0: i32) -> (i32, i32) {
    %c0_i32 = arith.constant 0 : i32
    %c0_i32_0 = arith.constant 0 : i32
    %c0_i32_1 = arith.constant 0 : i32
    return %c0_i32, %c0_i32_0 : i32, i32
  }
  func.func @transform_6(%arg0: i32) -> (i32, i32) {
    %c0_i32 = arith.constant 0 : i32
    %c0_i32_0 = arith.constant 0 : i32
    %c0_i32_1 = arith.constant 0 : i32
    return %c0_i32, %c0_i32_0 : i32, i32
  }
  func.func @transform_7(%arg0: i32) -> (i32, i32) {
    %c0_i32 = arith.constant 0 : i32
    %c0_i32_0 = arith.constant 0 : i32
    %c0_i32_1 = arith.constant 0 : i32
    return %c0_i32, %c0_i32_0 : i32, i32
  }
  func.func @transform_8(%arg0: i32) -> (i32, i32) {
    %c0_i32 = arith.constant 0 : i32
    %c0_i32_0 = arith.constant 0 : i32
    %c0_i32_1 = arith.constant 0 : i32
    return %c0_i32, %c0_i32_0 : i32, i32
  }
  func.func @transform_9(%arg0: i32) -> (i32, i32) {
    %c0_i32 = arith.constant 0 : i32
    %c0_i32_0 = arith.constant 0 : i32
    return %arg0, %c0_i32 : i32, i32
  }
}

</mosaic_0001>

<llo_original>
// kernel: tpu_custom_call.1
$region0: #{tpu_custom_call.1}
  #allocation0 [shape = 'u32[]', space=smem, size = 0x4, offset = 0x4, fixed_abs, tag = 'smem constant byte address 0x4 - core index']
  #allocation1 [shape = 'u32[144,128]{1,0:T(1,128)}', space=vmem, size = 0x12000, scoped, tag = 'internal scratch']
  #allocation2 [shape = 'f32[1,1]{1,0:T(1,128)S(1)}', space=vmem, size = 0x200, scoped, tag = 'scoped memory for tpu_custom_call.1']
  %s0 = inlined_call_operand.hbm [shape: f32[8,768], index: 0, kind: input, shape index: {}]
  %s1 = inlined_call_operand.hbm [shape: bf16[768,1024], index: 1, kind: input, shape index: {}]
  %s2 = inlined_call_operand.hbm [shape: f32[1,1024], index: 2, kind: input, shape index: {}]
  %s3 = inlined_call_operand.hbm [shape: bf16[1024,128], index: 3, kind: input, shape index: {}]
  %s4 = inlined_call_operand.hbm [shape: f32[1,128], index: 4, kind: input, shape index: {}]
  %s5 = inlined_call_operand.vmem [shape: bf16[128,64], index: 5, kind: input, shape index: {}]
  %s6 = inlined_call_operand.hbm [shape: f32[1,64], index: 6, kind: input, shape index: {}]
  %s7 = inlined_call_operand.vmem [shape: bf16[64,1], index: 7, kind: input, shape index: {}]
  %s8 = inlined_call_operand.<no memory space> [shape: f32[1,1], index: 8, kind: input, shape index: {}]
  %s9 = inlined_call_operand.vmem [shape: f32[8,1], index: 9, kind: output, shape index: {}]
  %s10 = sld [smem:[#allocation0]]
  $region70: #{tpu_custom_call.1} parent=0
    _
  %s12 = ssub.s32 1, %s10
  %s13 = scalar_select 0, %s12, %s10
  %v14 = vstv %s8
  %15 = vst [vmem:[#allocation2] sm:$0x1] %v14
  $region1: #{tpu_custom_call.1} parent=0
    #allocation3 [shape = 'u8[24576]{0}', space=vmem, size = 0x6000, scoped, tag = 'input window, operand 0, single buffered']
    #allocation4 [shape = 's32[1]{0}', space=sflag, size = 0x4, scoped, tag = 'scoped memory for tpu_custom_call.1']
    #allocation5 [shape = 'u8[1572864]{0}', space=vmem, size = 0x180000, scoped, tag = 'input window, operand 1, single buffered']
    #allocation6 [shape = 's32[1]{0}', space=sflag, size = 0x4, scoped, tag = 'scoped memory for tpu_custom_call.1']
    #allocation7 [shape = 'u8[4096]{0}', space=vmem, size = 0x1000, scoped, tag = 'input window, operand 2, single buffered']
    #allocation8 [shape = 'u8[262144]{0}', space=vmem, size = 0x40000, scoped, tag = 'input window, operand 3, single buffered']
    #allocation9 [shape = 's32[1]{0}', space=sflag, size = 0x4, scoped, tag = 'scoped memory for tpu_custom_call.1']
    #allocation10 [shape = 'u8[512]{0}', space=vmem, size = 0x400, scoped, tag = 'input window, operand 4, single buffered']
    #allocation11 [shape = 'u8[512]{0}', space=vmem, size = 0x400, scoped, tag = 'input window, operand 6, single buffered']
    #allocation12 [shape = 's32[1]{0}', space=sflag, size = 0x4, scoped, tag = 'scoped memory for tpu_custom_call.1']
    %16 = vsyncpa [#allocation4], 0
    %17 = vsyncpa [#allocation6], 0
    %18 = vsyncpa [#allocation9], 0
    %19 = vsyncpa [#allocation12], 0
    // Predicated region
    $region2: #{tpu_custom_call.1} parent=1 // pred_check
      _
    $region3: #{tpu_custom_call.1} parent=1 // pred_check_branch
      %21 = sbr.rel (0) target = $region5
    $region4: #{tpu_custom_call.1} parent=1 // pred_region
      %s23 = ssub.s32 768, 768
      %24 = vsyncadd [#allocation4], %s23
      %s26 = sshll.u32 [#allocation3], 4
      %s27 = int_to_ptr.vmem [resolvable:$true] %s26
      %29 = dma.hbm_to_vmem [thread:$0]  %s0, 768, %s27, [#allocation4]
    $region5: #{tpu_custom_call.1} parent=1 // pred_fallthru
      _
    // Predicated region
    $region6: #{tpu_custom_call.1} parent=1 // pred_check
      _
    $region7: #{tpu_custom_call.1} parent=1 // pred_check_branch
      %31 = sbr.rel (0) target = $region9
    $region8: #{tpu_custom_call.1} parent=1 // pred_region
      %s33 = ssub.s32 49152, 49152
      %34 = vsyncadd [#allocation6], %s33
      %s35 = sshll.u32 [#allocation5], 4
      %s36 = int_to_ptr.vmem [resolvable:$true] %s35
      %41 = dma.hbm_to_vmem [thread:$0]  %s1, 49152, %s36, [#allocation6], 512, 512, 32
    $region9: #{tpu_custom_call.1} parent=1 // pred_fallthru
      _
    // Predicated region
    $region10: #{tpu_custom_call.1} parent=1 // pred_check
      _
    $region11: #{tpu_custom_call.1} parent=1 // pred_check_branch
      %43 = sbr.rel (0) target = $region13
    $region12: #{tpu_custom_call.1} parent=1 // pred_region
      %s45 = ssub.s32 128, 128
      %46 = vsyncadd [#allocation6], %s45
      %s48 = sshll.u32 [#allocation7], 4
      %s49 = int_to_ptr.vmem [resolvable:$true] %s48
      %51 = dma.hbm_to_vmem [thread:$0]  %s2, 128, %s49, [#allocation6]
    $region13: #{tpu_custom_call.1} parent=1 // pred_fallthru
      _
    // Predicated region
    $region14: #{tpu_custom_call.1} parent=1 // pred_check
      _
    $region15: #{tpu_custom_call.1} parent=1 // pred_check_branch
      %53 = sbr.rel (0) target = $region17
    $region16: #{tpu_custom_call.1} parent=1 // pred_region
      %s55 = ssub.s32 8192, 8192
      %56 = vsyncadd [#allocation9], %s55
      %s57 = sshll.u32 [#allocation8], 4
      %s58 = int_to_ptr.vmem [resolvable:$true] %s57
      %63 = dma.hbm_to_vmem [thread:$0]  %s3, 8192, %s58, [#allocation9], 64, 64, 4
    $region17: #{tpu_custom_call.1} parent=1 // pred_fallthru
      _
    // Predicated region
    $region18: #{tpu_custom_call.1} parent=1 // pred_check
      _
    $region19: #{tpu_custom_call.1} parent=1 // pred_check_branch
      %65 = sbr.rel (0) target = $region21
    $region20: #{tpu_custom_call.1} parent=1 // pred_region
      %s67 = ssub.s32 16, 16
      %68 = vsyncadd [#allocation9], %s67
      %s70 = sshll.u32 [#allocation10], 4
      %s71 = int_to_ptr.vmem [resolvable:$true] %s70
      %73 = dma.hbm_to_vmem [thread:$0]  %s4, 16, %s71, [#allocation9]
    $region21: #{tpu_custom_call.1} parent=1 // pred_fallthru
      _
    // Predicated region
    $region22: #{tpu_custom_call.1} parent=1 // pred_check
      _
    $region23: #{tpu_custom_call.1} parent=1 // pred_check_branch
      %75 = sbr.rel (0) target = $region25
    $region24: #{tpu_custom_call.1} parent=1 // pred_region
      _
    $region25: #{tpu_custom_call.1} parent=1 // pred_fallthru
      _
    // Predicated region
    $region26: #{tpu_custom_call.1} parent=1 // pred_check
      _
    $region27: #{tpu_custom_call.1} parent=1 // pred_check_branch
      %77 = sbr.rel (0) target = $region29
    $region28: #{tpu_custom_call.1} parent=1 // pred_region
      %s79 = ssub.s32 16, 16
      %80 = vsyncadd [#allocation12], %s79
      %s82 = sshll.u32 [#allocation11], 4
      %s83 = int_to_ptr.vmem [resolvable:$true] %s82
      %85 = dma.hbm_to_vmem [thread:$0]  %s6, 16, %s83, [#allocation12]
    $region29: #{tpu_custom_call.1} parent=1 // pred_fallthru
      _
    // Predicated region
    $region30: #{tpu_custom_call.1} parent=1 // pred_check
      _
    $region31: #{tpu_custom_call.1} parent=1 // pred_check_branch
      %87 = sbr.rel (0) target = $region33
    $region32: #{tpu_custom_call.1} parent=1 // pred_region
      _
    $region33: #{tpu_custom_call.1} parent=1 // pred_fallthru
      _
    // Predicated region
    $region34: #{tpu_custom_call.1} parent=1 // pred_check
      _
    $region35: #{tpu_custom_call.1} parent=1 // pred_check_branch
      %89 = sbr.rel (0) target = $region37
    $region36: #{tpu_custom_call.1} parent=1 // pred_region
      _
    $region37: #{tpu_custom_call.1} parent=1 // pred_fallthru
      _
    // Predicated region
    $region38: #{tpu_custom_call.1} parent=1 // pred_check
      _
    $region39: #{tpu_custom_call.1} parent=1 // pred_check_branch
      %91 = sbr.rel (0) target = $region41
    $region40: #{tpu_custom_call.1} parent=1 // pred_region
      %92 = dma.done [#allocation4], 768
    $region41: #{tpu_custom_call.1} parent=1 // pred_fallthru
      _
    // Predicated region
    $region42: #{tpu_custom_call.1} parent=1 // pred_check
      _
    $region43: #{tpu_custom_call.1} parent=1 // pred_check_branch
      %94 = sbr.rel (0) target = $region45
    $region44: #{tpu_custom_call.1} parent=1 // pred_region
      %95 = dma.done [#allocation6], 49152
    $region45: #{tpu_custom_call.1} parent=1 // pred_fallthru
      _
    // Predicated region
    $region46: #{tpu_custom_call.1} parent=1 // pred_check
      _
    $region47: #{tpu_custom_call.1} parent=1 // pred_check_branch
      %97 = sbr.rel (0) target = $region49
    $region48: #{tpu_custom_call.1} parent=1 // pred_region
      %98 = dma.done [#allocation6], 128
    $region49: #{tpu_custom_call.1} parent=1 // pred_fallthru
      _
    // Predicated region
    $region50: #{tpu_custom_call.1} parent=1 // pred_check
      _
    $region51: #{tpu_custom_call.1} parent=1 // pred_check_branch
      %100 = sbr.rel (0) target = $region53
    $region52: #{tpu_custom_call.1} parent=1 // pred_region
      %101 = dma.done [#allocation9], 8192
    $region53: #{tpu_custom_call.1} parent=1 // pred_fallthru
      _
    // Predicated region
    $region54: #{tpu_custom_call.1} parent=1 // pred_check
      _
    $region55: #{tpu_custom_call.1} parent=1 // pred_check_branch
      %103 = sbr.rel (0) target = $region57
    $region56: #{tpu_custom_call.1} parent=1 // pred_region
      %104 = dma.done [#allocation9], 16
    $region57: #{tpu_custom_call.1} parent=1 // pred_fallthru
      _
    // Predicated region
    $region58: #{tpu_custom_call.1} parent=1 // pred_check
      _
    $region59: #{tpu_custom_call.1} parent=1 // pred_check_branch
      %106 = sbr.rel (0) target = $region61
    $region60: #{tpu_custom_call.1} parent=1 // pred_region
      %107 = dma.done [#allocation12], 16
    $region61: #{tpu_custom_call.1} parent=1 // pred_fallthru
      _
    %v108 = vld [vmem:[#allocation3] sm:$0xff]
    %v109 = vld [vmem:[#allocation3 + $0x8] sm:$0xff]
    %v110 = vld [vmem:[#allocation3 + $0x10] sm:$0xff]
    %v111 = vld [vmem:[#allocation3 + $0x18] sm:$0xff]
    %v112 = vld [vmem:[#allocation3 + $0x20] sm:$0xff]
    %v113 = vld [vmem:[#allocation3 + $0x28] sm:$0xff]
    %v114 = vld [vmem:[#allocation5] sm:$0xff]
    %v115 = vld [vmem:[#allocation5 + $0x8] sm:$0xff]
    %v116 = vld [vmem:[#allocation5 + $0x10] sm:$0xff]
    %v117 = vld [vmem:[#allocation5 + $0x18] sm:$0xff]
    %v118 = vld [vmem:[#allocation5 + $0x20] sm:$0xff]
    %v119 = vld [vmem:[#allocation5 + $0x28] sm:$0xff]
    %v120 = vld [vmem:[#allocation5 + $0x30] sm:$0xff]
    %v121 = vld [vmem:[#allocation5 + $0x38] sm:$0xff]
    %v122 = vld [vmem:[#allocation5 + $0x40] sm:$0xff]
    %v123 = vld [vmem:[#allocation5 + $0x48] sm:$0xff]
    %v124 = vld [vmem:[#allocation5 + $0x50] sm:$0xff]
    %v125 = vld [vmem:[#allocation5 + $0x58] sm:$0xff]
    %v126 = vld [vmem:[#allocation5 + $0x60] sm:$0xff]
    %v127 = vld [vmem:[#allocation5 + $0x68] sm:$0xff]
    %v128 = vld [vmem:[#allocation5 + $0x70] sm:$0xff]
    %v129 = vld [vmem:[#allocation5 + $0x78] sm:$0xff]
    %v130 = vld [vmem:[#allocation5 + $0x80] sm:$0xff]
    %v131 = vld [vmem:[#allocation5 + $0x88] sm:$0xff]
    %v132 = vld [vmem:[#allocation5 + $0x90] sm:$0xff]
    %v133 = vld [vmem:[#allocation5 + $0x98] sm:$0xff]
    %v134 = vld [vmem:[#allocation5 + $0xa0] sm:$0xff]
    %v135 = vld [vmem:[#allocation5 + $0xa8] sm:$0xff]
    %v136 = vld [vmem:[#allocation5 + $0xb0] sm:$0xff]
    %v137 = vld [vmem:[#allocation5 + $0xb8] sm:$0xff]
    %v138 = vld [vmem:[#allocation5 + $0xc0] sm:$0xff]
    %v139 = vld [vmem:[#allocation5 + $0xc8] sm:$0xff]
    %v140 = vld [vmem:[#allocation5 + $0xd0] sm:$0xff]
    %v141 = vld [vmem:[#allocation5 + $0xd8] sm:$0xff]
    %v142 = vld [vmem:[#allocation5 + $0xe0] sm:$0xff]
    %v143 = vld [vmem:[#allocation5 + $0xe8] sm:$0xff]
    %v144 = vld [vmem:[#allocation5 + $0xf0] sm:$0xff]
    %v145 = vld [vmem:[#allocation5 + $0xf8] sm:$0xff]
    %v146 = vld [vmem:[#allocation5 + $0x100] sm:$0xff]
    %v147 = vld [vmem:[#allocation5 + $0x108] sm:$0xff]
    %v148 = vld [vmem:[#allocation5 + $0x110] sm:$0xff]
    %v149 = vld [vmem:[#allocation5 + $0x118] sm:$0xff]
    %v150 = vld [vmem:[#allocation5 + $0x120] sm:$0xff]
    %v151 = vld [vmem:[#allocation5 + $0x128] sm:$0xff]
    %v152 = vld [vmem:[#allocation5 + $0x130] sm:$0xff]
    %v153 = vld [vmem:[#allocation5 + $0x138] sm:$0xff]
    %v154 = vld [vmem:[#allocation5 + $0x140] sm:$0xff]
    %v155 = vld [vmem:[#allocation5 + $0x148] sm:$0xff]
    %v156 = vld [vmem:[#allocation5 + $0x150] sm:$0xff]
    %v157 = vld [vmem:[#allocation5 + $0x158] sm:$0xff]
    %v158 = vld [vmem:[#allocation5 + $0x160] sm:$0xff]
    %v159 = vld [vmem:[#allocation5 + $0x168] sm:$0xff]
    %v160 = vld [vmem:[#allocation5 + $0x170] sm:$0xff]
    %v161 = vld [vmem:[#allocation5 + $0x178] sm:$0xff]
    %v162 = vld [vmem:[#allocation5 + $0x180] sm:$0xff]
    %v163 = vld [vmem:[#allocation5 + $0x188] sm:$0xff]
    %v164 = vld [vmem:[#allocation5 + $0x190] sm:$0xff]
    %v165 = vld [vmem:[#allocation5 + $0x198] sm:$0xff]
    %v166 = vld [vmem:[#allocation5 + $0x1a0] sm:$0xff]
    %v167 = vld [vmem:[#allocation5 + $0x1a8] sm:$0xff]
    %v168 = vld [vmem:[#allocation5 + $0x1b0] sm:$0xff]
    %v169 = vld [vmem:[#allocation5 + $0x1b8] sm:$0xff]
    %v170 = vld [vmem:[#allocation5 + $0x1c0] sm:$0xff]
    %v171 = vld [vmem:[#allocation5 + $0x1c8] sm:$0xff]
    %v172 = vld [vmem:[#allocation5 + $0x1d0] sm:$0xff]
    %v173 = vld [vmem:[#allocation5 + $0x1d8] sm:$0xff]
    %v174 = vld [vmem:[#allocation5 + $0x1e0] sm:$0xff]
    %v175 = vld [vmem:[#allocation5 + $0x1e8] sm:$0xff]
    %v176 = vld [vmem:[#allocation5 + $0x1f0] sm:$0xff]
    %v177 = vld [vmem:[#allocation5 + $0x1f8] sm:$0xff]
    %v178 = vld [vmem:[#allocation5 + $0x200] sm:$0xff]
    %v179 = vld [vmem:[#allocation5 + $0x208] sm:$0xff]
    %v180 = vld [vmem:[#allocation5 + $0x210] sm:$0xff]
    %v181 = vld [vmem:[#allocation5 + $0x218] sm:$0xff]
    %v182 = vld [vmem:[#allocation5 + $0x220] sm:$0xff]
    %v183 = vld [vmem:[#allocation5 + $0x228] sm:$0xff]
    %v184 = vld [vmem:[#allocation5 + $0x230] sm:$0xff]
    %v185 = vld [vmem:[#allocation5 + $0x238] sm:$0xff]
    %v186 = vld [vmem:[#allocation5 + $0x240] sm:$0xff]
    %v187 = vld [vmem:[#allocation5 + $0x248] sm:$0xff]
    %v188 = vld [vmem:[#allocation5 + $0x250] sm:$0xff]
    %v189 = vld [vmem:[#allocation5 + $0x258] sm:$0xff]
    %v190 = vld [vmem:[#allocation5 + $0x260] sm:$0xff]
    %v191 = vld [vmem:[#allocation5 + $0x268] sm:$0xff]
    %v192 = vld [vmem:[#allocation5 + $0x270] sm:$0xff]
    %v193 = vld [vmem:[#allocation5 + $0x278] sm:$0xff]
    %v194 = vld [vmem:[#allocation5 + $0x280] sm:$0xff]
    %v195 = vld [vmem:[#allocation5 + $0x288] sm:$0xff]
    %v196 = vld [vmem:[#allocation5 + $0x290] sm:$0xff]
    %v197 = vld [vmem:[#allocation5 + $0x298] sm:$0xff]
    %v198 = vld [vmem:[#allocation5 + $0x2a0] sm:$0xff]
    %v199 = vld [vmem:[#allocation5 + $0x2a8] sm:$0xff]
    %v200 = vld [vmem:[#allocation5 + $0x2b0] sm:$0xff]
    %v201 = vld [vmem:[#allocation5 + $0x2b8] sm:$0xff]
    %v202 = vld [vmem:[#allocation5 + $0x2c0] sm:$0xff]
    %v203 = vld [vmem:[#allocation5 + $0x2c8] sm:$0xff]
    %v204 = vld [vmem:[#allocation5 + $0x2d0] sm:$0xff]
    %v205 = vld [vmem:[#allocation5 + $0x2d8] sm:$0xff]
    %v206 = vld [vmem:[#allocation5 + $0x2e0] sm:$0xff]
    %v207 = vld [vmem:[#allocation5 + $0x2e8] sm:$0xff]
    %v208 = vld [vmem:[#allocation5 + $0x2f0] sm:$0xff]
    %v209 = vld [vmem:[#allocation5 + $0x2f8] sm:$0xff]
    %v210 = vld [vmem:[#allocation5 + $0x300] sm:$0xff]
    %v211 = vld [vmem:[#allocation5 + $0x308] sm:$0xff]
    %v212 = vld [vmem:[#allocation5 + $0x310] sm:$0xff]
    %v213 = vld [vmem:[#allocation5 + $0x318] sm:$0xff]
    %v214 = vld [vmem:[#allocation5 + $0x320] sm:$0xff]
    %v215 = vld [vmem:[#allocation5 + $0x328] sm:$0xff]
    %v216 = vld [vmem:[#allocation5 + $0x330] sm:$0xff]
    %v217 = vld [vmem:[#allocation5 + $0x338] sm:$0xff]
    %v218 = vld [vmem:[#allocation5 + $0x340] sm:$0xff]
    %v219 = vld [vmem:[#allocation5 + $0x348] sm:$0xff]
    %v220 = vld [vmem:[#allocation5 + $0x350] sm:$0xff]
    %v221 = vld [vmem:[#allocation5 + $0x358] sm:$0xff]
    %v222 = vld [vmem:[#allocation5 + $0x360] sm:$0xff]
    %v223 = vld [vmem:[#allocation5 + $0x368] sm:$0xff]
    %v224 = vld [vmem:[#allocation5 + $0x370] sm:$0xff]
    %v225 = vld [vmem:[#allocation5 + $0x378] sm:$0xff]
    %v226 = vld [vmem:[#allocation5 + $0x380] sm:$0xff]
    %v227 = vld [vmem:[#allocation5 + $0x388] sm:$0xff]
    %v228 = vld [vmem:[#allocation5 + $0x390] sm:$0xff]
    %v229 = vld [vmem:[#allocation5 + $0x398] sm:$0xff]
    %v230 = vld [vmem:[#allocation5 + $0x3a0] sm:$0xff]
    %v231 = vld [vmem:[#allocation5 + $0x3a8] sm:$0xff]
    %v232 = vld [vmem:[#allocation5 + $0x3b0] sm:$0xff]
    %v233 = vld [vmem:[#allocation5 + $0x3b8] sm:$0xff]
    %v234 = vld [vmem:[#allocation5 + $0x3c0] sm:$0xff]
    %v235 = vld [vmem:[#allocation5 + $0x3c8] sm:$0xff]
    %v236 = vld [vmem:[#allocation5 + $0x3d0] sm:$0xff]
    %v237 = vld [vmem:[#allocation5 + $0x3d8] sm:$0xff]
    %v238 = vld [vmem:[#allocation5 + $0x3e0] sm:$0xff]
    %v239 = vld [vmem:[#allocation5 + $0x3e8] sm:$0xff]
    %v240 = vld [vmem:[#allocation5 + $0x3f0] sm:$0xff]
    %v241 = vld [vmem:[#allocation5 + $0x3f8] sm:$0xff]
    %v242 = vld [vmem:[#allocation5 + $0x400] sm:$0xff]
    %v243 = vld [vmem:[#allocation5 + $0x408] sm:$0xff]
    %v244 = vld [vmem:[#allocation5 + $0x410] sm:$0xff]
    %v245 = vld [vmem:[#allocation5 + $0x418] sm:$0xff]
    %v246 = vld [vmem:[#allocation5 + $0x420] sm:$0xff]
    %v247 = vld [vmem:[#allocation5 + $0x428] sm:$0xff]
    %v248 = vld [vmem:[#allocation5 + $0x430] sm:$0xff]
    %v249 = vld [vmem:[#allocation5 + $0x438] sm:$0xff]
    %v250 = vld [vmem:[#allocation5 + $0x440] sm:$0xff]
    %v251 = vld [vmem:[#allocation5 + $0x448] sm:$0xff]
    %v252 = vld [vmem:[#allocation5 + $0x450] sm:$0xff]
    %v253 = vld [vmem:[#allocation5 + $0x458] sm:$0xff]
    %v254 = vld [vmem:[#allocation5 + $0x460] sm:$0xff]
    %v255 = vld [vmem:[#allocation5 + $0x468] sm:$0xff]
    %v256 = vld [vmem:[#allocation5 + $0x470] sm:$0xff]
    %v257 = vld [vmem:[#allocation5 + $0x478] sm:$0xff]
    %v258 = vld [vmem:[#allocation5 + $0x480] sm:$0xff]
    %v259 = vld [vmem:[#allocation5 + $0x488] sm:$0xff]
    %v260 = vld [vmem:[#allocation5 + $0x490] sm:$0xff]
    %v261 = vld [vmem:[#allocation5 + $0x498] sm:$0xff]
    %v262 = vld [vmem:[#allocation5 + $0x4a0] sm:$0xff]
    %v263 = vld [vmem:[#allocation5 + $0x4a8] sm:$0xff]
    %v264 = vld [vmem:[#allocation5 + $0x4b0] sm:$0xff]
    %v265 = vld [vmem:[#allocation5 + $0x4b8] sm:$0xff]
    %v266 = vld [vmem:[#allocation5 + $0x4c0] sm:$0xff]
    %v267 = vld [vmem:[#allocation5 + $0x4c8] sm:$0xff]
    %v268 = vld [vmem:[#allocation5 + $0x4d0] sm:$0xff]
    %v269 = vld [vmem:[#allocation5 + $0x4d8] sm:$0xff]
    %v270 = vld [vmem:[#allocation5 + $0x4e0] sm:$0xff]
    %v271 = vld [vmem:[#allocation5 + $0x4e8] sm:$0xff]
    %v272 = vld [vmem:[#allocation5 + $0x4f0] sm:$0xff]
    %v273 = vld [vmem:[#allocation5 + $0x4f8] sm:$0xff]
    %v274 = vld [vmem:[#allocation5 + $0x500] sm:$0xff]
    %v275 = vld [vmem:[#allocation5 + $0x508] sm:$0xff]
    %v276 = vld [vmem:[#allocation5 + $0x510] sm:$0xff]
    %v277 = vld [vmem:[#allocation5 + $0x518] sm:$0xff]
    %v278 = vld [vmem:[#allocation5 + $0x520] sm:$0xff]
    %v279 = vld [vmem:[#allocation5 + $0x528] sm:$0xff]
    %v280 = vld [vmem:[#allocation5 + $0x530] sm:$0xff]
    %v281 = vld [vmem:[#allocation5 + $0x538] sm:$0xff]
    %v282 = vld [vmem:[#allocation5 + $0x540] sm:$0xff]
    %v283 = vld [vmem:[#allocation5 + $0x548] sm:$0xff]
    %v284 = vld [vmem:[#allocation5 + $0x550] sm:$0xff]
    %v285 = vld [vmem:[#allocation5 + $0x558] sm:$0xff]
    %v286 = vld [vmem:[#allocation5 + $0x560] sm:$0xff]
    %v287 = vld [vmem:[#allocation5 + $0x568] sm:$0xff]
    %v288 = vld [vmem:[#allocation5 + $0x570] sm:$0xff]
    %v289 = vld [vmem:[#allocation5 + $0x578] sm:$0xff]
    %v290 = vld [vmem:[#allocation5 + $0x580] sm:$0xff]
    %v291 = vld [vmem:[#allocation5 + $0x588] sm:$0xff]
    %v292 = vld [vmem:[#allocation5 + $0x590] sm:$0xff]
    %v293 = vld [vmem:[#allocation5 + $0x598] sm:$0xff]
    %v294 = vld [vmem:[#allocation5 + $0x5a0] sm:$0xff]
    %v295 = vld [vmem:[#allocation5 + $0x5a8] sm:$0xff]
    %v296 = vld [vmem:[#allocation5 + $0x5b0] sm:$0xff]
    %v297 = vld [vmem:[#allocation5 + $0x5b8] sm:$0xff]
    %v298 = vld [vmem:[#allocation5 + $0x5c0] sm:$0xff]
    %v299 = vld [vmem:[#allocation5 + $0x5c8] sm:$0xff]
    %v300 = vld [vmem:[#allocation5 + $0x5d0] sm:$0xff]
    %v301 = vld [vmem:[#allocation5 + $0x5d8] sm:$0xff]
    %v302 = vld [vmem:[#allocation5 + $0x5e0] sm:$0xff]
    %v303 = vld [vmem:[#allocation5 + $0x5e8] sm:$0xff]
    %v304 = vld [vmem:[#allocation5 + $0x5f0] sm:$0xff]
    %v305 = vld [vmem:[#allocation5 + $0x5f8] sm:$0xff]
    %v306 = vld [vmem:[#allocation5 + $0x600] sm:$0xff]
    %v307 = vld [vmem:[#allocation5 + $0x608] sm:$0xff]
    %v308 = vld [vmem:[#allocation5 + $0x610] sm:$0xff]
    %v309 = vld [vmem:[#allocation5 + $0x618] sm:$0xff]
    %v310 = vld [vmem:[#allocation5 + $0x620] sm:$0xff]
    %v311 = vld [vmem:[#allocation5 + $0x628] sm:$0xff]
    %v312 = vld [vmem:[#allocation5 + $0x630] sm:$0xff]
    %v313 = vld [vmem:[#allocation5 + $0x638] sm:$0xff]
    %v314 = vld [vmem:[#allocation5 + $0x640] sm:$0xff]
    %v315 = vld [vmem:[#allocation5 + $0x648] sm:$0xff]
    %v316 = vld [vmem:[#allocation5 + $0x650] sm:$0xff]
    %v317 = vld [vmem:[#allocation5 + $0x658] sm:$0xff]
    %v318 = vld [vmem:[#allocation5 + $0x660] sm:$0xff]
    %v319 = vld [vmem:[#allocation5 + $0x668] sm:$0xff]
    %v320 = vld [vmem:[#allocation5 + $0x670] sm:$0xff]
    %v321 = vld [vmem:[#allocation5 + $0x678] sm:$0xff]
    %v322 = vld [vmem:[#allocation5 + $0x680] sm:$0xff]
    %v323 = vld [vmem:[#allocation5 + $0x688] sm:$0xff]
    %v324 = vld [vmem:[#allocation5 + $0x690] sm:$0xff]
    %v325 = vld [vmem:[#allocation5 + $0x698] sm:$0xff]
    %v326 = vld [vmem:[#allocation5 + $0x6a0] sm:$0xff]
    %v327 = vld [vmem:[#allocation5 + $0x6a8] sm:$0xff]
    %v328 = vld [vmem:[#allocation5 + $0x6b0] sm:$0xff]
    %v329 = vld [vmem:[#allocation5 + $0x6b8] sm:$0xff]
    %v330 = vld [vmem:[#allocation5 + $0x6c0] sm:$0xff]
    %v331 = vld [vmem:[#allocation5 + $0x6c8] sm:$0xff]
    %v332 = vld [vmem:[#allocation5 + $0x6d0] sm:$0xff]
    %v333 = vld [vmem:[#allocation5 + $0x6d8] sm:$0xff]
    %v334 = vld [vmem:[#allocation5 + $0x6e0] sm:$0xff]
    %v335 = vld [vmem:[#allocation5 + $0x6e8] sm:$0xff]
    %v336 = vld [vmem:[#allocation5 + $0x6f0] sm:$0xff]
    %v337 = vld [vmem:[#allocation5 + $0x6f8] sm:$0xff]
    %v338 = vld [vmem:[#allocation5 + $0x700] sm:$0xff]
    %v339 = vld [vmem:[#allocation5 + $0x708] sm:$0xff]
    %v340 = vld [vmem:[#allocation5 + $0x710] sm:$0xff]
    %v341 = vld [vmem:[#allocation5 + $0x718] sm:$0xff]
    %v342 = vld [vmem:[#allocation5 + $0x720] sm:$0xff]
    %v343 = vld [vmem:[#allocation5 + $0x728] sm:$0xff]
    %v344 = vld [vmem:[#allocation5 + $0x730] sm:$0xff]
    %v345 = vld [vmem:[#allocation5 + $0x738] sm:$0xff]
    %v346 = vld [vmem:[#allocation5 + $0x740] sm:$0xff]
    %v347 = vld [vmem:[#allocation5 + $0x748] sm:$0xff]
    %v348 = vld [vmem:[#allocation5 + $0x750] sm:$0xff]
    %v349 = vld [vmem:[#allocation5 + $0x758] sm:$0xff]
    %v350 = vld [vmem:[#allocation5 + $0x760] sm:$0xff]
    %v351 = vld [vmem:[#allocation5 + $0x768] sm:$0xff]
    %v352 = vld [vmem:[#allocation5 + $0x770] sm:$0xff]
    %v353 = vld [vmem:[#allocation5 + $0x778] sm:$0xff]
    %v354 = vld [vmem:[#allocation5 + $0x780] sm:$0xff]
    %v355 = vld [vmem:[#allocation5 + $0x788] sm:$0xff]
    %v356 = vld [vmem:[#allocation5 + $0x790] sm:$0xff]
    %v357 = vld [vmem:[#allocation5 + $0x798] sm:$0xff]
    %v358 = vld [vmem:[#allocation5 + $0x7a0] sm:$0xff]
    %v359 = vld [vmem:[#allocation5 + $0x7a8] sm:$0xff]
    %v360 = vld [vmem:[#allocation5 + $0x7b0] sm:$0xff]
    %v361 = vld [vmem:[#allocation5 + $0x7b8] sm:$0xff]
    %v362 = vld [vmem:[#allocation5 + $0x7c0] sm:$0xff]
    %v363 = vld [vmem:[#allocation5 + $0x7c8] sm:$0xff]
    %v364 = vld [vmem:[#allocation5 + $0x7d0] sm:$0xff]
    %v365 = vld [vmem:[#allocation5 + $0x7d8] sm:$0xff]
    %v366 = vld [vmem:[#allocation5 + $0x7e0] sm:$0xff]
    %v367 = vld [vmem:[#allocation5 + $0x7e8] sm:$0xff]
    %v368 = vld [vmem:[#allocation5 + $0x7f0] sm:$0xff]
    %v369 = vld [vmem:[#allocation5 + $0x7f8] sm:$0xff]
    %v370 = vld [vmem:[#allocation5 + $0x800] sm:$0xff]
    %v371 = vld [vmem:[#allocation5 + $0x808] sm:$0xff]
    %v372 = vld [vmem:[#allocation5 + $0x810] sm:$0xff]
    %v373 = vld [vmem:[#allocation5 + $0x818] sm:$0xff]
    %v374 = vld [vmem:[#allocation5 + $0x820] sm:$0xff]
    %v375 = vld [vmem:[#allocation5 + $0x828] sm:$0xff]
    %v376 = vld [vmem:[#allocation5 + $0x830] sm:$0xff]
    %v377 = vld [vmem:[#allocation5 + $0x838] sm:$0xff]
    %v378 = vld [vmem:[#allocation5 + $0x840] sm:$0xff]
    %v379 = vld [vmem:[#allocation5 + $0x848] sm:$0xff]
    %v380 = vld [vmem:[#allocation5 + $0x850] sm:$0xff]
    %v381 = vld [vmem:[#allocation5 + $0x858] sm:$0xff]
    %v382 = vld [vmem:[#allocation5 + $0x860] sm:$0xff]
    %v383 = vld [vmem:[#allocation5 + $0x868] sm:$0xff]
    %v384 = vld [vmem:[#allocation5 + $0x870] sm:$0xff]
    %v385 = vld [vmem:[#allocation5 + $0x878] sm:$0xff]
    %v386 = vld [vmem:[#allocation5 + $0x880] sm:$0xff]
    %v387 = vld [vmem:[#allocation5 + $0x888] sm:$0xff]
    %v388 = vld [vmem:[#allocation5 + $0x890] sm:$0xff]
    %v389 = vld [vmem:[#allocation5 + $0x898] sm:$0xff]
    %v390 = vld [vmem:[#allocation5 + $0x8a0] sm:$0xff]
    %v391 = vld [vmem:[#allocation5 + $0x8a8] sm:$0xff]
    %v392 = vld [vmem:[#allocation5 + $0x8b0] sm:$0xff]
    %v393 = vld [vmem:[#allocation5 + $0x8b8] sm:$0xff]
    %v394 = vld [vmem:[#allocation5 + $0x8c0] sm:$0xff]
    %v395 = vld [vmem:[#allocation5 + $0x8c8] sm:$0xff]
    %v396 = vld [vmem:[#allocation5 + $0x8d0] sm:$0xff]
    %v397 = vld [vmem:[#allocation5 + $0x8d8] sm:$0xff]
    %v398 = vld [vmem:[#allocation5 + $0x8e0] sm:$0xff]
    %v399 = vld [vmem:[#allocation5 + $0x8e8] sm:$0xff]
    %v400 = vld [vmem:[#allocation5 + $0x8f0] sm:$0xff]
    %v401 = vld [vmem:[#allocation5 + $0x8f8] sm:$0xff]
    %v402 = vld [vmem:[#allocation5 + $0x900] sm:$0xff]
    %v403 = vld [vmem:[#allocation5 + $0x908] sm:$0xff]
    %v404 = vld [vmem:[#allocation5 + $0x910] sm:$0xff]
    %v405 = vld [vmem:[#allocation5 + $0x918] sm:$0xff]
    %v406 = vld [vmem:[#allocation5 + $0x920] sm:$0xff]
    %v407 = vld [vmem:[#allocation5 + $0x928] sm:$0xff]
    %v408 = vld [vmem:[#allocation5 + $0x930] sm:$0xff]
    %v409 = vld [vmem:[#allocation5 + $0x938] sm:$0xff]
    %v410 = vld [vmem:[#allocation5 + $0x940] sm:$0xff]
    %v411 = vld [vmem:[#allocation5 + $0x948] sm:$0xff]
    %v412 = vld [vmem:[#allocation5 + $0x950] sm:$0xff]
    %v413 = vld [vmem:[#allocation5 + $0x958] sm:$0xff]
    %v414 = vld [vmem:[#allocation5 + $0x960] sm:$0xff]
    %v415 = vld [vmem:[#allocation5 + $0x968] sm:$0xff]
    %v416 = vld [vmem:[#allocation5 + $0x970] sm:$0xff]
    %v417 = vld [vmem:[#allocation5 + $0x978] sm:$0xff]
    %v418 = vld [vmem:[#allocation5 + $0x980] sm:$0xff]
    %v419 = vld [vmem:[#allocation5 + $0x988] sm:$0xff]
    %v420 = vld [vmem:[#allocation5 + $0x990] sm:$0xff]
    %v421 = vld [vmem:[#allocation5 + $0x998] sm:$0xff]
    %v422 = vld [vmem:[#allocation5 + $0x9a0] sm:$0xff]
    %v423 = vld [vmem:[#allocation5 + $0x9a8] sm:$0xff]
    %v424 = vld [vmem:[#allocation5 + $0x9b0] sm:$0xff]
    %v425 = vld [vmem:[#allocation5 + $0x9b8] sm:$0xff]
    %v426 = vld [vmem:[#allocation5 + $0x9c0] sm:$0xff]
    %v427 = vld [vmem:[#allocation5 + $0x9c8] sm:$0xff]
    %v428 = vld [vmem:[#allocation5 + $0x9d0] sm:$0xff]
    %v429 = vld [vmem:[#allocation5 + $0x9d8] sm:$0xff]
    %v430 = vld [vmem:[#allocation5 + $0x9e0] sm:$0xff]
    %v431 = vld [vmem:[#allocation5 + $0x9e8] sm:$0xff]
    %v432 = vld [vmem:[#allocation5 + $0x9f0] sm:$0xff]
    %v433 = vld [vmem:[#allocation5 + $0x9f8] sm:$0xff]
    %v434 = vld [vmem:[#allocation5 + $0xa00] sm:$0xff]
    %v435 = vld [vmem:[#allocation5 + $0xa08] sm:$0xff]
    %v436 = vld [vmem:[#allocation5 + $0xa10] sm:$0xff]
    %v437 = vld [vmem:[#allocation5 + $0xa18] sm:$0xff]
    %v438 = vld [vmem:[#allocation5 + $0xa20] sm:$0xff]
    %v439 = vld [vmem:[#allocation5 + $0xa28] sm:$0xff]
    %v440 = vld [vmem:[#allocation5 + $0xa30] sm:$0xff]
    %v441 = vld [vmem:[#allocation5 + $0xa38] sm:$0xff]
    %v442 = vld [vmem:[#allocation5 + $0xa40] sm:$0xff]
    %v443 = vld [vmem:[#allocation5 + $0xa48] sm:$0xff]
    %v444 = vld [vmem:[#allocation5 + $0xa50] sm:$0xff]
    %v445 = vld [vmem:[#allocation5 + $0xa58] sm:$0xff]
    %v446 = vld [vmem:[#allocation5 + $0xa60] sm:$0xff]
    %v447 = vld [vmem:[#allocation5 + $0xa68] sm:$0xff]
    %v448 = vld [vmem:[#allocation5 + $0xa70] sm:$0xff]
    %v449 = vld [vmem:[#allocation5 + $0xa78] sm:$0xff]
    %v450 = vld [vmem:[#allocation5 + $0xa80] sm:$0xff]
    %v451 = vld [vmem:[#allocation5 + $0xa88] sm:$0xff]
    %v452 = vld [vmem:[#allocation5 + $0xa90] sm:$0xff]
    %v453 = vld [vmem:[#allocation5 + $0xa98] sm:$0xff]
    %v454 = vld [vmem:[#allocation5 + $0xaa0] sm:$0xff]
    %v455 = vld [vmem:[#allocation5 + $0xaa8] sm:$0xff]
    %v456 = vld [vmem:[#allocation5 + $0xab0] sm:$0xff]
    %v457 = vld [vmem:[#allocation5 + $0xab8] sm:$0xff]
    %v458 = vld [vmem:[#allocation5 + $0xac0] sm:$0xff]
    %v459 = vld [vmem:[#allocation5 + $0xac8] sm:$0xff]
    %v460 = vld [vmem:[#allocation5 + $0xad0] sm:$0xff]
    %v461 = vld [vmem:[#allocation5 + $0xad8] sm:$0xff]
    %v462 = vld [vmem:[#allocation5 + $0xae0] sm:$0xff]
    %v463 = vld [vmem:[#allocation5 + $0xae8] sm:$0xff]
    %v464 = vld [vmem:[#allocation5 + $0xaf0] sm:$0xff]
    %v465 = vld [vmem:[#allocation5 + $0xaf8] sm:$0xff]
    %v466 = vld [vmem:[#allocation5 + $0xb00] sm:$0xff]
    %v467 = vld [vmem:[#allocation5 + $0xb08] sm:$0xff]
    %v468 = vld [vmem:[#allocation5 + $0xb10] sm:$0xff]
    %v469 = vld [vmem:[#allocation5 + $0xb18] sm:$0xff]
    %v470 = vld [vmem:[#allocation5 + $0xb20] sm:$0xff]
    %v471 = vld [vmem:[#allocation5 + $0xb28] sm:$0xff]
    %v472 = vld [vmem:[#allocation5 + $0xb30] sm:$0xff]
    %v473 = vld [vmem:[#allocation5 + $0xb38] sm:$0xff]
    %v474 = vld [vmem:[#allocation5 + $0xb40] sm:$0xff]
    %v475 = vld [vmem:[#allocation5 + $0xb48] sm:$0xff]
    %v476 = vld [vmem:[#allocation5 + $0xb50] sm:$0xff]
    %v477 = vld [vmem:[#allocation5 + $0xb58] sm:$0xff]
    %v478 = vld [vmem:[#allocation5 + $0xb60] sm:$0xff]
    %v479 = vld [vmem:[#allocation5 + $0xb68] sm:$0xff]
    %v480 = vld [vmem:[#allocation5 + $0xb70] sm:$0xff]
    %v481 = vld [vmem:[#allocation5 + $0xb78] sm:$0xff]
    %v482 = vld [vmem:[#allocation5 + $0xb80] sm:$0xff]
    %v483 = vld [vmem:[#allocation5 + $0xb88] sm:$0xff]
    %v484 = vld [vmem:[#allocation5 + $0xb90] sm:$0xff]
    %v485 = vld [vmem:[#allocation5 + $0xb98] sm:$0xff]
    %v486 = vld [vmem:[#allocation5 + $0xba0] sm:$0xff]
    %v487 = vld [vmem:[#allocation5 + $0xba8] sm:$0xff]
    %v488 = vld [vmem:[#allocation5 + $0xbb0] sm:$0xff]
    %v489 = vld [vmem:[#allocation5 + $0xbb8] sm:$0xff]
    %v490 = vld [vmem:[#allocation5 + $0xbc0] sm:$0xff]
    %v491 = vld [vmem:[#allocation5 + $0xbc8] sm:$0xff]
    %v492 = vld [vmem:[#allocation5 + $0xbd0] sm:$0xff]
    %v493 = vld [vmem:[#allocation5 + $0xbd8] sm:$0xff]
    %v494 = vld [vmem:[#allocation5 + $0xbe0] sm:$0xff]
    %v495 = vld [vmem:[#allocation5 + $0xbe8] sm:$0xff]
    %v496 = vld [vmem:[#allocation5 + $0xbf0] sm:$0xff]
    %v497 = vld [vmem:[#allocation5 + $0xbf8] sm:$0xff]
    %v498 = vunpack.c.l.bf16 %v114
    %v499 = vunpack.c.h.bf16 %v114
    %v500 = vunpack.c.l.bf16 %v115
    %v501 = vunpack.c.h.bf16 %v115
    %v502 = vunpack.c.l.bf16 %v116
    %v503 = vunpack.c.h.bf16 %v116
    %v504 = vunpack.c.l.bf16 %v117
    %v505 = vunpack.c.h.bf16 %v117
    %v506 = vunpack.c.l.bf16 %v118
    %v507 = vunpack.c.h.bf16 %v118
    %v508 = vunpack.c.l.bf16 %v119
    %v509 = vunpack.c.h.bf16 %v119
    %v510 = vunpack.c.l.bf16 %v120
    %v511 = vunpack.c.h.bf16 %v120
    %v512 = vunpack.c.l.bf16 %v121
    %v513 = vunpack.c.h.bf16 %v121
    %v514 = vunpack.c.l.bf16 %v122
    %v515 = vunpack.c.h.bf16 %v122
    %v516 = vunpack.c.l.bf16 %v123
    %v517 = vunpack.c.h.bf16 %v123
    %v518 = vunpack.c.l.bf16 %v124
    %v519 = vunpack.c.h.bf16 %v124
    %v520 = vunpack.c.l.bf16 %v125
    %v521 = vunpack.c.h.bf16 %v125
    %v522 = vunpack.c.l.bf16 %v126
    %v523 = vunpack.c.h.bf16 %v126
    %v524 = vunpack.c.l.bf16 %v127
    %v525 = vunpack.c.h.bf16 %v127
    %v526 = vunpack.c.l.bf16 %v128
    %v527 = vunpack.c.h.bf16 %v128
    %v528 = vunpack.c.l.bf16 %v129
    %v529 = vunpack.c.h.bf16 %v129
    %v530 = vunpack.c.l.bf16 %v130
    %v531 = vunpack.c.h.bf16 %v130
    %v532 = vunpack.c.l.bf16 %v131
    %v533 = vunpack.c.h.bf16 %v131
    %v534 = vunpack.c.l.bf16 %v132
    %v535 = vunpack.c.h.bf16 %v132
    %v536 = vunpack.c.l.bf16 %v133
    %v537 = vunpack.c.h.bf16 %v133
    %v538 = vunpack.c.l.bf16 %v134
    %v539 = vunpack.c.h.bf16 %v134
    %v540 = vunpack.c.l.bf16 %v135
    %v541 = vunpack.c.h.bf16 %v135
    %v542 = vunpack.c.l.bf16 %v136
    %v543 = vunpack.c.h.bf16 %v136
    %v544 = vunpack.c.l.bf16 %v137
    %v545 = vunpack.c.h.bf16 %v137
    %v546 = vunpack.c.l.bf16 %v138
    %v547 = vunpack.c.h.bf16 %v138
    %v548 = vunpack.c.l.bf16 %v139
    %v549 = vunpack.c.h.bf16 %v139
    %v550 = vunpack.c.l.bf16 %v140
    %v551 = vunpack.c.h.bf16 %v140
    %v552 = vunpack.c.l.bf16 %v141
    %v553 = vunpack.c.h.bf16 %v141
    %v554 = vunpack.c.l.bf16 %v142
    %v555 = vunpack.c.h.bf16 %v142
    %v556 = vunpack.c.l.bf16 %v143
    %v557 = vunpack.c.h.bf16 %v143
    %v558 = vunpack.c.l.bf16 %v144
    %v559 = vunpack.c.h.bf16 %v144
    %v560 = vunpack.c.l.bf16 %v145
    %v561 = vunpack.c.h.bf16 %v145
    %v562 = vunpack.c.l.bf16 %v146
    %v563 = vunpack.c.h.bf16 %v146
    %v564 = vunpack.c.l.bf16 %v147
    %v565 = vunpack.c.h.bf16 %v147
    %v566 = vunpack.c.l.bf16 %v148
    %v567 = vunpack.c.h.bf16 %v148
    %v568 = vunpack.c.l.bf16 %v149
    %v569 = vunpack.c.h.bf16 %v149
    %v570 = vunpack.c.l.bf16 %v150
    %v571 = vunpack.c.h.bf16 %v150
    %v572 = vunpack.c.l.bf16 %v151
    %v573 = vunpack.c.h.bf16 %v151
    %v574 = vunpack.c.l.bf16 %v152
    %v575 = vunpack.c.h.bf16 %v152
    %v576 = vunpack.c.l.bf16 %v153
    %v577 = vunpack.c.h.bf16 %v153
    %v578 = vunpack.c.l.bf16 %v154
    %v579 = vunpack.c.h.bf16 %v154
    %v580 = vunpack.c.l.bf16 %v155
    %v581 = vunpack.c.h.bf16 %v155
    %v582 = vunpack.c.l.bf16 %v156
    %v583 = vunpack.c.h.bf16 %v156
    %v584 = vunpack.c.l.bf16 %v157
    %v585 = vunpack.c.h.bf16 %v157
    %v586 = vunpack.c.l.bf16 %v158
    %v587 = vunpack.c.h.bf16 %v158
    %v588 = vunpack.c.l.bf16 %v159
    %v589 = vunpack.c.h.bf16 %v159
    %v590 = vunpack.c.l.bf16 %v160
    %v591 = vunpack.c.h.bf16 %v160
    %v592 = vunpack.c.l.bf16 %v161
    %v593 = vunpack.c.h.bf16 %v161
    %v594 = vunpack.c.l.bf16 %v162
    %v595 = vunpack.c.h.bf16 %v162
    %v596 = vunpack.c.l.bf16 %v163
    %v597 = vunpack.c.h.bf16 %v163
    %v598 = vunpack.c.l.bf16 %v164
    %v599 = vunpack.c.h.bf16 %v164
    %v600 = vunpack.c.l.bf16 %v165
    %v601 = vunpack.c.h.bf16 %v165
    %v602 = vunpack.c.l.bf16 %v166
    %v603 = vunpack.c.h.bf16 %v166
    %v604 = vunpack.c.l.bf16 %v167
    %v605 = vunpack.c.h.bf16 %v167
    %v606 = vunpack.c.l.bf16 %v168
    %v607 = vunpack.c.h.bf16 %v168
    %v608 = vunpack.c.l.bf16 %v169
    %v609 = vunpack.c.h.bf16 %v169
    %v610 = vunpack.c.l.bf16 %v170
    %v611 = vunpack.c.h.bf16 %v170
    %v612 = vunpack.c.l.bf16 %v171
    %v613 = vunpack.c.h.bf16 %v171
    %v614 = vunpack.c.l.bf16 %v172
    %v615 = vunpack.c.h.bf16 %v172
    %v616 = vunpack.c.l.bf16 %v173
    %v617 = vunpack.c.h.bf16 %v173
    %v618 = vunpack.c.l.bf16 %v174
    %v619 = vunpack.c.h.bf16 %v174
    %v620 = vunpack.c.l.bf16 %v175
    %v621 = vunpack.c.h.bf16 %v175
    %v622 = vunpack.c.l.bf16 %v176
    %v623 = vunpack.c.h.bf16 %v176
    %v624 = vunpack.c.l.bf16 %v177
    %v625 = vunpack.c.h.bf16 %v177
    %v626 = vunpack.c.l.bf16 %v178
    %v627 = vunpack.c.h.bf16 %v178
    %v628 = vunpack.c.l.bf16 %v179
    %v629 = vunpack.c.h.bf16 %v179
    %v630 = vunpack.c.l.bf16 %v180
    %v631 = vunpack.c.h.bf16 %v180
    %v632 = vunpack.c.l.bf16 %v181
    %v633 = vunpack.c.h.bf16 %v181
    %v634 = vunpack.c.l.bf16 %v182
    %v635 = vunpack.c.h.bf16 %v182
    %v636 = vunpack.c.l.bf16 %v183
    %v637 = vunpack.c.h.bf16 %v183
    %v638 = vunpack.c.l.bf16 %v184
    %v639 = vunpack.c.h.bf16 %v184
    %v640 = vunpack.c.l.bf16 %v185
    %v641 = vunpack.c.h.bf16 %v185
    %v642 = vunpack.c.l.bf16 %v186
    %v643 = vunpack.c.h.bf16 %v186
    %v644 = vunpack.c.l.bf16 %v187
    %v645 = vunpack.c.h.bf16 %v187
    %v646 = vunpack.c.l.bf16 %v188
    %v647 = vunpack.c.h.bf16 %v188
    %v648 = vunpack.c.l.bf16 %v189
    %v649 = vunpack.c.h.bf16 %v189
    %v650 = vunpack.c.l.bf16 %v190
    %v651 = vunpack.c.h.bf16 %v190
    %v652 = vunpack.c.l.bf16 %v191
    %v653 = vunpack.c.h.bf16 %v191
    %v654 = vunpack.c.l.bf16 %v192
    %v655 = vunpack.c.h.bf16 %v192
    %v656 = vunpack.c.l.bf16 %v193
    %v657 = vunpack.c.h.bf16 %v193
    %v658 = vunpack.c.l.bf16 %v194
    %v659 = vunpack.c.h.bf16 %v194
    %v660 = vunpack.c.l.bf16 %v195
    %v661 = vunpack.c.h.bf16 %v195
    %v662 = vunpack.c.l.bf16 %v196
    %v663 = vunpack.c.h.bf16 %v196
    %v664 = vunpack.c.l.bf16 %v197
    %v665 = vunpack.c.h.bf16 %v197
    %v666 = vunpack.c.l.bf16 %v198
    %v667 = vunpack.c.h.bf16 %v198
    %v668 = vunpack.c.l.bf16 %v199
    %v669 = vunpack.c.h.bf16 %v199
    %v670 = vunpack.c.l.bf16 %v200
    %v671 = vunpack.c.h.bf16 %v200
    %v672 = vunpack.c.l.bf16 %v201
    %v673 = vunpack.c.h.bf16 %v201
    %v674 = vunpack.c.l.bf16 %v202
    %v675 = vunpack.c.h.bf16 %v202
    %v676 = vunpack.c.l.bf16 %v203
    %v677 = vunpack.c.h.bf16 %v203
    %v678 = vunpack.c.l.bf16 %v204
    %v679 = vunpack.c.h.bf16 %v204
    %v680 = vunpack.c.l.bf16 %v205
    %v681 = vunpack.c.h.bf16 %v205
    %v682 = vunpack.c.l.bf16 %v206
    %v683 = vunpack.c.h.bf16 %v206
    %v684 = vunpack.c.l.bf16 %v207
    %v685 = vunpack.c.h.bf16 %v207
    %v686 = vunpack.c.l.bf16 %v208
    %v687 = vunpack.c.h.bf16 %v208
    %v688 = vunpack.c.l.bf16 %v209
    %v689 = vunpack.c.h.bf16 %v209
    %v690 = vunpack.c.l.bf16 %v210
    %v691 = vunpack.c.h.bf16 %v210
    %v692 = vunpack.c.l.bf16 %v211
    %v693 = vunpack.c.h.bf16 %v211
    %v694 = vunpack.c.l.bf16 %v212
    %v695 = vunpack.c.h.bf16 %v212
    %v696 = vunpack.c.l.bf16 %v213
    %v697 = vunpack.c.h.bf16 %v213
    %v698 = vunpack.c.l.bf16 %v214
    %v699 = vunpack.c.h.bf16 %v214
    %v700 = vunpack.c.l.bf16 %v215
    %v701 = vunpack.c.h.bf16 %v215
    %v702 = vunpack.c.l.bf16 %v216
    %v703 = vunpack.c.h.bf16 %v216
    %v704 = vunpack.c.l.bf16 %v217
    %v705 = vunpack.c.h.bf16 %v217
    %v706 = vunpack.c.l.bf16 %v218
    %v707 = vunpack.c.h.bf16 %v218
    %v708 = vunpack.c.l.bf16 %v219
    %v709 = vunpack.c.h.bf16 %v219
    %v710 = vunpack.c.l.bf16 %v220
    %v711 = vunpack.c.h.bf16 %v220
    %v712 = vunpack.c.l.bf16 %v221
    %v713 = vunpack.c.h.bf16 %v221
    %v714 = vunpack.c.l.bf16 %v222
    %v715 = vunpack.c.h.bf16 %v222
    %v716 = vunpack.c.l.bf16 %v223
    %v717 = vunpack.c.h.bf16 %v223
    %v718 = vunpack.c.l.bf16 %v224
    %v719 = vunpack.c.h.bf16 %v224
    %v720 = vunpack.c.l.bf16 %v225
    %v721 = vunpack.c.h.bf16 %v225
    %v722 = vunpack.c.l.bf16 %v226
    %v723 = vunpack.c.h.bf16 %v226
    %v724 = vunpack.c.l.bf16 %v227
    %v725 = vunpack.c.h.bf16 %v227
    %v726 = vunpack.c.l.bf16 %v228
    %v727 = vunpack.c.h.bf16 %v228
    %v728 = vunpack.c.l.bf16 %v229
    %v729 = vunpack.c.h.bf16 %v229
    %v730 = vunpack.c.l.bf16 %v230
    %v731 = vunpack.c.h.bf16 %v230
    %v732 = vunpack.c.l.bf16 %v231
    %v733 = vunpack.c.h.bf16 %v231
    %v734 = vunpack.c.l.bf16 %v232
    %v735 = vunpack.c.h.bf16 %v232
    %v736 = vunpack.c.l.bf16 %v233
    %v737 = vunpack.c.h.bf16 %v233
    %v738 = vunpack.c.l.bf16 %v234
    %v739 = vunpack.c.h.bf16 %v234
    %v740 = vunpack.c.l.bf16 %v235
    %v741 = vunpack.c.h.bf16 %v235
    %v742 = vunpack.c.l.bf16 %v236
    %v743 = vunpack.c.h.bf16 %v236
    %v744 = vunpack.c.l.bf16 %v237
    %v745 = vunpack.c.h.bf16 %v237
    %v746 = vunpack.c.l.bf16 %v238
    %v747 = vunpack.c.h.bf16 %v238
    %v748 = vunpack.c.l.bf16 %v239
    %v749 = vunpack.c.h.bf16 %v239
    %v750 = vunpack.c.l.bf16 %v240
    %v751 = vunpack.c.h.bf16 %v240
    %v752 = vunpack.c.l.bf16 %v241
    %v753 = vunpack.c.h.bf16 %v241
    %v754 = vunpack.c.l.bf16 %v242
    %v755 = vunpack.c.h.bf16 %v242
    %v756 = vunpack.c.l.bf16 %v243
    %v757 = vunpack.c.h.bf16 %v243
    %v758 = vunpack.c.l.bf16 %v244
    %v759 = vunpack.c.h.bf16 %v244
    %v760 = vunpack.c.l.bf16 %v245
    %v761 = vunpack.c.h.bf16 %v245
    %v762 = vunpack.c.l.bf16 %v246
    %v763 = vunpack.c.h.bf16 %v246
    %v764 = vunpack.c.l.bf16 %v247
    %v765 = vunpack.c.h.bf16 %v247
    %v766 = vunpack.c.l.bf16 %v248
    %v767 = vunpack.c.h.bf16 %v248
    %v768 = vunpack.c.l.bf16 %v249
    %v769 = vunpack.c.h.bf16 %v249
    %v770 = vunpack.c.l.bf16 %v250
    %v771 = vunpack.c.h.bf16 %v250
    %v772 = vunpack.c.l.bf16 %v251
    %v773 = vunpack.c.h.bf16 %v251
    %v774 = vunpack.c.l.bf16 %v252
    %v775 = vunpack.c.h.bf16 %v252
    %v776 = vunpack.c.l.bf16 %v253
    %v777 = vunpack.c.h.bf16 %v253
    %v778 = vunpack.c.l.bf16 %v254
    %v779 = vunpack.c.h.bf16 %v254
    %v780 = vunpack.c.l.bf16 %v255
    %v781 = vunpack.c.h.bf16 %v255
    %v782 = vunpack.c.l.bf16 %v256
    %v783 = vunpack.c.h.bf16 %v256
    %v784 = vunpack.c.l.bf16 %v257
    %v785 = vunpack.c.h.bf16 %v257
    %v786 = vunpack.c.l.bf16 %v258
    %v787 = vunpack.c.h.bf16 %v258
    %v788 = vunpack.c.l.bf16 %v259
    %v789 = vunpack.c.h.bf16 %v259
    %v790 = vunpack.c.l.bf16 %v260
    %v791 = vunpack.c.h.bf16 %v260
    %v792 = vunpack.c.l.bf16 %v261
    %v793 = vunpack.c.h.bf16 %v261
    %v794 = vunpack.c.l.bf16 %v262
    %v795 = vunpack.c.h.bf16 %v262
    %v796 = vunpack.c.l.bf16 %v263
    %v797 = vunpack.c.h.bf16 %v263
    %v798 = vunpack.c.l.bf16 %v264
    %v799 = vunpack.c.h.bf16 %v264
    %v800 = vunpack.c.l.bf16 %v265
    %v801 = vunpack.c.h.bf16 %v265
    %v802 = vunpack.c.l.bf16 %v266
    %v803 = vunpack.c.h.bf16 %v266
    %v804 = vunpack.c.l.bf16 %v267
    %v805 = vunpack.c.h.bf16 %v267
    %v806 = vunpack.c.l.bf16 %v268
    %v807 = vunpack.c.h.bf16 %v268
    %v808 = vunpack.c.l.bf16 %v269
    %v809 = vunpack.c.h.bf16 %v269
    %v810 = vunpack.c.l.bf16 %v270
    %v811 = vunpack.c.h.bf16 %v270
    %v812 = vunpack.c.l.bf16 %v271
    %v813 = vunpack.c.h.bf16 %v271
    %v814 = vunpack.c.l.bf16 %v272
    %v815 = vunpack.c.h.bf16 %v272
    %v816 = vunpack.c.l.bf16 %v273
    %v817 = vunpack.c.h.bf16 %v273
    %v818 = vunpack.c.l.bf16 %v274
    %v819 = vunpack.c.h.bf16 %v274
    %v820 = vunpack.c.l.bf16 %v275
    %v821 = vunpack.c.h.bf16 %v275
    %v822 = vunpack.c.l.bf16 %v276
    %v823 = vunpack.c.h.bf16 %v276
    %v824 = vunpack.c.l.bf16 %v277
    %v825 = vunpack.c.h.bf16 %v277
    %v826 = vunpack.c.l.bf16 %v278
    %v827 = vunpack.c.h.bf16 %v278
    %v828 = vunpack.c.l.bf16 %v279
    %v829 = vunpack.c.h.bf16 %v279
    %v830 = vunpack.c.l.bf16 %v280
    %v831 = vunpack.c.h.bf16 %v280
    %v832 = vunpack.c.l.bf16 %v281
    %v833 = vunpack.c.h.bf16 %v281
    %v834 = vunpack.c.l.bf16 %v282
    %v835 = vunpack.c.h.bf16 %v282
    %v836 = vunpack.c.l.bf16 %v283
    %v837 = vunpack.c.h.bf16 %v283
    %v838 = vunpack.c.l.bf16 %v284
    %v839 = vunpack.c.h.bf16 %v284
    %v840 = vunpack.c.l.bf16 %v285
    %v841 = vunpack.c.h.bf16 %v285
    %v842 = vunpack.c.l.bf16 %v286
    %v843 = vunpack.c.h.bf16 %v286
    %v844 = vunpack.c.l.bf16 %v287
    %v845 = vunpack.c.h.bf16 %v287
    %v846 = vunpack.c.l.bf16 %v288
    %v847 = vunpack.c.h.bf16 %v288
    %v848 = vunpack.c.l.bf16 %v289
    %v849 = vunpack.c.h.bf16 %v289
    %v850 = vunpack.c.l.bf16 %v290
    %v851 = vunpack.c.h.bf16 %v290
    %v852 = vunpack.c.l.bf16 %v291
    %v853 = vunpack.c.h.bf16 %v291
    %v854 = vunpack.c.l.bf16 %v292
    %v855 = vunpack.c.h.bf16 %v292
    %v856 = vunpack.c.l.bf16 %v293
    %v857 = vunpack.c.h.bf16 %v293
    %v858 = vunpack.c.l.bf16 %v294
    %v859 = vunpack.c.h.bf16 %v294
    %v860 = vunpack.c.l.bf16 %v295
    %v861 = vunpack.c.h.bf16 %v295
    %v862 = vunpack.c.l.bf16 %v296
    %v863 = vunpack.c.h.bf16 %v296
    %v864 = vunpack.c.l.bf16 %v297
    %v865 = vunpack.c.h.bf16 %v297
    %v866 = vunpack.c.l.bf16 %v298
    %v867 = vunpack.c.h.bf16 %v298
    %v868 = vunpack.c.l.bf16 %v299
    %v869 = vunpack.c.h.bf16 %v299
    %v870 = vunpack.c.l.bf16 %v300
    %v871 = vunpack.c.h.bf16 %v300
    %v872 = vunpack.c.l.bf16 %v301
    %v873 = vunpack.c.h.bf16 %v301
    %v874 = vunpack.c.l.bf16 %v302
    %v875 = vunpack.c.h.bf16 %v302
    %v876 = vunpack.c.l.bf16 %v303
    %v877 = vunpack.c.h.bf16 %v303
    %v878 = vunpack.c.l.bf16 %v304
    %v879 = vunpack.c.h.bf16 %v304
    %v880 = vunpack.c.l.bf16 %v305
    %v881 = vunpack.c.h.bf16 %v305
    %v882 = vunpack.c.l.bf16 %v306
    %v883 = vunpack.c.h.bf16 %v306
    %v884 = vunpack.c.l.bf16 %v307
    %v885 = vunpack.c.h.bf16 %v307
    %v886 = vunpack.c.l.bf16 %v308
    %v887 = vunpack.c.h.bf16 %v308
    %v888 = vunpack.c.l.bf16 %v309
    %v889 = vunpack.c.h.bf16 %v309
    %v890 = vunpack.c.l.bf16 %v310
    %v891 = vunpack.c.h.bf16 %v310
    %v892 = vunpack.c.l.bf16 %v311
    %v893 = vunpack.c.h.bf16 %v311
    %v894 = vunpack.c.l.bf16 %v312
    %v895 = vunpack.c.h.bf16 %v312
    %v896 = vunpack.c.l.bf16 %v313
    %v897 = vunpack.c.h.bf16 %v313
    %v898 = vunpack.c.l.bf16 %v314
    %v899 = vunpack.c.h.bf16 %v314
    %v900 = vunpack.c.l.bf16 %v315
    %v901 = vunpack.c.h.bf16 %v315
    %v902 = vunpack.c.l.bf16 %v316
    %v903 = vunpack.c.h.bf16 %v316
    %v904 = vunpack.c.l.bf16 %v317
    %v905 = vunpack.c.h.bf16 %v317
    %v906 = vunpack.c.l.bf16 %v318
    %v907 = vunpack.c.h.bf16 %v318
    %v908 = vunpack.c.l.bf16 %v319
    %v909 = vunpack.c.h.bf16 %v319
    %v910 = vunpack.c.l.bf16 %v320
    %v911 = vunpack.c.h.bf16 %v320
    %v912 = vunpack.c.l.bf16 %v321
    %v913 = vunpack.c.h.bf16 %v321
    %v914 = vunpack.c.l.bf16 %v322
    %v915 = vunpack.c.h.bf16 %v322
    %v916 = vunpack.c.l.bf16 %v323
    %v917 = vunpack.c.h.bf16 %v323
    %v918 = vunpack.c.l.bf16 %v324
    %v919 = vunpack.c.h.bf16 %v324
    %v920 = vunpack.c.l.bf16 %v325
    %v921 = vunpack.c.h.bf16 %v325
    %v922 = vunpack.c.l.bf16 %v326
    %v923 = vunpack.c.h.bf16 %v326
    %v924 = vunpack.c.l.bf16 %v327
    %v925 = vunpack.c.h.bf16 %v327
    %v926 = vunpack.c.l.bf16 %v328
    %v927 = vunpack.c.h.bf16 %v328
    %v928 = vunpack.c.l.bf16 %v329
    %v929 = vunpack.c.h.bf16 %v329
    %v930 = vunpack.c.l.bf16 %v330
    %v931 = vunpack.c.h.bf16 %v330
    %v932 = vunpack.c.l.bf16 %v331
    %v933 = vunpack.c.h.bf16 %v331
    %v934 = vunpack.c.l.bf16 %v332
    %v935 = vunpack.c.h.bf16 %v332
    %v936 = vunpack.c.l.bf16 %v333
    %v937 = vunpack.c.h.bf16 %v333
    %v938 = vunpack.c.l.bf16 %v334
    %v939 = vunpack.c.h.bf16 %v334
    %v940 = vunpack.c.l.bf16 %v335
    %v941 = vunpack.c.h.bf16 %v335
    %v942 = vunpack.c.l.bf16 %v336
    %v943 = vunpack.c.h.bf16 %v336
    %v944 = vunpack.c.l.bf16 %v337
    %v945 = vunpack.c.h.bf16 %v337
    %v946 = vunpack.c.l.bf16 %v338
    %v947 = vunpack.c.h.bf16 %v338
    %v948 = vunpack.c.l.bf16 %v339
    %v949 = vunpack.c.h.bf16 %v339
    %v950 = vunpack.c.l.bf16 %v340
    %v951 = vunpack.c.h.bf16 %v340
    %v952 = vunpack.c.l.bf16 %v341
    %v953 = vunpack.c.h.bf16 %v341
    %v954 = vunpack.c.l.bf16 %v342
    %v955 = vunpack.c.h.bf16 %v342
    %v956 = vunpack.c.l.bf16 %v343
    %v957 = vunpack.c.h.bf16 %v343
    %v958 = vunpack.c.l.bf16 %v344
    %v959 = vunpack.c.h.bf16 %v344
    %v960 = vunpack.c.l.bf16 %v345
    %v961 = vunpack.c.h.bf16 %v345
    %v962 = vunpack.c.l.bf16 %v346
    %v963 = vunpack.c.h.bf16 %v346
    %v964 = vunpack.c.l.bf16 %v347
    %v965 = vunpack.c.h.bf16 %v347
    %v966 = vunpack.c.l.bf16 %v348
    %v967 = vunpack.c.h.bf16 %v348
    %v968 = vunpack.c.l.bf16 %v349
    %v969 = vunpack.c.h.bf16 %v349
    %v970 = vunpack.c.l.bf16 %v350
    %v971 = vunpack.c.h.bf16 %v350
    %v972 = vunpack.c.l.bf16 %v351
    %v973 = vunpack.c.h.bf16 %v351
    %v974 = vunpack.c.l.bf16 %v352
    %v975 = vunpack.c.h.bf16 %v352
    %v976 = vunpack.c.l.bf16 %v353
    %v977 = vunpack.c.h.bf16 %v353
    %v978 = vunpack.c.l.bf16 %v354
    %v979 = vunpack.c.h.bf16 %v354
    %v980 = vunpack.c.l.bf16 %v355
    %v981 = vunpack.c.h.bf16 %v355
    %v982 = vunpack.c.l.bf16 %v356
    %v983 = vunpack.c.h.bf16 %v356
    %v984 = vunpack.c.l.bf16 %v357
    %v985 = vunpack.c.h.bf16 %v357
    %v986 = vunpack.c.l.bf16 %v358
    %v987 = vunpack.c.h.bf16 %v358
    %v988 = vunpack.c.l.bf16 %v359
    %v989 = vunpack.c.h.bf16 %v359
    %v990 = vunpack.c.l.bf16 %v360
    %v991 = vunpack.c.h.bf16 %v360
    %v992 = vunpack.c.l.bf16 %v361
    %v993 = vunpack.c.h.bf16 %v361
    %v994 = vunpack.c.l.bf16 %v362
    %v995 = vunpack.c.h.bf16 %v362
    %v996 = vunpack.c.l.bf16 %v363
    %v997 = vunpack.c.h.bf16 %v363
    %v998 = vunpack.c.l.bf16 %v364
    %v999 = vunpack.c.h.bf16 %v364
    %v1000 = vunpack.c.l.bf16 %v365
    %v1001 = vunpack.c.h.bf16 %v365
    %v1002 = vunpack.c.l.bf16 %v366
    %v1003 = vunpack.c.h.bf16 %v366
    %v1004 = vunpack.c.l.bf16 %v367
    %v1005 = vunpack.c.h.bf16 %v367
    %v1006 = vunpack.c.l.bf16 %v368
    %v1007 = vunpack.c.h.bf16 %v368
    %v1008 = vunpack.c.l.bf16 %v369
    %v1009 = vunpack.c.h.bf16 %v369
    %v1010 = vunpack.c.l.bf16 %v370
    %v1011 = vunpack.c.h.bf16 %v370
    %v1012 = vunpack.c.l.bf16 %v371
    %v1013 = vunpack.c.h.bf16 %v371
    %v1014 = vunpack.c.l.bf16 %v372
    %v1015 = vunpack.c.h.bf16 %v372
    %v1016 = vunpack.c.l.bf16 %v373
    %v1017 = vunpack.c.h.bf16 %v373
    %v1018 = vunpack.c.l.bf16 %v374
    %v1019 = vunpack.c.h.bf16 %v374
    %v1020 = vunpack.c.l.bf16 %v375
    %v1021 = vunpack.c.h.bf16 %v375
    %v1022 = vunpack.c.l.bf16 %v376
    %v1023 = vunpack.c.h.bf16 %v376
    %v1024 = vunpack.c.l.bf16 %v377
    %v1025 = vunpack.c.h.bf16 %v377
    %v1026 = vunpack.c.l.bf16 %v378
    %v1027 = vunpack.c.h.bf16 %v378
    %v1028 = vunpack.c.l.bf16 %v379
    %v1029 = vunpack.c.h.bf16 %v379
    %v1030 = vunpack.c.l.bf16 %v380
    %v1031 = vunpack.c.h.bf16 %v380
    %v1032 = vunpack.c.l.bf16 %v381
    %v1033 = vunpack.c.h.bf16 %v381
    %v1034 = vunpack.c.l.bf16 %v382
    %v1035 = vunpack.c.h.bf16 %v382
    %v1036 = vunpack.c.l.bf16 %v383
    %v1037 = vunpack.c.h.bf16 %v383
    %v1038 = vunpack.c.l.bf16 %v384
    %v1039 = vunpack.c.h.bf16 %v384
    %v1040 = vunpack.c.l.bf16 %v385
    %v1041 = vunpack.c.h.bf16 %v385
    %v1042 = vunpack.c.l.bf16 %v386
    %v1043 = vunpack.c.h.bf16 %v386
    %v1044 = vunpack.c.l.bf16 %v387
    %v1045 = vunpack.c.h.bf16 %v387
    %v1046 = vunpack.c.l.bf16 %v388
    %v1047 = vunpack.c.h.bf16 %v388
    %v1048 = vunpack.c.l.bf16 %v389
    %v1049 = vunpack.c.h.bf16 %v389
    %v1050 = vunpack.c.l.bf16 %v390
    %v1051 = vunpack.c.h.bf16 %v390
    %v1052 = vunpack.c.l.bf16 %v391
    %v1053 = vunpack.c.h.bf16 %v391
    %v1054 = vunpack.c.l.bf16 %v392
    %v1055 = vunpack.c.h.bf16 %v392
    %v1056 = vunpack.c.l.bf16 %v393
    %v1057 = vunpack.c.h.bf16 %v393
    %v1058 = vunpack.c.l.bf16 %v394
    %v1059 = vunpack.c.h.bf16 %v394
    %v1060 = vunpack.c.l.bf16 %v395
    %v1061 = vunpack.c.h.bf16 %v395
    %v1062 = vunpack.c.l.bf16 %v396
    %v1063 = vunpack.c.h.bf16 %v396
    %v1064 = vunpack.c.l.bf16 %v397
    %v1065 = vunpack.c.h.bf16 %v397
    %v1066 = vunpack.c.l.bf16 %v398
    %v1067 = vunpack.c.h.bf16 %v398
    %v1068 = vunpack.c.l.bf16 %v399
    %v1069 = vunpack.c.h.bf16 %v399
    %v1070 = vunpack.c.l.bf16 %v400
    %v1071 = vunpack.c.h.bf16 %v400
    %v1072 = vunpack.c.l.bf16 %v401
    %v1073 = vunpack.c.h.bf16 %v401
    %v1074 = vunpack.c.l.bf16 %v402
    %v1075 = vunpack.c.h.bf16 %v402
    %v1076 = vunpack.c.l.bf16 %v403
    %v1077 = vunpack.c.h.bf16 %v403
    %v1078 = vunpack.c.l.bf16 %v404
    %v1079 = vunpack.c.h.bf16 %v404
    %v1080 = vunpack.c.l.bf16 %v405
    %v1081 = vunpack.c.h.bf16 %v405
    %v1082 = vunpack.c.l.bf16 %v406
    %v1083 = vunpack.c.h.bf16 %v406
    %v1084 = vunpack.c.l.bf16 %v407
    %v1085 = vunpack.c.h.bf16 %v407
    %v1086 = vunpack.c.l.bf16 %v408
    %v1087 = vunpack.c.h.bf16 %v408
    %v1088 = vunpack.c.l.bf16 %v409
    %v1089 = vunpack.c.h.bf16 %v409
    %v1090 = vunpack.c.l.bf16 %v410
    %v1091 = vunpack.c.h.bf16 %v410
    %v1092 = vunpack.c.l.bf16 %v411
    %v1093 = vunpack.c.h.bf16 %v411
    %v1094 = vunpack.c.l.bf16 %v412
    %v1095 = vunpack.c.h.bf16 %v412
    %v1096 = vunpack.c.l.bf16 %v413
    %v1097 = vunpack.c.h.bf16 %v413
    %v1098 = vunpack.c.l.bf16 %v414
    %v1099 = vunpack.c.h.bf16 %v414
    %v1100 = vunpack.c.l.bf16 %v415
    %v1101 = vunpack.c.h.bf16 %v415
    %v1102 = vunpack.c.l.bf16 %v416
    %v1103 = vunpack.c.h.bf16 %v416
    %v1104 = vunpack.c.l.bf16 %v417
    %v1105 = vunpack.c.h.bf16 %v417
    %v1106 = vunpack.c.l.bf16 %v418
    %v1107 = vunpack.c.h.bf16 %v418
    %v1108 = vunpack.c.l.bf16 %v419
    %v1109 = vunpack.c.h.bf16 %v419
    %v1110 = vunpack.c.l.bf16 %v420
    %v1111 = vunpack.c.h.bf16 %v420
    %v1112 = vunpack.c.l.bf16 %v421
    %v1113 = vunpack.c.h.bf16 %v421
    %v1114 = vunpack.c.l.bf16 %v422
    %v1115 = vunpack.c.h.bf16 %v422
    %v1116 = vunpack.c.l.bf16 %v423
    %v1117 = vunpack.c.h.bf16 %v423
    %v1118 = vunpack.c.l.bf16 %v424
    %v1119 = vunpack.c.h.bf16 %v424
    %v1120 = vunpack.c.l.bf16 %v425
    %v1121 = vunpack.c.h.bf16 %v425
    %v1122 = vunpack.c.l.bf16 %v426
    %v1123 = vunpack.c.h.bf16 %v426
    %v1124 = vunpack.c.l.bf16 %v427
    %v1125 = vunpack.c.h.bf16 %v427
    %v1126 = vunpack.c.l.bf16 %v428
    %v1127 = vunpack.c.h.bf16 %v428
    %v1128 = vunpack.c.l.bf16 %v429
    %v1129 = vunpack.c.h.bf16 %v429
    %v1130 = vunpack.c.l.bf16 %v430
    %v1131 = vunpack.c.h.bf16 %v430
    %v1132 = vunpack.c.l.bf16 %v431
    %v1133 = vunpack.c.h.bf16 %v431
    %v1134 = vunpack.c.l.bf16 %v432
    %v1135 = vunpack.c.h.bf16 %v432
    %v1136 = vunpack.c.l.bf16 %v433
    %v1137 = vunpack.c.h.bf16 %v433
    %v1138 = vunpack.c.l.bf16 %v434
    %v1139 = vunpack.c.h.bf16 %v434
    %v1140 = vunpack.c.l.bf16 %v435
    %v1141 = vunpack.c.h.bf16 %v435
    %v1142 = vunpack.c.l.bf16 %v436
    %v1143 = vunpack.c.h.bf16 %v436
    %v1144 = vunpack.c.l.bf16 %v437
    %v1145 = vunpack.c.h.bf16 %v437
    %v1146 = vunpack.c.l.bf16 %v438
    %v1147 = vunpack.c.h.bf16 %v438
    %v1148 = vunpack.c.l.bf16 %v439
    %v1149 = vunpack.c.h.bf16 %v439
    %v1150 = vunpack.c.l.bf16 %v440
    %v1151 = vunpack.c.h.bf16 %v440
    %v1152 = vunpack.c.l.bf16 %v441
    %v1153 = vunpack.c.h.bf16 %v441
    %v1154 = vunpack.c.l.bf16 %v442
    %v1155 = vunpack.c.h.bf16 %v442
    %v1156 = vunpack.c.l.bf16 %v443
    %v1157 = vunpack.c.h.bf16 %v443
    %v1158 = vunpack.c.l.bf16 %v444
    %v1159 = vunpack.c.h.bf16 %v444
    %v1160 = vunpack.c.l.bf16 %v445
    %v1161 = vunpack.c.h.bf16 %v445
    %v1162 = vunpack.c.l.bf16 %v446
    %v1163 = vunpack.c.h.bf16 %v446
    %v1164 = vunpack.c.l.bf16 %v447
    %v1165 = vunpack.c.h.bf16 %v447
    %v1166 = vunpack.c.l.bf16 %v448
    %v1167 = vunpack.c.h.bf16 %v448
    %v1168 = vunpack.c.l.bf16 %v449
    %v1169 = vunpack.c.h.bf16 %v449
    %v1170 = vunpack.c.l.bf16 %v450
    %v1171 = vunpack.c.h.bf16 %v450
    %v1172 = vunpack.c.l.bf16 %v451
    %v1173 = vunpack.c.h.bf16 %v451
    %v1174 = vunpack.c.l.bf16 %v452
    %v1175 = vunpack.c.h.bf16 %v452
    %v1176 = vunpack.c.l.bf16 %v453
    %v1177 = vunpack.c.h.bf16 %v453
    %v1178 = vunpack.c.l.bf16 %v454
    %v1179 = vunpack.c.h.bf16 %v454
    %v1180 = vunpack.c.l.bf16 %v455
    %v1181 = vunpack.c.h.bf16 %v455
    %v1182 = vunpack.c.l.bf16 %v456
    %v1183 = vunpack.c.h.bf16 %v456
    %v1184 = vunpack.c.l.bf16 %v457
    %v1185 = vunpack.c.h.bf16 %v457
    %v1186 = vunpack.c.l.bf16 %v458
    %v1187 = vunpack.c.h.bf16 %v458
    %v1188 = vunpack.c.l.bf16 %v459
    %v1189 = vunpack.c.h.bf16 %v459
    %v1190 = vunpack.c.l.bf16 %v460
    %v1191 = vunpack.c.h.bf16 %v460
    %v1192 = vunpack.c.l.bf16 %v461
    %v1193 = vunpack.c.h.bf16 %v461
    %v1194 = vunpack.c.l.bf16 %v462
    %v1195 = vunpack.c.h.bf16 %v462
    %v1196 = vunpack.c.l.bf16 %v463
    %v1197 = vunpack.c.h.bf16 %v463
    %v1198 = vunpack.c.l.bf16 %v464
    %v1199 = vunpack.c.h.bf16 %v464
    %v1200 = vunpack.c.l.bf16 %v465
    %v1201 = vunpack.c.h.bf16 %v465
    %v1202 = vunpack.c.l.bf16 %v466
    %v1203 = vunpack.c.h.bf16 %v466
    %v1204 = vunpack.c.l.bf16 %v467
    %v1205 = vunpack.c.h.bf16 %v467
    %v1206 = vunpack.c.l.bf16 %v468
    %v1207 = vunpack.c.h.bf16 %v468
    %v1208 = vunpack.c.l.bf16 %v469
    %v1209 = vunpack.c.h.bf16 %v469
    %v1210 = vunpack.c.l.bf16 %v470
    %v1211 = vunpack.c.h.bf16 %v470
    %v1212 = vunpack.c.l.bf16 %v471
    %v1213 = vunpack.c.h.bf16 %v471
    %v1214 = vunpack.c.l.bf16 %v472
    %v1215 = vunpack.c.h.bf16 %v472
    %v1216 = vunpack.c.l.bf16 %v473
    %v1217 = vunpack.c.h.bf16 %v473
    %v1218 = vunpack.c.l.bf16 %v474
    %v1219 = vunpack.c.h.bf16 %v474
    %v1220 = vunpack.c.l.bf16 %v475
    %v1221 = vunpack.c.h.bf16 %v475
    %v1222 = vunpack.c.l.bf16 %v476
    %v1223 = vunpack.c.h.bf16 %v476
    %v1224 = vunpack.c.l.bf16 %v477
    %v1225 = vunpack.c.h.bf16 %v477
    %v1226 = vunpack.c.l.bf16 %v478
    %v1227 = vunpack.c.h.bf16 %v478
    %v1228 = vunpack.c.l.bf16 %v479
    %v1229 = vunpack.c.h.bf16 %v479
    %v1230 = vunpack.c.l.bf16 %v480
    %v1231 = vunpack.c.h.bf16 %v480
    %v1232 = vunpack.c.l.bf16 %v481
    %v1233 = vunpack.c.h.bf16 %v481
    %v1234 = vunpack.c.l.bf16 %v482
    %v1235 = vunpack.c.h.bf16 %v482
    %v1236 = vunpack.c.l.bf16 %v483
    %v1237 = vunpack.c.h.bf16 %v483
    %v1238 = vunpack.c.l.bf16 %v484
    %v1239 = vunpack.c.h.bf16 %v484
    %v1240 = vunpack.c.l.bf16 %v485
    %v1241 = vunpack.c.h.bf16 %v485
    %v1242 = vunpack.c.l.bf16 %v486
    %v1243 = vunpack.c.h.bf16 %v486
    %v1244 = vunpack.c.l.bf16 %v487
    %v1245 = vunpack.c.h.bf16 %v487
    %v1246 = vunpack.c.l.bf16 %v488
    %v1247 = vunpack.c.h.bf16 %v488
    %v1248 = vunpack.c.l.bf16 %v489
    %v1249 = vunpack.c.h.bf16 %v489
    %v1250 = vunpack.c.l.bf16 %v490
    %v1251 = vunpack.c.h.bf16 %v490
    %v1252 = vunpack.c.l.bf16 %v491
    %v1253 = vunpack.c.h.bf16 %v491
    %v1254 = vunpack.c.l.bf16 %v492
    %v1255 = vunpack.c.h.bf16 %v492
    %v1256 = vunpack.c.l.bf16 %v493
    %v1257 = vunpack.c.h.bf16 %v493
    %v1258 = vunpack.c.l.bf16 %v494
    %v1259 = vunpack.c.h.bf16 %v494
    %v1260 = vunpack.c.l.bf16 %v495
    %v1261 = vunpack.c.h.bf16 %v495
    %v1262 = vunpack.c.l.bf16 %v496
    %v1263 = vunpack.c.h.bf16 %v496
    %v1264 = vunpack.c.l.bf16 %v497
    %v1265 = vunpack.c.h.bf16 %v497
    %v1266 = vld [vmem:[#allocation7] sm:$0xff]
    %v1268 = vlaneseq
    %v1269 = vshrl.u32 %v1268, 7
    %v1270 = vsub.s32 0, %v1269
    %v1271 = vrot.slane %v1266, %v1270
    %v1272 = vlaneseq
    %v1273 = vshrl.u32 %v1272, 7
    %v1274 = vsub.s32 1, %v1273
    %v1275 = vrot.slane %v1266, %v1274
    %v1276 = vlaneseq
    %v1277 = vshrl.u32 %v1276, 7
    %v1278 = vsub.s32 2, %v1277
    %v1279 = vrot.slane %v1266, %v1278
    %v1280 = vlaneseq
    %v1281 = vshrl.u32 %v1280, 7
    %v1282 = vsub.s32 3, %v1281
    %v1283 = vrot.slane %v1266, %v1282
    %v1284 = vlaneseq
    %v1285 = vshrl.u32 %v1284, 7
    %v1286 = vsub.s32 4, %v1285
    %v1287 = vrot.slane %v1266, %v1286
    %v1288 = vlaneseq
    %v1289 = vshrl.u32 %v1288, 7
    %v1290 = vsub.s32 5, %v1289
    %v1291 = vrot.slane %v1266, %v1290
    %v1292 = vlaneseq
    %v1293 = vshrl.u32 %v1292, 7
    %v1294 = vsub.s32 6, %v1293
    %v1295 = vrot.slane %v1266, %v1294
    %v1296 = vlaneseq
    %v1297 = vshrl.u32 %v1296, 7
    %v1298 = vsub.s32 7, %v1297
    %v1299 = vrot.slane %v1266, %v1298
    %1308 = vmatprep.subr.mxu0 %v619
    %1309 = vmatpush1.msra.mxu0 %v618
    %1310 = vmatprep.subr.mxu0 %v611
    %1311 = vmatpush1.msra.mxu0 %v610
    %1312 = vmatprep.subr.mxu0 %v603
    %1313 = vmatpush1.msra.mxu0 %v602
    %1314 = vmatprep.subr.mxu0 %v595
    %1315 = vmatpush1.msra.mxu0 %v594
    %1316 = vmatprep.subr.mxu0 %v587
    %1317 = vmatpush1.msra.mxu0 %v586
    %1318 = vmatprep.subr.mxu0 %v579
    %1319 = vmatpush1.msra.mxu0 %v578
    %1320 = vmatprep.subr.mxu0 %v571
    %1321 = vmatpush1.msra.mxu0 %v570
    %1322 = vmatprep.subr.mxu0 %v563
    %1323 = vmatpush1.msra.mxu0 %v562
    %1324 = vmatprep.subr.mxu0 %v555
    %1325 = vmatpush1.msra.mxu0 %v554
    %1326 = vmatprep.subr.mxu0 %v547
    %1327 = vmatpush1.msra.mxu0 %v546
    %1328 = vmatprep.subr.mxu0 %v539
    %1329 = vmatpush1.msra.mxu0 %v538
    %1330 = vmatprep.subr.mxu0 %v531
    %1331 = vmatpush1.msra.mxu0 %v530
    %1332 = vmatprep.subr.mxu0 %v523
    %1333 = vmatpush1.msra.mxu0 %v522
    %1334 = vmatprep.subr.mxu0 %v515
    %1335 = vmatpush1.msra.mxu0 %v514
    %1336 = vmatprep.subr.mxu0 %v507
    %1337 = vmatpush1.msra.mxu0 %v506
    %1338 = vmatprep.subr.mxu0 %v499
    %1339 = vmatpush1.msra.mxu0 %v498
    %1340 = vmatprep.subr.mxu0 %v747
    %1341 = vmatpush2.msra.mxu0 %v746
    %1342 = vmatprep.subr.mxu0 %v739
    %1343 = vmatpush2.msra.mxu0 %v738
    %1344 = vmatprep.subr.mxu0 %v731
    %1345 = vmatpush2.msra.mxu0 %v730
    %1346 = vmatprep.subr.mxu0 %v723
    %1347 = vmatpush2.msra.mxu0 %v722
    %1348 = vmatprep.subr.mxu0 %v715
    %1349 = vmatpush2.msra.mxu0 %v714
    %1350 = vmatprep.subr.mxu0 %v707
    %1351 = vmatpush2.msra.mxu0 %v706
    %1352 = vmatprep.subr.mxu0 %v699
    %1353 = vmatpush2.msra.mxu0 %v698
    %1354 = vmatprep.subr.mxu0 %v691
    %1355 = vmatpush2.msra.mxu0 %v690
    %1356 = vmatprep.subr.mxu0 %v683
    %1357 = vmatpush2.msra.mxu0 %v682
    %1358 = vmatprep.subr.mxu0 %v675
    %1359 = vmatpush2.msra.mxu0 %v674
    %1360 = vmatprep.subr.mxu0 %v667
    %1361 = vmatpush2.msra.mxu0 %v666
    %1362 = vmatprep.subr.mxu0 %v659
    %1363 = vmatpush2.msra.mxu0 %v658
    %1364 = vmatprep.subr.mxu0 %v651
    %1365 = vmatpush2.msra.mxu0 %v650
    %1366 = vmatprep.subr.mxu0 %v643
    %1367 = vmatpush2.msra.mxu0 %v642
    %1368 = vmatprep.subr.mxu0 %v635
    %1369 = vmatpush2.msra.mxu0 %v634
    %1370 = vmatprep.subr.mxu0 %v627
    %1371 = vmatpush2.msra.mxu0 %v626
    %1372 = vmatprep.mubr.f32.mxu0 %v109
    %1373 = vmatmul.mubr.f32.gmra.mxu0 %v108
    %v1374 = vpop.f32.mrf.mxu0
    %v1375 = vadd.f32 %v1271, %v1374
    %v1376 = vpop.f32.mrf.mxu0
    %v1377 = vadd.f32 %v1275, %v1376
    %1378 = vdwg.mxu0
    %1379 = vmatprep.subr.mxu0 %v875
    %1380 = vmatpush1.msra.mxu0 %v874
    %1381 = vmatprep.subr.mxu0 %v867
    %1382 = vmatpush1.msra.mxu0 %v866
    %1383 = vmatprep.subr.mxu0 %v859
    %1384 = vmatpush1.msra.mxu0 %v858
    %1385 = vmatprep.subr.mxu0 %v851
    %1386 = vmatpush1.msra.mxu0 %v850
    %1387 = vmatprep.subr.mxu0 %v843
    %1388 = vmatpush1.msra.mxu0 %v842
    %1389 = vmatprep.subr.mxu0 %v835
    %1390 = vmatpush1.msra.mxu0 %v834
    %1391 = vmatprep.subr.mxu0 %v827
    %1392 = vmatpush1.msra.mxu0 %v826
    %1393 = vmatprep.subr.mxu0 %v819
    %1394 = vmatpush1.msra.mxu0 %v818
    %1395 = vmatprep.subr.mxu0 %v811
    %1396 = vmatpush1.msra.mxu0 %v810
    %1397 = vmatprep.subr.mxu0 %v803
    %1398 = vmatpush1.msra.mxu0 %v802
    %1399 = vmatprep.subr.mxu0 %v795
    %1400 = vmatpush1.msra.mxu0 %v794
    %1401 = vmatprep.subr.mxu0 %v787
    %1402 = vmatpush1.msra.mxu0 %v786
    %1403 = vmatprep.subr.mxu0 %v779
    %1404 = vmatpush1.msra.mxu0 %v778
    %1405 = vmatprep.subr.mxu0 %v771
    %1406 = vmatpush1.msra.mxu0 %v770
    %1407 = vmatprep.subr.mxu0 %v763
    %1408 = vmatpush1.msra.mxu0 %v762
    %1409 = vmatprep.subr.mxu0 %v755
    %1410 = vmatpush1.msra.mxu0 %v754
    %1411 = vmatprep.subr.mxu0 %v1003
    %1412 = vmatpush2.msra.mxu0 %v1002
    %1413 = vmatprep.subr.mxu0 %v995
    %1414 = vmatpush2.msra.mxu0 %v994
    %1415 = vmatprep.subr.mxu0 %v987
    %1416 = vmatpush2.msra.mxu0 %v986
    %1417 = vmatprep.subr.mxu0 %v979
    %1418 = vmatpush2.msra.mxu0 %v978
    %1419 = vmatprep.subr.mxu0 %v971
    %1420 = vmatpush2.msra.mxu0 %v970
    %1421 = vmatprep.subr.mxu0 %v963
    %1422 = vmatpush2.msra.mxu0 %v962
    %1423 = vmatprep.subr.mxu0 %v955
    %1424 = vmatpush2.msra.mxu0 %v954
    %1425 = vmatprep.subr.mxu0 %v947
    %1426 = vmatpush2.msra.mxu0 %v946
    %1427 = vmatprep.subr.mxu0 %v939
    %1428 = vmatpush2.msra.mxu0 %v938
    %1429 = vmatprep.subr.mxu0 %v931
    %1430 = vmatpush2.msra.mxu0 %v930
    %1431 = vmatprep.subr.mxu0 %v923
    %1432 = vmatpush2.msra.mxu0 %v922
    %1433 = vmatprep.subr.mxu0 %v915
    %1434 = vmatpush2.msra.mxu0 %v914
    %1435 = vmatprep.subr.mxu0 %v907
    %1436 = vmatpush2.msra.mxu0 %v906
    %1437 = vmatprep.subr.mxu0 %v899
    %1438 = vmatpush2.msra.mxu0 %v898
    %1439 = vmatprep.subr.mxu0 %v891
    %1440 = vmatpush2.msra.mxu0 %v890
    %1441 = vmatprep.subr.mxu0 %v883
    %1442 = vmatpush2.msra.mxu0 %v882
    %1443 = vmatprep.mubr.f32.mxu0 %v111
    %1444 = vmatmul.mubr.f32.gmra.mxu0 %v110
    %v1445 = vpop.f32.mrf.mxu0
    %v1446 = vadd.f32 %v1375, %v1445
    %v1447 = vpop.f32.mrf.mxu0
    %v1448 = vadd.f32 %v1377, %v1447
    %1449 = vdwg.mxu0
    %1450 = vmatprep.subr.mxu0 %v1131
    %1451 = vmatpush1.msra.mxu0 %v1130
    %1452 = vmatprep.subr.mxu0 %v1123
    %1453 = vmatpush1.msra.mxu0 %v1122
    %1454 = vmatprep.subr.mxu0 %v1115
    %1455 = vmatpush1.msra.mxu0 %v1114
    %1456 = vmatprep.subr.mxu0 %v1107
    %1457 = vmatpush1.msra.mxu0 %v1106
    %1458 = vmatprep.subr.mxu0 %v1099
    %1459 = vmatpush1.msra.mxu0 %v1098
    %1460 = vmatprep.subr.mxu0 %v1091
    %1461 = vmatpush1.msra.mxu0 %v1090
    %1462 = vmatprep.subr.mxu0 %v1083
    %1463 = vmatpush1.msra.mxu0 %v1082
    %1464 = vmatprep.subr.mxu0 %v1075
    %1465 = vmatpush1.msra.mxu0 %v1074
    %1466 = vmatprep.subr.mxu0 %v1067
    %1467 = vmatpush1.msra.mxu0 %v1066
    %1468 = vmatprep.subr.mxu0 %v1059
    %1469 = vmatpush1.msra.mxu0 %v1058
    %1470 = vmatprep.subr.mxu0 %v1051
    %1471 = vmatpush1.msra.mxu0 %v1050
    %1472 = vmatprep.subr.mxu0 %v1043
    %1473 = vmatpush1.msra.mxu0 %v1042
    %1474 = vmatprep.subr.mxu0 %v1035
    %1475 = vmatpush1.msra.mxu0 %v1034
    %1476 = vmatprep.subr.mxu0 %v1027
    %1477 = vmatpush1.msra.mxu0 %v1026
    %1478 = vmatprep.subr.mxu0 %v1019
    %1479 = vmatpush1.msra.mxu0 %v1018
    %1480 = vmatprep.subr.mxu0 %v1011
    %1481 = vmatpush1.msra.mxu0 %v1010
    %1482 = vmatprep.subr.mxu0 %v1259
    %1483 = vmatpush2.msra.mxu0 %v1258
    %1484 = vmatprep.subr.mxu0 %v1251
    %1485 = vmatpush2.msra.mxu0 %v1250
    %1486 = vmatprep.subr.mxu0 %v1243
    %1487 = vmatpush2.msra.mxu0 %v1242
    %1488 = vmatprep.subr.mxu0 %v1235
    %1489 = vmatpush2.msra.mxu0 %v1234
    %1490 = vmatprep.subr.mxu0 %v1227
    %1491 = vmatpush2.msra.mxu0 %v1226
    %1492 = vmatprep.subr.mxu0 %v1219
    %1493 = vmatpush2.msra.mxu0 %v1218
    %1494 = vmatprep.subr.mxu0 %v1211
    %1495 = vmatpush2.msra.mxu0 %v1210
    %1496 = vmatprep.subr.mxu0 %v1203
    %1497 = vmatpush2.msra.mxu0 %v1202
    %1498 = vmatprep.subr.mxu0 %v1195
    %1499 = vmatpush2.msra.mxu0 %v1194
    %1500 = vmatprep.subr.mxu0 %v1187
    %1501 = vmatpush2.msra.mxu0 %v1186
    %1502 = vmatprep.subr.mxu0 %v1179
    %1503 = vmatpush2.msra.mxu0 %v1178
    %1504 = vmatprep.subr.mxu0 %v1171
    %1505 = vmatpush2.msra.mxu0 %v1170
    %1506 = vmatprep.subr.mxu0 %v1163
    %1507 = vmatpush2.msra.mxu0 %v1162
    %1508 = vmatprep.subr.mxu0 %v1155
    %1509 = vmatpush2.msra.mxu0 %v1154
    %1510 = vmatprep.subr.mxu0 %v1147
    %1511 = vmatpush2.msra.mxu0 %v1146
    %1512 = vmatprep.subr.mxu0 %v1139
    %1513 = vmatpush2.msra.mxu0 %v1138
    %1514 = vmatprep.mubr.f32.mxu0 %v113
    %1515 = vmatmul.mubr.f32.gmra.mxu0 %v112
    %v1516 = vpop.f32.mrf.mxu0
    %v1517 = vadd.f32 %v1446, %v1516
    %v1518 = vpop.f32.mrf.mxu0
    %v1519 = vadd.f32 %v1448, %v1518
    %1520 = vdwg.mxu0
    %1521 = vmatprep.subr.mxu0 %v621
    %1522 = vmatpush1.msra.mxu0 %v620
    %1523 = vmatprep.subr.mxu0 %v613
    %1524 = vmatpush1.msra.mxu0 %v612
    %1525 = vmatprep.subr.mxu0 %v605
    %1526 = vmatpush1.msra.mxu0 %v604
    %1527 = vmatprep.subr.mxu0 %v597
    %1528 = vmatpush1.msra.mxu0 %v596
    %1529 = vmatprep.subr.mxu0 %v589
    %1530 = vmatpush1.msra.mxu0 %v588
    %1531 = vmatprep.subr.mxu0 %v581
    %1532 = vmatpush1.msra.mxu0 %v580
    %1533 = vmatprep.subr.mxu0 %v573
    %1534 = vmatpush1.msra.mxu0 %v572
    %1535 = vmatprep.subr.mxu0 %v565
    %1536 = vmatpush1.msra.mxu0 %v564
    %1537 = vmatprep.subr.mxu0 %v557
    %1538 = vmatpush1.msra.mxu0 %v556
    %1539 = vmatprep.subr.mxu0 %v549
    %1540 = vmatpush1.msra.mxu0 %v548
    %1541 = vmatprep.subr.mxu0 %v541
    %1542 = vmatpush1.msra.mxu0 %v540
    %1543 = vmatprep.subr.mxu0 %v533
    %1544 = vmatpush1.msra.mxu0 %v532
    %1545 = vmatprep.subr.mxu0 %v525
    %1546 = vmatpush1.msra.mxu0 %v524
    %1547 = vmatprep.subr.mxu0 %v517
    %1548 = vmatpush1.msra.mxu0 %v516
    %1549 = vmatprep.subr.mxu0 %v509
    %1550 = vmatpush1.msra.mxu0 %v508
    %1551 = vmatprep.subr.mxu0 %v501
    %1552 = vmatpush1.msra.mxu0 %v500
    %1553 = vmatprep.subr.mxu0 %v749
    %1554 = vmatpush2.msra.mxu0 %v748
    %1555 = vmatprep.subr.mxu0 %v741
    %1556 = vmatpush2.msra.mxu0 %v740
    %1557 = vmatprep.subr.mxu0 %v733
    %1558 = vmatpush2.msra.mxu0 %v732
    %1559 = vmatprep.subr.mxu0 %v725
    %1560 = vmatpush2.msra.mxu0 %v724
    %1561 = vmatprep.subr.mxu0 %v717
    %1562 = vmatpush2.msra.mxu0 %v716
    %1563 = vmatprep.subr.mxu0 %v709
    %1564 = vmatpush2.msra.mxu0 %v708
    %1565 = vmatprep.subr.mxu0 %v701
    %1566 = vmatpush2.msra.mxu0 %v700
    %1567 = vmatprep.subr.mxu0 %v693
    %1568 = vmatpush2.msra.mxu0 %v692
    %1569 = vmatprep.subr.mxu0 %v685
    %1570 = vmatpush2.msra.mxu0 %v684
    %1571 = vmatprep.subr.mxu0 %v677
    %1572 = vmatpush2.msra.mxu0 %v676
    %1573 = vmatprep.subr.mxu0 %v669
    %1574 = vmatpush2.msra.mxu0 %v668
    %1575 = vmatprep.subr.mxu0 %v661
    %1576 = vmatpush2.msra.mxu0 %v660
    %1577 = vmatprep.subr.mxu0 %v653
    %1578 = vmatpush2.msra.mxu0 %v652
    %1579 = vmatprep.subr.mxu0 %v645
    %1580 = vmatpush2.msra.mxu0 %v644
    %1581 = vmatprep.subr.mxu0 %v637
    %1582 = vmatpush2.msra.mxu0 %v636
    %1583 = vmatprep.subr.mxu0 %v629
    %1584 = vmatpush2.msra.mxu0 %v628
    %1585 = vmatprep.mubr.f32.mxu0 %v109
    %1586 = vmatmul.mubr.f32.gmra.mxu0 %v108
    %v1587 = vpop.f32.mrf.mxu0
    %v1588 = vadd.f32 %v1279, %v1587
    %v1589 = vpop.f32.mrf.mxu0
    %v1590 = vadd.f32 %v1283, %v1589
    %1591 = vdwg.mxu0
    %1592 = vmatprep.subr.mxu0 %v877
    %1593 = vmatpush1.msra.mxu0 %v876
    %1594 = vmatprep.subr.mxu0 %v869
    %1595 = vmatpush1.msra.mxu0 %v868
    %1596 = vmatprep.subr.mxu0 %v861
    %1597 = vmatpush1.msra.mxu0 %v860
    %1598 = vmatprep.subr.mxu0 %v853
    %1599 = vmatpush1.msra.mxu0 %v852
    %1600 = vmatprep.subr.mxu0 %v845
    %1601 = vmatpush1.msra.mxu0 %v844
    %1602 = vmatprep.subr.mxu0 %v837
    %1603 = vmatpush1.msra.mxu0 %v836
    %1604 = vmatprep.subr.mxu0 %v829
    %1605 = vmatpush1.msra.mxu0 %v828
    %1606 = vmatprep.subr.mxu0 %v821
    %1607 = vmatpush1.msra.mxu0 %v820
    %1608 = vmatprep.subr.mxu0 %v813
    %1609 = vmatpush1.msra.mxu0 %v812
    %1610 = vmatprep.subr.mxu0 %v805
    %1611 = vmatpush1.msra.mxu0 %v804
    %1612 = vmatprep.subr.mxu0 %v797
    %1613 = vmatpush1.msra.mxu0 %v796
    %1614 = vmatprep.subr.mxu0 %v789
    %1615 = vmatpush1.msra.mxu0 %v788
    %1616 = vmatprep.subr.mxu0 %v781
    %1617 = vmatpush1.msra.mxu0 %v780
    %1618 = vmatprep.subr.mxu0 %v773
    %1619 = vmatpush1.msra.mxu0 %v772
    %1620 = vmatprep.subr.mxu0 %v765
    %1621 = vmatpush1.msra.mxu0 %v764
    %1622 = vmatprep.subr.mxu0 %v757
    %1623 = vmatpush1.msra.mxu0 %v756
    %1624 = vmatprep.subr.mxu0 %v1005
    %1625 = vmatpush2.msra.mxu0 %v1004
    %1626 = vmatprep.subr.mxu0 %v997
    %1627 = vmatpush2.msra.mxu0 %v996
    %1628 = vmatprep.subr.mxu0 %v989
    %1629 = vmatpush2.msra.mxu0 %v988
    %1630 = vmatprep.subr.mxu0 %v981
    %1631 = vmatpush2.msra.mxu0 %v980
    %1632 = vmatprep.subr.mxu0 %v973
    %1633 = vmatpush2.msra.mxu0 %v972
    %1634 = vmatprep.subr.mxu0 %v965
    %1635 = vmatpush2.msra.mxu0 %v964
    %1636 = vmatprep.subr.mxu0 %v957
    %1637 = vmatpush2.msra.mxu0 %v956
    %1638 = vmatprep.subr.mxu0 %v949
    %1639 = vmatpush2.msra.mxu0 %v948
    %1640 = vmatprep.subr.mxu0 %v941
    %1641 = vmatpush2.msra.mxu0 %v940
    %1642 = vmatprep.subr.mxu0 %v933
    %1643 = vmatpush2.msra.mxu0 %v932
    %1644 = vmatprep.subr.mxu0 %v925
    %1645 = vmatpush2.msra.mxu0 %v924
    %1646 = vmatprep.subr.mxu0 %v917
    %1647 = vmatpush2.msra.mxu0 %v916
    %1648 = vmatprep.subr.mxu0 %v909
    %1649 = vmatpush2.msra.mxu0 %v908
    %1650 = vmatprep.subr.mxu0 %v901
    %1651 = vmatpush2.msra.mxu0 %v900
    %1652 = vmatprep.subr.mxu0 %v893
    %1653 = vmatpush2.msra.mxu0 %v892
    %1654 = vmatprep.subr.mxu0 %v885
    %1655 = vmatpush2.msra.mxu0 %v884
    %1656 = vmatprep.mubr.f32.mxu0 %v111
    %1657 = vmatmul.mubr.f32.gmra.mxu0 %v110
    %v1658 = vpop.f32.mrf.mxu0
    %v1659 = vadd.f32 %v1588, %v1658
    %v1660 = vpop.f32.mrf.mxu0
    %v1661 = vadd.f32 %v1590, %v1660
    %1662 = vdwg.mxu0
    %1663 = vmatprep.subr.mxu0 %v1133
    %1664 = vmatpush1.msra.mxu0 %v1132
    %1665 = vmatprep.subr.mxu0 %v1125
    %1666 = vmatpush1.msra.mxu0 %v1124
    %1667 = vmatprep.subr.mxu0 %v1117
    %1668 = vmatpush1.msra.mxu0 %v1116
    %1669 = vmatprep.subr.mxu0 %v1109
    %1670 = vmatpush1.msra.mxu0 %v1108
    %1671 = vmatprep.subr.mxu0 %v1101
    %1672 = vmatpush1.msra.mxu0 %v1100
    %1673 = vmatprep.subr.mxu0 %v1093
    %1674 = vmatpush1.msra.mxu0 %v1092
    %1675 = vmatprep.subr.mxu0 %v1085
    %1676 = vmatpush1.msra.mxu0 %v1084
    %1677 = vmatprep.subr.mxu0 %v1077
    %1678 = vmatpush1.msra.mxu0 %v1076
    %1679 = vmatprep.subr.mxu0 %v1069
    %1680 = vmatpush1.msra.mxu0 %v1068
    %1681 = vmatprep.subr.mxu0 %v1061
    %1682 = vmatpush1.msra.mxu0 %v1060
    %1683 = vmatprep.subr.mxu0 %v1053
    %1684 = vmatpush1.msra.mxu0 %v1052
    %1685 = vmatprep.subr.mxu0 %v1045
    %1686 = vmatpush1.msra.mxu0 %v1044
    %1687 = vmatprep.subr.mxu0 %v1037
    %1688 = vmatpush1.msra.mxu0 %v1036
    %1689 = vmatprep.subr.mxu0 %v1029
    %1690 = vmatpush1.msra.mxu0 %v1028
    %1691 = vmatprep.subr.mxu0 %v1021
    %1692 = vmatpush1.msra.mxu0 %v1020
    %1693 = vmatprep.subr.mxu0 %v1013
    %1694 = vmatpush1.msra.mxu0 %v1012
    %1695 = vmatprep.subr.mxu0 %v1261
    %1696 = vmatpush2.msra.mxu0 %v1260
    %1697 = vmatprep.subr.mxu0 %v1253
    %1698 = vmatpush2.msra.mxu0 %v1252
    %1699 = vmatprep.subr.mxu0 %v1245
    %1700 = vmatpush2.msra.mxu0 %v1244
    %1701 = vmatprep.subr.mxu0 %v1237
    %1702 = vmatpush2.msra.mxu0 %v1236
    %1703 = vmatprep.subr.mxu0 %v1229
    %1704 = vmatpush2.msra.mxu0 %v1228
    %1705 = vmatprep.subr.mxu0 %v1221
    %1706 = vmatpush2.msra.mxu0 %v1220
    %1707 = vmatprep.subr.mxu0 %v1213
    %1708 = vmatpush2.msra.mxu0 %v1212
    %1709 = vmatprep.subr.mxu0 %v1205
    %1710 = vmatpush2.msra.mxu0 %v1204
    %1711 = vmatprep.subr.mxu0 %v1197
    %1712 = vmatpush2.msra.mxu0 %v1196
    %1713 = vmatprep.subr.mxu0 %v1189
    %1714 = vmatpush2.msra.mxu0 %v1188
    %1715 = vmatprep.subr.mxu0 %v1181
    %1716 = vmatpush2.msra.mxu0 %v1180
    %1717 = vmatprep.subr.mxu0 %v1173
    %1718 = vmatpush2.msra.mxu0 %v1172
    %1719 = vmatprep.subr.mxu0 %v1165
    %1720 = vmatpush2.msra.mxu0 %v1164
    %1721 = vmatprep.subr.mxu0 %v1157
    %1722 = vmatpush2.msra.mxu0 %v1156
    %1723 = vmatprep.subr.mxu0 %v1149
    %1724 = vmatpush2.msra.mxu0 %v1148
    %1725 = vmatprep.subr.mxu0 %v1141
    %1726 = vmatpush2.msra.mxu0 %v1140
    %1727 = vmatprep.mubr.f32.mxu0 %v113
    %1728 = vmatmul.mubr.f32.gmra.mxu0 %v112
    %v1729 = vpop.f32.mrf.mxu0
    %v1730 = vadd.f32 %v1659, %v1729
    %v1731 = vpop.f32.mrf.mxu0
    %v1732 = vadd.f32 %v1661, %v1731
    %1733 = vdwg.mxu0
    %1734 = vmatprep.subr.mxu0 %v623
    %1735 = vmatpush1.msra.mxu0 %v622
    %1736 = vmatprep.subr.mxu0 %v615
    %1737 = vmatpush1.msra.mxu0 %v614
    %1738 = vmatprep.subr.mxu0 %v607
    %1739 = vmatpush1.msra.mxu0 %v606
    %1740 = vmatprep.subr.mxu0 %v599
    %1741 = vmatpush1.msra.mxu0 %v598
    %1742 = vmatprep.subr.mxu0 %v591
    %1743 = vmatpush1.msra.mxu0 %v590
    %1744 = vmatprep.subr.mxu0 %v583
    %1745 = vmatpush1.msra.mxu0 %v582
    %1746 = vmatprep.subr.mxu0 %v575
    %1747 = vmatpush1.msra.mxu0 %v574
    %1748 = vmatprep.subr.mxu0 %v567
    %1749 = vmatpush1.msra.mxu0 %v566
    %1750 = vmatprep.subr.mxu0 %v559
    %1751 = vmatpush1.msra.mxu0 %v558
    %1752 = vmatprep.subr.mxu0 %v551
    %1753 = vmatpush1.msra.mxu0 %v550
    %1754 = vmatprep.subr.mxu0 %v543
    %1755 = vmatpush1.msra.mxu0 %v542
    %1756 = vmatprep.subr.mxu0 %v535
    %1757 = vmatpush1.msra.mxu0 %v534
    %1758 = vmatprep.subr.mxu0 %v527
    %1759 = vmatpush1.msra.mxu0 %v526
    %1760 = vmatprep.subr.mxu0 %v519
    %1761 = vmatpush1.msra.mxu0 %v518
    %1762 = vmatprep.subr.mxu0 %v511
    %1763 = vmatpush1.msra.mxu0 %v510
    %1764 = vmatprep.subr.mxu0 %v503
    %1765 = vmatpush1.msra.mxu0 %v502
    %1766 = vmatprep.subr.mxu0 %v751
    %1767 = vmatpush2.msra.mxu0 %v750
    %1768 = vmatprep.subr.mxu0 %v743
    %1769 = vmatpush2.msra.mxu0 %v742
    %1770 = vmatprep.subr.mxu0 %v735
    %1771 = vmatpush2.msra.mxu0 %v734
    %1772 = vmatprep.subr.mxu0 %v727
    %1773 = vmatpush2.msra.mxu0 %v726
    %1774 = vmatprep.subr.mxu0 %v719
    %1775 = vmatpush2.msra.mxu0 %v718
    %1776 = vmatprep.subr.mxu0 %v711
    %1777 = vmatpush2.msra.mxu0 %v710
    %1778 = vmatprep.subr.mxu0 %v703
    %1779 = vmatpush2.msra.mxu0 %v702
    %1780 = vmatprep.subr.mxu0 %v695
    %1781 = vmatpush2.msra.mxu0 %v694
    %1782 = vmatprep.subr.mxu0 %v687
    %1783 = vmatpush2.msra.mxu0 %v686
    %1784 = vmatprep.subr.mxu0 %v679
    %1785 = vmatpush2.msra.mxu0 %v678
    %1786 = vmatprep.subr.mxu0 %v671
    %1787 = vmatpush2.msra.mxu0 %v670
    %1788 = vmatprep.subr.mxu0 %v663
    %1789 = vmatpush2.msra.mxu0 %v662
    %1790 = vmatprep.subr.mxu0 %v655
    %1791 = vmatpush2.msra.mxu0 %v654
    %1792 = vmatprep.subr.mxu0 %v647
    %1793 = vmatpush2.msra.mxu0 %v646
    %1794 = vmatprep.subr.mxu0 %v639
    %1795 = vmatpush2.msra.mxu0 %v638
    %1796 = vmatprep.subr.mxu0 %v631
    %1797 = vmatpush2.msra.mxu0 %v630
    %1798 = vmatprep.mubr.f32.mxu0 %v109
    %1799 = vmatmul.mubr.f32.gmra.mxu0 %v108
    %v1800 = vpop.f32.mrf.mxu0
    %v1801 = vadd.f32 %v1287, %v1800
    %v1802 = vpop.f32.mrf.mxu0
    %v1803 = vadd.f32 %v1291, %v1802
    %1804 = vdwg.mxu0
    %1805 = vmatprep.subr.mxu0 %v879
    %1806 = vmatpush1.msra.mxu0 %v878
    %1807 = vmatprep.subr.mxu0 %v871
    %1808 = vmatpush1.msra.mxu0 %v870
    %1809 = vmatprep.subr.mxu0 %v863
    %1810 = vmatpush1.msra.mxu0 %v862
    %1811 = vmatprep.subr.mxu0 %v855
    %1812 = vmatpush1.msra.mxu0 %v854
    %1813 = vmatprep.subr.mxu0 %v847
    %1814 = vmatpush1.msra.mxu0 %v846
    %1815 = vmatprep.subr.mxu0 %v839
    %1816 = vmatpush1.msra.mxu0 %v838
    %1817 = vmatprep.subr.mxu0 %v831
    %1818 = vmatpush1.msra.mxu0 %v830
    %1819 = vmatprep.subr.mxu0 %v823
    %1820 = vmatpush1.msra.mxu0 %v822
    %1821 = vmatprep.subr.mxu0 %v815
    %1822 = vmatpush1.msra.mxu0 %v814
    %1823 = vmatprep.subr.mxu0 %v807
    %1824 = vmatpush1.msra.mxu0 %v806
    %1825 = vmatprep.subr.mxu0 %v799
    %1826 = vmatpush1.msra.mxu0 %v798
    %1827 = vmatprep.subr.mxu0 %v791
    %1828 = vmatpush1.msra.mxu0 %v790
    %1829 = vmatprep.subr.mxu0 %v783
    %1830 = vmatpush1.msra.mxu0 %v782
    %1831 = vmatprep.subr.mxu0 %v775
    %1832 = vmatpush1.msra.mxu0 %v774
    %1833 = vmatprep.subr.mxu0 %v767
    %1834 = vmatpush1.msra.mxu0 %v766
    %1835 = vmatprep.subr.mxu0 %v759
    %1836 = vmatpush1.msra.mxu0 %v758
    %1837 = vmatprep.subr.mxu0 %v1007
    %1838 = vmatpush2.msra.mxu0 %v1006
    %1839 = vmatprep.subr.mxu0 %v999
    %1840 = vmatpush2.msra.mxu0 %v998
    %1841 = vmatprep.subr.mxu0 %v991
    %1842 = vmatpush2.msra.mxu0 %v990
    %1843 = vmatprep.subr.mxu0 %v983
    %1844 = vmatpush2.msra.mxu0 %v982
    %1845 = vmatprep.subr.mxu0 %v975
    %1846 = vmatpush2.msra.mxu0 %v974
    %1847 = vmatprep.subr.mxu0 %v967
    %1848 = vmatpush2.msra.mxu0 %v966
    %1849 = vmatprep.subr.mxu0 %v959
    %1850 = vmatpush2.msra.mxu0 %v958
    %1851 = vmatprep.subr.mxu0 %v951
    %1852 = vmatpush2.msra.mxu0 %v950
    %1853 = vmatprep.subr.mxu0 %v943
    %1854 = vmatpush2.msra.mxu0 %v942
    %1855 = vmatprep.subr.mxu0 %v935
    %1856 = vmatpush2.msra.mxu0 %v934
    %1857 = vmatprep.subr.mxu0 %v927
    %1858 = vmatpush2.msra.mxu0 %v926
    %1859 = vmatprep.subr.mxu0 %v919
    %1860 = vmatpush2.msra.mxu0 %v918
    %1861 = vmatprep.subr.mxu0 %v911
    %1862 = vmatpush2.msra.mxu0 %v910
    %1863 = vmatprep.subr.mxu0 %v903
    %1864 = vmatpush2.msra.mxu0 %v902
    %1865 = vmatprep.subr.mxu0 %v895
    %1866 = vmatpush2.msra.mxu0 %v894
    %1867 = vmatprep.subr.mxu0 %v887
    %1868 = vmatpush2.msra.mxu0 %v886
    %1869 = vmatprep.mubr.f32.mxu0 %v111
    %1870 = vmatmul.mubr.f32.gmra.mxu0 %v110
    %v1871 = vpop.f32.mrf.mxu0
    %v1872 = vadd.f32 %v1801, %v1871
    %v1873 = vpop.f32.mrf.mxu0
    %v1874 = vadd.f32 %v1803, %v1873
    %1875 = vdwg.mxu0
    %1876 = vmatprep.subr.mxu0 %v1135
    %1877 = vmatpush1.msra.mxu0 %v1134
    %1878 = vmatprep.subr.mxu0 %v1127
    %1879 = vmatpush1.msra.mxu0 %v1126
    %1880 = vmatprep.subr.mxu0 %v1119
    %1881 = vmatpush1.msra.mxu0 %v1118
    %1882 = vmatprep.subr.mxu0 %v1111
    %1883 = vmatpush1.msra.mxu0 %v1110
    %1884 = vmatprep.subr.mxu0 %v1103
    %1885 = vmatpush1.msra.mxu0 %v1102
    %1886 = vmatprep.subr.mxu0 %v1095
    %1887 = vmatpush1.msra.mxu0 %v1094
    %1888 = vmatprep.subr.mxu0 %v1087
    %1889 = vmatpush1.msra.mxu0 %v1086
    %1890 = vmatprep.subr.mxu0 %v1079
    %1891 = vmatpush1.msra.mxu0 %v1078
    %1892 = vmatprep.subr.mxu0 %v1071
    %1893 = vmatpush1.msra.mxu0 %v1070
    %1894 = vmatprep.subr.mxu0 %v1063
    %1895 = vmatpush1.msra.mxu0 %v1062
    %1896 = vmatprep.subr.mxu0 %v1055
    %1897 = vmatpush1.msra.mxu0 %v1054
    %1898 = vmatprep.subr.mxu0 %v1047
    %1899 = vmatpush1.msra.mxu0 %v1046
    %1900 = vmatprep.subr.mxu0 %v1039
    %1901 = vmatpush1.msra.mxu0 %v1038
    %1902 = vmatprep.subr.mxu0 %v1031
    %1903 = vmatpush1.msra.mxu0 %v1030
    %1904 = vmatprep.subr.mxu0 %v1023
    %1905 = vmatpush1.msra.mxu0 %v1022
    %1906 = vmatprep.subr.mxu0 %v1015
    %1907 = vmatpush1.msra.mxu0 %v1014
    %1908 = vmatprep.subr.mxu0 %v1263
    %1909 = vmatpush2.msra.mxu0 %v1262
    %1910 = vmatprep.subr.mxu0 %v1255
    %1911 = vmatpush2.msra.mxu0 %v1254
    %1912 = vmatprep.subr.mxu0 %v1247
    %1913 = vmatpush2.msra.mxu0 %v1246
    %1914 = vmatprep.subr.mxu0 %v1239
    %1915 = vmatpush2.msra.mxu0 %v1238
    %1916 = vmatprep.subr.mxu0 %v1231
    %1917 = vmatpush2.msra.mxu0 %v1230
    %1918 = vmatprep.subr.mxu0 %v1223
    %1919 = vmatpush2.msra.mxu0 %v1222
    %1920 = vmatprep.subr.mxu0 %v1215
    %1921 = vmatpush2.msra.mxu0 %v1214
    %1922 = vmatprep.subr.mxu0 %v1207
    %1923 = vmatpush2.msra.mxu0 %v1206
    %1924 = vmatprep.subr.mxu0 %v1199
    %1925 = vmatpush2.msra.mxu0 %v1198
    %1926 = vmatprep.subr.mxu0 %v1191
    %1927 = vmatpush2.msra.mxu0 %v1190
    %1928 = vmatprep.subr.mxu0 %v1183
    %1929 = vmatpush2.msra.mxu0 %v1182
    %1930 = vmatprep.subr.mxu0 %v1175
    %1931 = vmatpush2.msra.mxu0 %v1174
    %1932 = vmatprep.subr.mxu0 %v1167
    %1933 = vmatpush2.msra.mxu0 %v1166
    %1934 = vmatprep.subr.mxu0 %v1159
    %1935 = vmatpush2.msra.mxu0 %v1158
    %1936 = vmatprep.subr.mxu0 %v1151
    %1937 = vmatpush2.msra.mxu0 %v1150
    %1938 = vmatprep.subr.mxu0 %v1143
    %1939 = vmatpush2.msra.mxu0 %v1142
    %1940 = vmatprep.mubr.f32.mxu0 %v113
    %1941 = vmatmul.mubr.f32.gmra.mxu0 %v112
    %v1942 = vpop.f32.mrf.mxu0
    %v1943 = vadd.f32 %v1872, %v1942
    %v1944 = vpop.f32.mrf.mxu0
    %v1945 = vadd.f32 %v1874, %v1944
    %1946 = vdwg.mxu0
    %1947 = vmatprep.subr.mxu0 %v625
    %1948 = vmatpush1.msra.mxu0 %v624
    %1949 = vmatprep.subr.mxu0 %v617
    %1950 = vmatpush1.msra.mxu0 %v616
    %1951 = vmatprep.subr.mxu0 %v609
    %1952 = vmatpush1.msra.mxu0 %v608
    %1953 = vmatprep.subr.mxu0 %v601
    %1954 = vmatpush1.msra.mxu0 %v600
    %1955 = vmatprep.subr.mxu0 %v593
    %1956 = vmatpush1.msra.mxu0 %v592
    %1957 = vmatprep.subr.mxu0 %v585
    %1958 = vmatpush1.msra.mxu0 %v584
    %1959 = vmatprep.subr.mxu0 %v577
    %1960 = vmatpush1.msra.mxu0 %v576
    %1961 = vmatprep.subr.mxu0 %v569
    %1962 = vmatpush1.msra.mxu0 %v568
    %1963 = vmatprep.subr.mxu0 %v561
    %1964 = vmatpush1.msra.mxu0 %v560
    %1965 = vmatprep.subr.mxu0 %v553
    %1966 = vmatpush1.msra.mxu0 %v552
    %1967 = vmatprep.subr.mxu0 %v545
    %1968 = vmatpush1.msra.mxu0 %v544
    %1969 = vmatprep.subr.mxu0 %v537
    %1970 = vmatpush1.msra.mxu0 %v536
    %1971 = vmatprep.subr.mxu0 %v529
    %1972 = vmatpush1.msra.mxu0 %v528
    %1973 = vmatprep.subr.mxu0 %v521
    %1974 = vmatpush1.msra.mxu0 %v520
    %1975 = vmatprep.subr.mxu0 %v513
    %1976 = vmatpush1.msra.mxu0 %v512
    %1977 = vmatprep.subr.mxu0 %v505
    %1978 = vmatpush1.msra.mxu0 %v504
    %1979 = vmatprep.subr.mxu0 %v753
    %1980 = vmatpush2.msra.mxu0 %v752
    %1981 = vmatprep.subr.mxu0 %v745
    %1982 = vmatpush2.msra.mxu0 %v744
    %1983 = vmatprep.subr.mxu0 %v737
    %1984 = vmatpush2.msra.mxu0 %v736
    %1985 = vmatprep.subr.mxu0 %v729
    %1986 = vmatpush2.msra.mxu0 %v728
    %1987 = vmatprep.subr.mxu0 %v721
    %1988 = vmatpush2.msra.mxu0 %v720
    %1989 = vmatprep.subr.mxu0 %v713
    %1990 = vmatpush2.msra.mxu0 %v712
    %1991 = vmatprep.subr.mxu0 %v705
    %1992 = vmatpush2.msra.mxu0 %v704
    %1993 = vmatprep.subr.mxu0 %v697
    %1994 = vmatpush2.msra.mxu0 %v696
    %1995 = vmatprep.subr.mxu0 %v689
    %1996 = vmatpush2.msra.mxu0 %v688
    %1997 = vmatprep.subr.mxu0 %v681
    %1998 = vmatpush2.msra.mxu0 %v680
    %1999 = vmatprep.subr.mxu0 %v673
    %2000 = vmatpush2.msra.mxu0 %v672
    %2001 = vmatprep.subr.mxu0 %v665
    %2002 = vmatpush2.msra.mxu0 %v664
    %2003 = vmatprep.subr.mxu0 %v657
    %2004 = vmatpush2.msra.mxu0 %v656
    %2005 = vmatprep.subr.mxu0 %v649
    %2006 = vmatpush2.msra.mxu0 %v648
    %2007 = vmatprep.subr.mxu0 %v641
    %2008 = vmatpush2.msra.mxu0 %v640
    %2009 = vmatprep.subr.mxu0 %v633
    %2010 = vmatpush2.msra.mxu0 %v632
    %2011 = vmatprep.mubr.f32.mxu0 %v109
    %2012 = vmatmul.mubr.f32.gmra.mxu0 %v108
    %v2013 = vpop.f32.mrf.mxu0
    %v2014 = vadd.f32 %v1295, %v2013
    %v2015 = vpop.f32.mrf.mxu0
    %v2016 = vadd.f32 %v1299, %v2015
    %2017 = vdwg.mxu0
    %2018 = vmatprep.subr.mxu0 %v881
    %2019 = vmatpush1.msra.mxu0 %v880
    %2020 = vmatprep.subr.mxu0 %v873
    %2021 = vmatpush1.msra.mxu0 %v872
    %2022 = vmatprep.subr.mxu0 %v865
    %2023 = vmatpush1.msra.mxu0 %v864
    %2024 = vmatprep.subr.mxu0 %v857
    %2025 = vmatpush1.msra.mxu0 %v856
    %2026 = vmatprep.subr.mxu0 %v849
    %2027 = vmatpush1.msra.mxu0 %v848
    %2028 = vmatprep.subr.mxu0 %v841
    %2029 = vmatpush1.msra.mxu0 %v840
    %2030 = vmatprep.subr.mxu0 %v833
    %2031 = vmatpush1.msra.mxu0 %v832
    %2032 = vmatprep.subr.mxu0 %v825
    %2033 = vmatpush1.msra.mxu0 %v824
    %2034 = vmatprep.subr.mxu0 %v817
    %2035 = vmatpush1.msra.mxu0 %v816
    %2036 = vmatprep.subr.mxu0 %v809
    %2037 = vmatpush1.msra.mxu0 %v808
    %2038 = vmatprep.subr.mxu0 %v801
    %2039 = vmatpush1.msra.mxu0 %v800
    %2040 = vmatprep.subr.mxu0 %v793
    %2041 = vmatpush1.msra.mxu0 %v792
    %2042 = vmatprep.subr.mxu0 %v785
    %2043 = vmatpush1.msra.mxu0 %v784
    %2044 = vmatprep.subr.mxu0 %v777
    %2045 = vmatpush1.msra.mxu0 %v776
    %2046 = vmatprep.subr.mxu0 %v769
    %2047 = vmatpush1.msra.mxu0 %v768
    %2048 = vmatprep.subr.mxu0 %v761
    %2049 = vmatpush1.msra.mxu0 %v760
    %2050 = vmatprep.subr.mxu0 %v1009
    %2051 = vmatpush2.msra.mxu0 %v1008
    %2052 = vmatprep.subr.mxu0 %v1001
    %2053 = vmatpush2.msra.mxu0 %v1000
    %2054 = vmatprep.subr.mxu0 %v993
    %2055 = vmatpush2.msra.mxu0 %v992
    %2056 = vmatprep.subr.mxu0 %v985
    %2057 = vmatpush2.msra.mxu0 %v984
    %2058 = vmatprep.subr.mxu0 %v977
    %2059 = vmatpush2.msra.mxu0 %v976
    %2060 = vmatprep.subr.mxu0 %v969
    %2061 = vmatpush2.msra.mxu0 %v968
    %2062 = vmatprep.subr.mxu0 %v961
    %2063 = vmatpush2.msra.mxu0 %v960
    %2064 = vmatprep.subr.mxu0 %v953
    %2065 = vmatpush2.msra.mxu0 %v952
    %2066 = vmatprep.subr.mxu0 %v945
    %2067 = vmatpush2.msra.mxu0 %v944
    %2068 = vmatprep.subr.mxu0 %v937
    %2069 = vmatpush2.msra.mxu0 %v936
    %2070 = vmatprep.subr.mxu0 %v929
    %2071 = vmatpush2.msra.mxu0 %v928
    %2072 = vmatprep.subr.mxu0 %v921
    %2073 = vmatpush2.msra.mxu0 %v920
    %2074 = vmatprep.subr.mxu0 %v913
    %2075 = vmatpush2.msra.mxu0 %v912
    %2076 = vmatprep.subr.mxu0 %v905
    %2077 = vmatpush2.msra.mxu0 %v904
    %2078 = vmatprep.subr.mxu0 %v897
    %2079 = vmatpush2.msra.mxu0 %v896
    %2080 = vmatprep.subr.mxu0 %v889
    %2081 = vmatpush2.msra.mxu0 %v888
    %2082 = vmatprep.mubr.f32.mxu0 %v111
    %2083 = vmatmul.mubr.f32.gmra.mxu0 %v110
    %v2084 = vpop.f32.mrf.mxu0
    %v2085 = vadd.f32 %v2014, %v2084
    %v2086 = vpop.f32.mrf.mxu0
    %v2087 = vadd.f32 %v2016, %v2086
    %2088 = vdwg.mxu0
    %2089 = vmatprep.subr.mxu0 %v1137
    %2090 = vmatpush1.msra.mxu0 %v1136
    %2091 = vmatprep.subr.mxu0 %v1129
    %2092 = vmatpush1.msra.mxu0 %v1128
    %2093 = vmatprep.subr.mxu0 %v1121
    %2094 = vmatpush1.msra.mxu0 %v1120
    %2095 = vmatprep.subr.mxu0 %v1113
    %2096 = vmatpush1.msra.mxu0 %v1112
    %2097 = vmatprep.subr.mxu0 %v1105
    %2098 = vmatpush1.msra.mxu0 %v1104
    %2099 = vmatprep.subr.mxu0 %v1097
    %2100 = vmatpush1.msra.mxu0 %v1096
    %2101 = vmatprep.subr.mxu0 %v1089
    %2102 = vmatpush1.msra.mxu0 %v1088
    %2103 = vmatprep.subr.mxu0 %v1081
    %2104 = vmatpush1.msra.mxu0 %v1080
    %2105 = vmatprep.subr.mxu0 %v1073
    %2106 = vmatpush1.msra.mxu0 %v1072
    %2107 = vmatprep.subr.mxu0 %v1065
    %2108 = vmatpush1.msra.mxu0 %v1064
    %2109 = vmatprep.subr.mxu0 %v1057
    %2110 = vmatpush1.msra.mxu0 %v1056
    %2111 = vmatprep.subr.mxu0 %v1049
    %2112 = vmatpush1.msra.mxu0 %v1048
    %2113 = vmatprep.subr.mxu0 %v1041
    %2114 = vmatpush1.msra.mxu0 %v1040
    %2115 = vmatprep.subr.mxu0 %v1033
    %2116 = vmatpush1.msra.mxu0 %v1032
    %2117 = vmatprep.subr.mxu0 %v1025
    %2118 = vmatpush1.msra.mxu0 %v1024
    %2119 = vmatprep.subr.mxu0 %v1017
    %2120 = vmatpush1.msra.mxu0 %v1016
    %2121 = vmatprep.subr.mxu0 %v1265
    %2122 = vmatpush2.msra.mxu0 %v1264
    %2123 = vmatprep.subr.mxu0 %v1257
    %2124 = vmatpush2.msra.mxu0 %v1256
    %2125 = vmatprep.subr.mxu0 %v1249
    %2126 = vmatpush2.msra.mxu0 %v1248
    %2127 = vmatprep.subr.mxu0 %v1241
    %2128 = vmatpush2.msra.mxu0 %v1240
    %2129 = vmatprep.subr.mxu0 %v1233
    %2130 = vmatpush2.msra.mxu0 %v1232
    %2131 = vmatprep.subr.mxu0 %v1225
    %2132 = vmatpush2.msra.mxu0 %v1224
    %2133 = vmatprep.subr.mxu0 %v1217
    %2134 = vmatpush2.msra.mxu0 %v1216
    %2135 = vmatprep.subr.mxu0 %v1209
    %2136 = vmatpush2.msra.mxu0 %v1208
    %2137 = vmatprep.subr.mxu0 %v1201
    %2138 = vmatpush2.msra.mxu0 %v1200
    %2139 = vmatprep.subr.mxu0 %v1193
    %2140 = vmatpush2.msra.mxu0 %v1192
    %2141 = vmatprep.subr.mxu0 %v1185
    %2142 = vmatpush2.msra.mxu0 %v1184
    %2143 = vmatprep.subr.mxu0 %v1177
    %2144 = vmatpush2.msra.mxu0 %v1176
    %2145 = vmatprep.subr.mxu0 %v1169
    %2146 = vmatpush2.msra.mxu0 %v1168
    %2147 = vmatprep.subr.mxu0 %v1161
    %2148 = vmatpush2.msra.mxu0 %v1160
    %2149 = vmatprep.subr.mxu0 %v1153
    %2150 = vmatpush2.msra.mxu0 %v1152
    %2151 = vmatprep.subr.mxu0 %v1145
    %2152 = vmatpush2.msra.mxu0 %v1144
    %2153 = vmatprep.mubr.f32.mxu0 %v113
    %2154 = vmatmul.mubr.f32.gmra.mxu0 %v112
    %v2155 = vpop.f32.mrf.mxu0
    %v2156 = vadd.f32 %v2085, %v2155
    %v2157 = vpop.f32.mrf.mxu0
    %v2158 = vadd.f32 %v2087, %v2157
    %2159 = vdwg.mxu0
    %v2160 = vmul.f32 %v1517, 0.5
    %v2161 = vmul.f32 %v1519, 0.5
    %v2162 = vmul.f32 %v1730, 0.5
    %v2163 = vmul.f32 %v1732, 0.5
    %v2164 = vmul.f32 %v1943, 0.5
    %v2165 = vmul.f32 %v1945, 0.5
    %v2166 = vmul.f32 %v2156, 0.5
    %v2167 = vmul.f32 %v2158, 0.5
    %v2168 = vmul.f32 %v1517, 0.70710677
    %v2169 = vmul.f32 %v1519, 0.70710677
    %v2170 = vmul.f32 %v1730, 0.70710677
    %v2171 = vmul.f32 %v1732, 0.70710677
    %v2172 = vmul.f32 %v1943, 0.70710677
    %v2173 = vmul.f32 %v1945, 0.70710677
    %v2174 = vmul.f32 %v2156, 0.70710677
    %v2175 = vmul.f32 %v2158, 0.70710677
    %v2176 = verf.f32.pop %v2168
    %v2177 = verf.f32.pop %v2169
    %v2178 = verf.f32.pop %v2170
    %v2179 = verf.f32.pop %v2171
    %v2180 = verf.f32.pop %v2172
    %v2181 = verf.f32.pop %v2173
    %v2182 = verf.f32.pop %v2174
    %v2183 = verf.f32.pop %v2175
    %v2184 = vadd.f32 %v2176, 1.0
    %v2185 = vadd.f32 %v2177, 1.0
    %v2186 = vadd.f32 %v2178, 1.0
    %v2187 = vadd.f32 %v2179, 1.0
    %v2188 = vadd.f32 %v2180, 1.0
    %v2189 = vadd.f32 %v2181, 1.0
    %v2190 = vadd.f32 %v2182, 1.0
    %v2191 = vadd.f32 %v2183, 1.0
    %v2192 = vmul.f32 %v2160, %v2184
    %v2193 = vmul.f32 %v2161, %v2185
    %v2194 = vmul.f32 %v2162, %v2186
    %v2195 = vmul.f32 %v2163, %v2187
    %v2196 = vmul.f32 %v2164, %v2188
    %v2197 = vmul.f32 %v2165, %v2189
    %v2198 = vmul.f32 %v2166, %v2190
    %v2199 = vmul.f32 %v2167, %v2191
    %v2200 = vld [vmem:[#allocation8] sm:$0xf]
    %v2201 = vld [vmem:[#allocation8 + $0x4] sm:$0xf]
    %v2202 = vld [vmem:[#allocation8 + $0x8] sm:$0xf]
    %v2203 = vld [vmem:[#allocation8 + $0xc] sm:$0xf]
    %v2204 = vld [vmem:[#allocation8 + $0x10] sm:$0xf]
    %v2205 = vld [vmem:[#allocation8 + $0x14] sm:$0xf]
    %v2206 = vld [vmem:[#allocation8 + $0x18] sm:$0xf]
    %v2207 = vld [vmem:[#allocation8 + $0x1c] sm:$0xf]
    %v2208 = vld [vmem:[#allocation8 + $0x20] sm:$0xf]
    %v2209 = vld [vmem:[#allocation8 + $0x24] sm:$0xf]
    %v2210 = vld [vmem:[#allocation8 + $0x28] sm:$0xf]
    %v2211 = vld [vmem:[#allocation8 + $0x2c] sm:$0xf]
    %v2212 = vld [vmem:[#allocation8 + $0x30] sm:$0xf]
    %v2213 = vld [vmem:[#allocation8 + $0x34] sm:$0xf]
    %v2214 = vld [vmem:[#allocation8 + $0x38] sm:$0xf]
    %v2215 = vld [vmem:[#allocation8 + $0x3c] sm:$0xf]
    %v2216 = vld [vmem:[#allocation8 + $0x40] sm:$0xf]
    %v2217 = vld [vmem:[#allocation8 + $0x44] sm:$0xf]
    %v2218 = vld [vmem:[#allocation8 + $0x48] sm:$0xf]
    %v2219 = vld [vmem:[#allocation8 + $0x4c] sm:$0xf]
    %v2220 = vld [vmem:[#allocation8 + $0x50] sm:$0xf]
    %v2221 = vld [vmem:[#allocation8 + $0x54] sm:$0xf]
    %v2222 = vld [vmem:[#allocation8 + $0x58] sm:$0xf]
    %v2223 = vld [vmem:[#allocation8 + $0x5c] sm:$0xf]
    %v2224 = vld [vmem:[#allocation8 + $0x60] sm:$0xf]
    %v2225 = vld [vmem:[#allocation8 + $0x64] sm:$0xf]
    %v2226 = vld [vmem:[#allocation8 + $0x68] sm:$0xf]
    %v2227 = vld [vmem:[#allocation8 + $0x6c] sm:$0xf]
    %v2228 = vld [vmem:[#allocation8 + $0x70] sm:$0xf]
    %v2229 = vld [vmem:[#allocation8 + $0x74] sm:$0xf]
    %v2230 = vld [vmem:[#allocation8 + $0x78] sm:$0xf]
    %v2231 = vld [vmem:[#allocation8 + $0x7c] sm:$0xf]
    %v2232 = vld [vmem:[#allocation8 + $0x80] sm:$0xf]
    %v2233 = vld [vmem:[#allocation8 + $0x84] sm:$0xf]
    %v2234 = vld [vmem:[#allocation8 + $0x88] sm:$0xf]
    %v2235 = vld [vmem:[#allocation8 + $0x8c] sm:$0xf]
    %v2236 = vld [vmem:[#allocation8 + $0x90] sm:$0xf]
    %v2237 = vld [vmem:[#allocation8 + $0x94] sm:$0xf]
    %v2238 = vld [vmem:[#allocation8 + $0x98] sm:$0xf]
    %v2239 = vld [vmem:[#allocation8 + $0x9c] sm:$0xf]
    %v2240 = vld [vmem:[#allocation8 + $0xa0] sm:$0xf]
    %v2241 = vld [vmem:[#allocation8 + $0xa4] sm:$0xf]
    %v2242 = vld [vmem:[#allocation8 + $0xa8] sm:$0xf]
    %v2243 = vld [vmem:[#allocation8 + $0xac] sm:$0xf]
    %v2244 = vld [vmem:[#allocation8 + $0xb0] sm:$0xf]
    %v2245 = vld [vmem:[#allocation8 + $0xb4] sm:$0xf]
    %v2246 = vld [vmem:[#allocation8 + $0xb8] sm:$0xf]
    %v2247 = vld [vmem:[#allocation8 + $0xbc] sm:$0xf]
    %v2248 = vld [vmem:[#allocation8 + $0xc0] sm:$0xf]
    %v2249 = vld [vmem:[#allocation8 + $0xc4] sm:$0xf]
    %v2250 = vld [vmem:[#allocation8 + $0xc8] sm:$0xf]
    %v2251 = vld [vmem:[#allocation8 + $0xcc] sm:$0xf]
    %v2252 = vld [vmem:[#allocation8 + $0xd0] sm:$0xf]
    %v2253 = vld [vmem:[#allocation8 + $0xd4] sm:$0xf]
    %v2254 = vld [vmem:[#allocation8 + $0xd8] sm:$0xf]
    %v2255 = vld [vmem:[#allocation8 + $0xdc] sm:$0xf]
    %v2256 = vld [vmem:[#allocation8 + $0xe0] sm:$0xf]
    %v2257 = vld [vmem:[#allocation8 + $0xe4] sm:$0xf]
    %v2258 = vld [vmem:[#allocation8 + $0xe8] sm:$0xf]
    %v2259 = vld [vmem:[#allocation8 + $0xec] sm:$0xf]
    %v2260 = vld [vmem:[#allocation8 + $0xf0] sm:$0xf]
    %v2261 = vld [vmem:[#allocation8 + $0xf4] sm:$0xf]
    %v2262 = vld [vmem:[#allocation8 + $0xf8] sm:$0xf]
    %v2263 = vld [vmem:[#allocation8 + $0xfc] sm:$0xf]
    %v2264 = vld [vmem:[#allocation8 + $0x100] sm:$0xf]
    %v2265 = vld [vmem:[#allocation8 + $0x104] sm:$0xf]
    %v2266 = vld [vmem:[#allocation8 + $0x108] sm:$0xf]
    %v2267 = vld [vmem:[#allocation8 + $0x10c] sm:$0xf]
    %v2268 = vld [vmem:[#allocation8 + $0x110] sm:$0xf]
    %v2269 = vld [vmem:[#allocation8 + $0x114] sm:$0xf]
    %v2270 = vld [vmem:[#allocation8 + $0x118] sm:$0xf]
    %v2271 = vld [vmem:[#allocation8 + $0x11c] sm:$0xf]
    %v2272 = vld [vmem:[#allocation8 + $0x120] sm:$0xf]
    %v2273 = vld [vmem:[#allocation8 + $0x124] sm:$0xf]
    %v2274 = vld [vmem:[#allocation8 + $0x128] sm:$0xf]
    %v2275 = vld [vmem:[#allocation8 + $0x12c] sm:$0xf]
    %v2276 = vld [vmem:[#allocation8 + $0x130] sm:$0xf]
    %v2277 = vld [vmem:[#allocation8 + $0x134] sm:$0xf]
    %v2278 = vld [vmem:[#allocation8 + $0x138] sm:$0xf]
    %v2279 = vld [vmem:[#allocation8 + $0x13c] sm:$0xf]
    %v2280 = vld [vmem:[#allocation8 + $0x140] sm:$0xf]
    %v2281 = vld [vmem:[#allocation8 + $0x144] sm:$0xf]
    %v2282 = vld [vmem:[#allocation8 + $0x148] sm:$0xf]
    %v2283 = vld [vmem:[#allocation8 + $0x14c] sm:$0xf]
    %v2284 = vld [vmem:[#allocation8 + $0x150] sm:$0xf]
    %v2285 = vld [vmem:[#allocation8 + $0x154] sm:$0xf]
    %v2286 = vld [vmem:[#allocation8 + $0x158] sm:$0xf]
    %v2287 = vld [vmem:[#allocation8 + $0x15c] sm:$0xf]
    %v2288 = vld [vmem:[#allocation8 + $0x160] sm:$0xf]
    %v2289 = vld [vmem:[#allocation8 + $0x164] sm:$0xf]
    %v2290 = vld [vmem:[#allocation8 + $0x168] sm:$0xf]
    %v2291 = vld [vmem:[#allocation8 + $0x16c] sm:$0xf]
    %v2292 = vld [vmem:[#allocation8 + $0x170] sm:$0xf]
    %v2293 = vld [vmem:[#allocation8 + $0x174] sm:$0xf]
    %v2294 = vld [vmem:[#allocation8 + $0x178] sm:$0xf]
    %v2295 = vld [vmem:[#allocation8 + $0x17c] sm:$0xf]
    %v2296 = vld [vmem:[#allocation8 + $0x180] sm:$0xf]
    %v2297 = vld [vmem:[#allocation8 + $0x184] sm:$0xf]
    %v2298 = vld [vmem:[#allocation8 + $0x188] sm:$0xf]
    %v2299 = vld [vmem:[#allocation8 + $0x18c] sm:$0xf]
    %v2300 = vld [vmem:[#allocation8 + $0x190] sm:$0xf]
    %v2301 = vld [vmem:[#allocation8 + $0x194] sm:$0xf]
    %v2302 = vld [vmem:[#allocation8 + $0x198] sm:$0xf]
    %v2303 = vld [vmem:[#allocation8 + $0x19c] sm:$0xf]
    %v2304 = vld [vmem:[#allocation8 + $0x1a0] sm:$0xf]
    %v2305 = vld [vmem:[#allocation8 + $0x1a4] sm:$0xf]
    %v2306 = vld [vmem:[#allocation8 + $0x1a8] sm:$0xf]
    %v2307 = vld [vmem:[#allocation8 + $0x1ac] sm:$0xf]
    %v2308 = vld [vmem:[#allocation8 + $0x1b0] sm:$0xf]
    %v2309 = vld [vmem:[#allocation8 + $0x1b4] sm:$0xf]
    %v2310 = vld [vmem:[#allocation8 + $0x1b8] sm:$0xf]
    %v2311 = vld [vmem:[#allocation8 + $0x1bc] sm:$0xf]
    %v2312 = vld [vmem:[#allocation8 + $0x1c0] sm:$0xf]
    %v2313 = vld [vmem:[#allocation8 + $0x1c4] sm:$0xf]
    %v2314 = vld [vmem:[#allocation8 + $0x1c8] sm:$0xf]
    %v2315 = vld [vmem:[#allocation8 + $0x1cc] sm:$0xf]
    %v2316 = vld [vmem:[#allocation8 + $0x1d0] sm:$0xf]
    %v2317 = vld [vmem:[#allocation8 + $0x1d4] sm:$0xf]
    %v2318 = vld [vmem:[#allocation8 + $0x1d8] sm:$0xf]
    %v2319 = vld [vmem:[#allocation8 + $0x1dc] sm:$0xf]
    %v2320 = vld [vmem:[#allocation8 + $0x1e0] sm:$0xf]
    %v2321 = vld [vmem:[#allocation8 + $0x1e4] sm:$0xf]
    %v2322 = vld [vmem:[#allocation8 + $0x1e8] sm:$0xf]
    %v2323 = vld [vmem:[#allocation8 + $0x1ec] sm:$0xf]
    %v2324 = vld [vmem:[#allocation8 + $0x1f0] sm:$0xf]
    %v2325 = vld [vmem:[#allocation8 + $0x1f4] sm:$0xf]
    %v2326 = vld [vmem:[#allocation8 + $0x1f8] sm:$0xf]
    %v2327 = vld [vmem:[#allocation8 + $0x1fc] sm:$0xf]
    %v2328 = vunpack.c.l.bf16 %v2200
    %v2329 = vunpack.c.l.bf16 %v2201
    %v2330 = vunpack.c.l.bf16 %v2202
    %v2331 = vunpack.c.l.bf16 %v2203
    %v2332 = vunpack.c.l.bf16 %v2204
    %v2333 = vunpack.c.l.bf16 %v2205
    %v2334 = vunpack.c.l.bf16 %v2206
    %v2335 = vunpack.c.l.bf16 %v2207
    %v2336 = vunpack.c.l.bf16 %v2208
    %v2337 = vunpack.c.l.bf16 %v2209
    %v2338 = vunpack.c.l.bf16 %v2210
    %v2339 = vunpack.c.l.bf16 %v2211
    %v2340 = vunpack.c.l.bf16 %v2212
    %v2341 = vunpack.c.l.bf16 %v2213
    %v2342 = vunpack.c.l.bf16 %v2214
    %v2343 = vunpack.c.l.bf16 %v2215
    %v2344 = vunpack.c.l.bf16 %v2216
    %v2345 = vunpack.c.l.bf16 %v2217
    %v2346 = vunpack.c.l.bf16 %v2218
    %v2347 = vunpack.c.l.bf16 %v2219
    %v2348 = vunpack.c.l.bf16 %v2220
    %v2349 = vunpack.c.l.bf16 %v2221
    %v2350 = vunpack.c.l.bf16 %v2222
    %v2351 = vunpack.c.l.bf16 %v2223
    %v2352 = vunpack.c.l.bf16 %v2224
    %v2353 = vunpack.c.l.bf16 %v2225
    %v2354 = vunpack.c.l.bf16 %v2226
    %v2355 = vunpack.c.l.bf16 %v2227
    %v2356 = vunpack.c.l.bf16 %v2228
    %v2357 = vunpack.c.l.bf16 %v2229
    %v2358 = vunpack.c.l.bf16 %v2230
    %v2359 = vunpack.c.l.bf16 %v2231
    %v2360 = vunpack.c.l.bf16 %v2232
    %v2361 = vunpack.c.l.bf16 %v2233
    %v2362 = vunpack.c.l.bf16 %v2234
    %v2363 = vunpack.c.l.bf16 %v2235
    %v2364 = vunpack.c.l.bf16 %v2236
    %v2365 = vunpack.c.l.bf16 %v2237
    %v2366 = vunpack.c.l.bf16 %v2238
    %v2367 = vunpack.c.l.bf16 %v2239
    %v2368 = vunpack.c.l.bf16 %v2240
    %v2369 = vunpack.c.l.bf16 %v2241
    %v2370 = vunpack.c.l.bf16 %v2242
    %v2371 = vunpack.c.l.bf16 %v2243
    %v2372 = vunpack.c.l.bf16 %v2244
    %v2373 = vunpack.c.l.bf16 %v2245
    %v2374 = vunpack.c.l.bf16 %v2246
    %v2375 = vunpack.c.l.bf16 %v2247
    %v2376 = vunpack.c.l.bf16 %v2248
    %v2377 = vunpack.c.l.bf16 %v2249
    %v2378 = vunpack.c.l.bf16 %v2250
    %v2379 = vunpack.c.l.bf16 %v2251
    %v2380 = vunpack.c.l.bf16 %v2252
    %v2381 = vunpack.c.l.bf16 %v2253
    %v2382 = vunpack.c.l.bf16 %v2254
    %v2383 = vunpack.c.l.bf16 %v2255
    %v2384 = vunpack.c.l.bf16 %v2256
    %v2385 = vunpack.c.l.bf16 %v2257
    %v2386 = vunpack.c.l.bf16 %v2258
    %v2387 = vunpack.c.l.bf16 %v2259
    %v2388 = vunpack.c.l.bf16 %v2260
    %v2389 = vunpack.c.l.bf16 %v2261
    %v2390 = vunpack.c.l.bf16 %v2262
    %v2391 = vunpack.c.l.bf16 %v2263
    %v2392 = vunpack.c.l.bf16 %v2264
    %v2393 = vunpack.c.l.bf16 %v2265
    %v2394 = vunpack.c.l.bf16 %v2266
    %v2395 = vunpack.c.l.bf16 %v2267
    %v2396 = vunpack.c.l.bf16 %v2268
    %v2397 = vunpack.c.l.bf16 %v2269
    %v2398 = vunpack.c.l.bf16 %v2270
    %v2399 = vunpack.c.l.bf16 %v2271
    %v2400 = vunpack.c.l.bf16 %v2272
    %v2401 = vunpack.c.l.bf16 %v2273
    %v2402 = vunpack.c.l.bf16 %v2274
    %v2403 = vunpack.c.l.bf16 %v2275
    %v2404 = vunpack.c.l.bf16 %v2276
    %v2405 = vunpack.c.l.bf16 %v2277
    %v2406 = vunpack.c.l.bf16 %v2278
    %v2407 = vunpack.c.l.bf16 %v2279
    %v2408 = vunpack.c.l.bf16 %v2280
    %v2409 = vunpack.c.l.bf16 %v2281
    %v2410 = vunpack.c.l.bf16 %v2282
    %v2411 = vunpack.c.l.bf16 %v2283
    %v2412 = vunpack.c.l.bf16 %v2284
    %v2413 = vunpack.c.l.bf16 %v2285
    %v2414 = vunpack.c.l.bf16 %v2286
    %v2415 = vunpack.c.l.bf16 %v2287
    %v2416 = vunpack.c.l.bf16 %v2288
    %v2417 = vunpack.c.l.bf16 %v2289
    %v2418 = vunpack.c.l.bf16 %v2290
    %v2419 = vunpack.c.l.bf16 %v2291
    %v2420 = vunpack.c.l.bf16 %v2292
    %v2421 = vunpack.c.l.bf16 %v2293
    %v2422 = vunpack.c.l.bf16 %v2294
    %v2423 = vunpack.c.l.bf16 %v2295
    %v2424 = vunpack.c.l.bf16 %v2296
    %v2425 = vunpack.c.l.bf16 %v2297
    %v2426 = vunpack.c.l.bf16 %v2298
    %v2427 = vunpack.c.l.bf16 %v2299
    %v2428 = vunpack.c.l.bf16 %v2300
    %v2429 = vunpack.c.l.bf16 %v2301
    %v2430 = vunpack.c.l.bf16 %v2302
    %v2431 = vunpack.c.l.bf16 %v2303
    %v2432 = vunpack.c.l.bf16 %v2304
    %v2433 = vunpack.c.l.bf16 %v2305
    %v2434 = vunpack.c.l.bf16 %v2306
    %v2435 = vunpack.c.l.bf16 %v2307
    %v2436 = vunpack.c.l.bf16 %v2308
    %v2437 = vunpack.c.l.bf16 %v2309
    %v2438 = vunpack.c.l.bf16 %v2310
    %v2439 = vunpack.c.l.bf16 %v2311
    %v2440 = vunpack.c.l.bf16 %v2312
    %v2441 = vunpack.c.l.bf16 %v2313
    %v2442 = vunpack.c.l.bf16 %v2314
    %v2443 = vunpack.c.l.bf16 %v2315
    %v2444 = vunpack.c.l.bf16 %v2316
    %v2445 = vunpack.c.l.bf16 %v2317
    %v2446 = vunpack.c.l.bf16 %v2318
    %v2447 = vunpack.c.l.bf16 %v2319
    %v2448 = vunpack.c.l.bf16 %v2320
    %v2449 = vunpack.c.l.bf16 %v2321
    %v2450 = vunpack.c.l.bf16 %v2322
    %v2451 = vunpack.c.l.bf16 %v2323
    %v2452 = vunpack.c.l.bf16 %v2324
    %v2453 = vunpack.c.l.bf16 %v2325
    %v2454 = vunpack.c.l.bf16 %v2326
    %v2455 = vunpack.c.l.bf16 %v2327
    %v2456 = vld [vmem:[#allocation10] sm:$0x1]
    %v2458 = vlaneseq
    %v2459 = vshrl.u32 %v2458, 7
    %v2460 = vsub.s32 0, %v2459
    %v2461 = vrot.slane %v2456, %v2460
    %2463 = vmatprep.subr.mxu0 0.0
    %2464 = vmatpush1.msra.mxu0 %v2343
    %2465 = vmatprep.subr.mxu0 0.0
    %2466 = vmatpush1.msra.mxu0 %v2342
    %2467 = vmatprep.subr.mxu0 0.0
    %2468 = vmatpush1.msra.mxu0 %v2341
    %2469 = vmatprep.subr.mxu0 0.0
    %2470 = vmatpush1.msra.mxu0 %v2340
    %2471 = vmatprep.subr.mxu0 0.0
    %2472 = vmatpush1.msra.mxu0 %v2339
    %2473 = vmatprep.subr.mxu0 0.0
    %2474 = vmatpush1.msra.mxu0 %v2338
    %2475 = vmatprep.subr.mxu0 0.0
    %2476 = vmatpush1.msra.mxu0 %v2337
    %2477 = vmatprep.subr.mxu0 0.0
    %2478 = vmatpush1.msra.mxu0 %v2336
    %2479 = vmatprep.subr.mxu0 0.0
    %2480 = vmatpush1.msra.mxu0 %v2335
    %2481 = vmatprep.subr.mxu0 0.0
    %2482 = vmatpush1.msra.mxu0 %v2334
    %2483 = vmatprep.subr.mxu0 0.0
    %2484 = vmatpush1.msra.mxu0 %v2333
    %2485 = vmatprep.subr.mxu0 0.0
    %2486 = vmatpush1.msra.mxu0 %v2332
    %2487 = vmatprep.subr.mxu0 0.0
    %2488 = vmatpush1.msra.mxu0 %v2331
    %2489 = vmatprep.subr.mxu0 0.0
    %2490 = vmatpush1.msra.mxu0 %v2330
    %2491 = vmatprep.subr.mxu0 0.0
    %2492 = vmatpush1.msra.mxu0 %v2329
    %2493 = vmatprep.subr.mxu0 0.0
    %2494 = vmatpush1.msra.mxu0 %v2328
    %2495 = vmatprep.subr.mxu0 0.0
    %2496 = vmatpush2.msra.mxu0 %v2359
    %2497 = vmatprep.subr.mxu0 0.0
    %2498 = vmatpush2.msra.mxu0 %v2358
    %2499 = vmatprep.subr.mxu0 0.0
    %2500 = vmatpush2.msra.mxu0 %v2357
    %2501 = vmatprep.subr.mxu0 0.0
    %2502 = vmatpush2.msra.mxu0 %v2356
    %2503 = vmatprep.subr.mxu0 0.0
    %2504 = vmatpush2.msra.mxu0 %v2355
    %2505 = vmatprep.subr.mxu0 0.0
    %2506 = vmatpush2.msra.mxu0 %v2354
    %2507 = vmatprep.subr.mxu0 0.0
    %2508 = vmatpush2.msra.mxu0 %v2353
    %2509 = vmatprep.subr.mxu0 0.0
    %2510 = vmatpush2.msra.mxu0 %v2352
    %2511 = vmatprep.subr.mxu0 0.0
    %2512 = vmatpush2.msra.mxu0 %v2351
    %2513 = vmatprep.subr.mxu0 0.0
    %2514 = vmatpush2.msra.mxu0 %v2350
    %2515 = vmatprep.subr.mxu0 0.0
    %2516 = vmatpush2.msra.mxu0 %v2349
    %2517 = vmatprep.subr.mxu0 0.0
    %2518 = vmatpush2.msra.mxu0 %v2348
    %2519 = vmatprep.subr.mxu0 0.0
    %2520 = vmatpush2.msra.mxu0 %v2347
    %2521 = vmatprep.subr.mxu0 0.0
    %2522 = vmatpush2.msra.mxu0 %v2346
    %2523 = vmatprep.subr.mxu0 0.0
    %2524 = vmatpush2.msra.mxu0 %v2345
    %2525 = vmatprep.subr.mxu0 0.0
    %2526 = vmatpush2.msra.mxu0 %v2344
    %2527 = vmatprep.mubr.f32.mxu0 %v2193
    %2528 = vmatmul.mubr.f32.gmra.mxu0 %v2192
    %v2529 = vpop.f32.mrf.mxu0
    %v2530 = vadd.f32 %v2461, %v2529
    %v2531 = vpop.f32.mrf.mxu0
    %2532 = vdwg.mxu0
    %2533 = vmatprep.subr.mxu0 0.0
    %2534 = vmatpush1.msra.mxu0 %v2375
    %2535 = vmatprep.subr.mxu0 0.0
    %2536 = vmatpush1.msra.mxu0 %v2374
    %2537 = vmatprep.subr.mxu0 0.0
    %2538 = vmatpush1.msra.mxu0 %v2373
    %2539 = vmatprep.subr.mxu0 0.0
    %2540 = vmatpush1.msra.mxu0 %v2372
    %2541 = vmatprep.subr.mxu0 0.0
    %2542 = vmatpush1.msra.mxu0 %v2371
    %2543 = vmatprep.subr.mxu0 0.0
    %2544 = vmatpush1.msra.mxu0 %v2370
    %2545 = vmatprep.subr.mxu0 0.0
    %2546 = vmatpush1.msra.mxu0 %v2369
    %2547 = vmatprep.subr.mxu0 0.0
    %2548 = vmatpush1.msra.mxu0 %v2368
    %2549 = vmatprep.subr.mxu0 0.0
    %2550 = vmatpush1.msra.mxu0 %v2367
    %2551 = vmatprep.subr.mxu0 0.0
    %2552 = vmatpush1.msra.mxu0 %v2366
    %2553 = vmatprep.subr.mxu0 0.0
    %2554 = vmatpush1.msra.mxu0 %v2365
    %2555 = vmatprep.subr.mxu0 0.0
    %2556 = vmatpush1.msra.mxu0 %v2364
    %2557 = vmatprep.subr.mxu0 0.0
    %2558 = vmatpush1.msra.mxu0 %v2363
    %2559 = vmatprep.subr.mxu0 0.0
    %2560 = vmatpush1.msra.mxu0 %v2362
    %2561 = vmatprep.subr.mxu0 0.0
    %2562 = vmatpush1.msra.mxu0 %v2361
    %2563 = vmatprep.subr.mxu0 0.0
    %2564 = vmatpush1.msra.mxu0 %v2360
    %2565 = vmatprep.subr.mxu0 0.0
    %2566 = vmatpush2.msra.mxu0 %v2391
    %2567 = vmatprep.subr.mxu0 0.0
    %2568 = vmatpush2.msra.mxu0 %v2390
    %2569 = vmatprep.subr.mxu0 0.0
    %2570 = vmatpush2.msra.mxu0 %v2389
    %2571 = vmatprep.subr.mxu0 0.0
    %2572 = vmatpush2.msra.mxu0 %v2388
    %2573 = vmatprep.subr.mxu0 0.0
    %2574 = vmatpush2.msra.mxu0 %v2387
    %2575 = vmatprep.subr.mxu0 0.0
    %2576 = vmatpush2.msra.mxu0 %v2386
    %2577 = vmatprep.subr.mxu0 0.0
    %2578 = vmatpush2.msra.mxu0 %v2385
    %2579 = vmatprep.subr.mxu0 0.0
    %2580 = vmatpush2.msra.mxu0 %v2384
    %2581 = vmatprep.subr.mxu0 0.0
    %2582 = vmatpush2.msra.mxu0 %v2383
    %2583 = vmatprep.subr.mxu0 0.0
    %2584 = vmatpush2.msra.mxu0 %v2382
    %2585 = vmatprep.subr.mxu0 0.0
    %2586 = vmatpush2.msra.mxu0 %v2381
    %2587 = vmatprep.subr.mxu0 0.0
    %2588 = vmatpush2.msra.mxu0 %v2380
    %2589 = vmatprep.subr.mxu0 0.0
    %2590 = vmatpush2.msra.mxu0 %v2379
    %2591 = vmatprep.subr.mxu0 0.0
    %2592 = vmatpush2.msra.mxu0 %v2378
    %2593 = vmatprep.subr.mxu0 0.0
    %2594 = vmatpush2.msra.mxu0 %v2377
    %2595 = vmatprep.subr.mxu0 0.0
    %2596 = vmatpush2.msra.mxu0 %v2376
    %2597 = vmatprep.mubr.f32.mxu0 %v2195
    %2598 = vmatmul.mubr.f32.gmra.mxu0 %v2194
    %v2599 = vpop.f32.mrf.mxu0
    %v2600 = vadd.f32 %v2530, %v2599
    %v2601 = vpop.f32.mrf.mxu0
    %2602 = vdwg.mxu0
    %2603 = vmatprep.subr.mxu0 0.0
    %2604 = vmatpush1.msra.mxu0 %v2407
    %2605 = vmatprep.subr.mxu0 0.0
    %2606 = vmatpush1.msra.mxu0 %v2406
    %2607 = vmatprep.subr.mxu0 0.0
    %2608 = vmatpush1.msra.mxu0 %v2405
    %2609 = vmatprep.subr.mxu0 0.0
    %2610 = vmatpush1.msra.mxu0 %v2404
    %2611 = vmatprep.subr.mxu0 0.0
    %2612 = vmatpush1.msra.mxu0 %v2403
    %2613 = vmatprep.subr.mxu0 0.0
    %2614 = vmatpush1.msra.mxu0 %v2402
    %2615 = vmatprep.subr.mxu0 0.0
    %2616 = vmatpush1.msra.mxu0 %v2401
    %2617 = vmatprep.subr.mxu0 0.0
    %2618 = vmatpush1.msra.mxu0 %v2400
    %2619 = vmatprep.subr.mxu0 0.0
    %2620 = vmatpush1.msra.mxu0 %v2399
    %2621 = vmatprep.subr.mxu0 0.0
    %2622 = vmatpush1.msra.mxu0 %v2398
    %2623 = vmatprep.subr.mxu0 0.0
    %2624 = vmatpush1.msra.mxu0 %v2397
    %2625 = vmatprep.subr.mxu0 0.0
    %2626 = vmatpush1.msra.mxu0 %v2396
    %2627 = vmatprep.subr.mxu0 0.0
    %2628 = vmatpush1.msra.mxu0 %v2395
    %2629 = vmatprep.subr.mxu0 0.0
    %2630 = vmatpush1.msra.mxu0 %v2394
    %2631 = vmatprep.subr.mxu0 0.0
    %2632 = vmatpush1.msra.mxu0 %v2393
    %2633 = vmatprep.subr.mxu0 0.0
    %2634 = vmatpush1.msra.mxu0 %v2392
    %2635 = vmatprep.subr.mxu0 0.0
    %2636 = vmatpush2.msra.mxu0 %v2423
    %2637 = vmatprep.subr.mxu0 0.0
    %2638 = vmatpush2.msra.mxu0 %v2422
    %2639 = vmatprep.subr.mxu0 0.0
    %2640 = vmatpush2.msra.mxu0 %v2421
    %2641 = vmatprep.subr.mxu0 0.0
    %2642 = vmatpush2.msra.mxu0 %v2420
    %2643 = vmatprep.subr.mxu0 0.0
    %2644 = vmatpush2.msra.mxu0 %v2419
    %2645 = vmatprep.subr.mxu0 0.0
    %2646 = vmatpush2.msra.mxu0 %v2418
    %2647 = vmatprep.subr.mxu0 0.0
    %2648 = vmatpush2.msra.mxu0 %v2417
    %2649 = vmatprep.subr.mxu0 0.0
    %2650 = vmatpush2.msra.mxu0 %v2416
    %2651 = vmatprep.subr.mxu0 0.0
    %2652 = vmatpush2.msra.mxu0 %v2415
    %2653 = vmatprep.subr.mxu0 0.0
    %2654 = vmatpush2.msra.mxu0 %v2414
    %2655 = vmatprep.subr.mxu0 0.0
    %2656 = vmatpush2.msra.mxu0 %v2413
    %2657 = vmatprep.subr.mxu0 0.0
    %2658 = vmatpush2.msra.mxu0 %v2412
    %2659 = vmatprep.subr.mxu0 0.0
    %2660 = vmatpush2.msra.mxu0 %v2411
    %2661 = vmatprep.subr.mxu0 0.0
    %2662 = vmatpush2.msra.mxu0 %v2410
    %2663 = vmatprep.subr.mxu0 0.0
    %2664 = vmatpush2.msra.mxu0 %v2409
    %2665 = vmatprep.subr.mxu0 0.0
    %2666 = vmatpush2.msra.mxu0 %v2408
    %2667 = vmatprep.mubr.f32.mxu0 %v2197
    %2668 = vmatmul.mubr.f32.gmra.mxu0 %v2196
    %v2669 = vpop.f32.mrf.mxu0
    %v2670 = vadd.f32 %v2600, %v2669
    %v2671 = vpop.f32.mrf.mxu0
    %2672 = vdwg.mxu0
    %2673 = vmatprep.subr.mxu0 0.0
    %2674 = vmatpush1.msra.mxu0 %v2439
    %2675 = vmatprep.subr.mxu0 0.0
    %2676 = vmatpush1.msra.mxu0 %v2438
    %2677 = vmatprep.subr.mxu0 0.0
    %2678 = vmatpush1.msra.mxu0 %v2437
    %2679 = vmatprep.subr.mxu0 0.0
    %2680 = vmatpush1.msra.mxu0 %v2436
    %2681 = vmatprep.subr.mxu0 0.0
    %2682 = vmatpush1.msra.mxu0 %v2435
    %2683 = vmatprep.subr.mxu0 0.0
    %2684 = vmatpush1.msra.mxu0 %v2434
    %2685 = vmatprep.subr.mxu0 0.0
    %2686 = vmatpush1.msra.mxu0 %v2433
    %2687 = vmatprep.subr.mxu0 0.0
    %2688 = vmatpush1.msra.mxu0 %v2432
    %2689 = vmatprep.subr.mxu0 0.0
    %2690 = vmatpush1.msra.mxu0 %v2431
    %2691 = vmatprep.subr.mxu0 0.0
    %2692 = vmatpush1.msra.mxu0 %v2430
    %2693 = vmatprep.subr.mxu0 0.0
    %2694 = vmatpush1.msra.mxu0 %v2429
    %2695 = vmatprep.subr.mxu0 0.0
    %2696 = vmatpush1.msra.mxu0 %v2428
    %2697 = vmatprep.subr.mxu0 0.0
    %2698 = vmatpush1.msra.mxu0 %v2427
    %2699 = vmatprep.subr.mxu0 0.0
    %2700 = vmatpush1.msra.mxu0 %v2426
    %2701 = vmatprep.subr.mxu0 0.0
    %2702 = vmatpush1.msra.mxu0 %v2425
    %2703 = vmatprep.subr.mxu0 0.0
    %2704 = vmatpush1.msra.mxu0 %v2424
    %2705 = vmatprep.subr.mxu0 0.0
    %2706 = vmatpush2.msra.mxu0 %v2455
    %2707 = vmatprep.subr.mxu0 0.0
    %2708 = vmatpush2.msra.mxu0 %v2454
    %2709 = vmatprep.subr.mxu0 0.0
    %2710 = vmatpush2.msra.mxu0 %v2453
    %2711 = vmatprep.subr.mxu0 0.0
    %2712 = vmatpush2.msra.mxu0 %v2452
    %2713 = vmatprep.subr.mxu0 0.0
    %2714 = vmatpush2.msra.mxu0 %v2451
    %2715 = vmatprep.subr.mxu0 0.0
    %2716 = vmatpush2.msra.mxu0 %v2450
    %2717 = vmatprep.subr.mxu0 0.0
    %2718 = vmatpush2.msra.mxu0 %v2449
    %2719 = vmatprep.subr.mxu0 0.0
    %2720 = vmatpush2.msra.mxu0 %v2448
    %2721 = vmatprep.subr.mxu0 0.0
    %2722 = vmatpush2.msra.mxu0 %v2447
    %2723 = vmatprep.subr.mxu0 0.0
    %2724 = vmatpush2.msra.mxu0 %v2446
    %2725 = vmatprep.subr.mxu0 0.0
    %2726 = vmatpush2.msra.mxu0 %v2445
    %2727 = vmatprep.subr.mxu0 0.0
    %2728 = vmatpush2.msra.mxu0 %v2444
    %2729 = vmatprep.subr.mxu0 0.0
    %2730 = vmatpush2.msra.mxu0 %v2443
    %2731 = vmatprep.subr.mxu0 0.0
    %2732 = vmatpush2.msra.mxu0 %v2442
    %2733 = vmatprep.subr.mxu0 0.0
    %2734 = vmatpush2.msra.mxu0 %v2441
    %2735 = vmatprep.subr.mxu0 0.0
    %2736 = vmatpush2.msra.mxu0 %v2440
    %2737 = vmatprep.mubr.f32.mxu0 %v2199
    %2738 = vmatmul.mubr.f32.gmra.mxu0 %v2198
    %v2739 = vpop.f32.mrf.mxu0
    %v2740 = vadd.f32 %v2670, %v2739
    %v2741 = vpop.f32.mrf.mxu0
    %2742 = vdwg.mxu0
    %v2743 = vmul.f32 %v2740, 0.5
    %v2744 = vmul.f32 %v2740, 0.70710677
    %v2745 = verf.f32.pop %v2744
    %v2746 = vadd.f32 %v2745, 1.0
    %v2747 = vmul.f32 %v2743, %v2746
    %v2748 = vld [vmem:[%s5] sm:$0xf]
    %v2749 = vld [vmem:[%s5 + $0x4] sm:$0xf]
    %v2750 = vld [vmem:[%s5 + $0x8] sm:$0xf]
    %v2751 = vld [vmem:[%s5 + $0xc] sm:$0xf]
    %v2752 = vld [vmem:[%s5 + $0x10] sm:$0xf]
    %v2753 = vld [vmem:[%s5 + $0x14] sm:$0xf]
    %v2754 = vld [vmem:[%s5 + $0x18] sm:$0xf]
    %v2755 = vld [vmem:[%s5 + $0x1c] sm:$0xf]
    %v2756 = vld [vmem:[%s5 + $0x20] sm:$0xf]
    %v2757 = vld [vmem:[%s5 + $0x24] sm:$0xf]
    %v2758 = vld [vmem:[%s5 + $0x28] sm:$0xf]
    %v2759 = vld [vmem:[%s5 + $0x2c] sm:$0xf]
    %v2760 = vld [vmem:[%s5 + $0x30] sm:$0xf]
    %v2761 = vld [vmem:[%s5 + $0x34] sm:$0xf]
    %v2762 = vld [vmem:[%s5 + $0x38] sm:$0xf]
    %v2763 = vld [vmem:[%s5 + $0x3c] sm:$0xf]
    %v2764 = vunpack.c.l.bf16 %v2748
    %v2765 = vunpack.c.l.bf16 %v2749
    %v2766 = vunpack.c.l.bf16 %v2750
    %v2767 = vunpack.c.l.bf16 %v2751
    %v2768 = vunpack.c.l.bf16 %v2752
    %v2769 = vunpack.c.l.bf16 %v2753
    %v2770 = vunpack.c.l.bf16 %v2754
    %v2771 = vunpack.c.l.bf16 %v2755
    %v2772 = vunpack.c.l.bf16 %v2756
    %v2773 = vunpack.c.l.bf16 %v2757
    %v2774 = vunpack.c.l.bf16 %v2758
    %v2775 = vunpack.c.l.bf16 %v2759
    %v2776 = vunpack.c.l.bf16 %v2760
    %v2777 = vunpack.c.l.bf16 %v2761
    %v2778 = vunpack.c.l.bf16 %v2762
    %v2779 = vunpack.c.l.bf16 %v2763
    %v2780 = vld [vmem:[#allocation11] sm:$0x1]
    %v2782 = vlaneseq
    %v2783 = vshrl.u32 %v2782, 7
    %v2784 = vsub.s32 0, %v2783
    %v2785 = vrot.slane %v2780, %v2784
    %2787 = vmatprep.subr.mxu0 0.0
    %2788 = vmatpush1.msra.mxu0 %v2779
    %2789 = vmatprep.subr.mxu0 0.0
    %2790 = vmatpush1.msra.mxu0 %v2778
    %2791 = vmatprep.subr.mxu0 0.0
    %2792 = vmatpush1.msra.mxu0 %v2777
    %2793 = vmatprep.subr.mxu0 0.0
    %2794 = vmatpush1.msra.mxu0 %v2776
    %2795 = vmatprep.subr.mxu0 0.0
    %2796 = vmatpush1.msra.mxu0 %v2775
    %2797 = vmatprep.subr.mxu0 0.0
    %2798 = vmatpush1.msra.mxu0 %v2774
    %2799 = vmatprep.subr.mxu0 0.0
    %2800 = vmatpush1.msra.mxu0 %v2773
    %2801 = vmatprep.subr.mxu0 0.0
    %2802 = vmatpush1.msra.mxu0 %v2772
    %2803 = vmatprep.subr.mxu0 0.0
    %2804 = vmatpush1.msra.mxu0 %v2771
    %2805 = vmatprep.subr.mxu0 0.0
    %2806 = vmatpush1.msra.mxu0 %v2770
    %2807 = vmatprep.subr.mxu0 0.0
    %2808 = vmatpush1.msra.mxu0 %v2769
    %2809 = vmatprep.subr.mxu0 0.0
    %2810 = vmatpush1.msra.mxu0 %v2768
    %2811 = vmatprep.subr.mxu0 0.0
    %2812 = vmatpush1.msra.mxu0 %v2767
    %2813 = vmatprep.subr.mxu0 0.0
    %2814 = vmatpush1.msra.mxu0 %v2766
    %2815 = vmatprep.subr.mxu0 0.0
    %2816 = vmatpush1.msra.mxu0 %v2765
    %2817 = vmatprep.subr.mxu0 0.0
    %2818 = vmatpush1.msra.mxu0 %v2764
    %2819 = vmatprep.subr.mxu0 0.0
    %2820 = vmatpush2.msra.mxu0 0.0
    %2821 = vmatprep.subr.mxu0 0.0
    %2822 = vmatpush2.msra.mxu0 0.0
    %2823 = vmatprep.subr.mxu0 0.0
    %2824 = vmatpush2.msra.mxu0 0.0
    %2825 = vmatprep.subr.mxu0 0.0
    %2826 = vmatpush2.msra.mxu0 0.0
    %2827 = vmatprep.subr.mxu0 0.0
    %2828 = vmatpush2.msra.mxu0 0.0
    %2829 = vmatprep.subr.mxu0 0.0
    %2830 = vmatpush2.msra.mxu0 0.0
    %2831 = vmatprep.subr.mxu0 0.0
    %2832 = vmatpush2.msra.mxu0 0.0
    %2833 = vmatprep.subr.mxu0 0.0
    %2834 = vmatpush2.msra.mxu0 0.0
    %2835 = vmatprep.subr.mxu0 0.0
    %2836 = vmatpush2.msra.mxu0 0.0
    %2837 = vmatprep.subr.mxu0 0.0
    %2838 = vmatpush2.msra.mxu0 0.0
    %2839 = vmatprep.subr.mxu0 0.0
    %2840 = vmatpush2.msra.mxu0 0.0
    %2841 = vmatprep.subr.mxu0 0.0
    %2842 = vmatpush2.msra.mxu0 0.0
    %2843 = vmatprep.subr.mxu0 0.0
    %2844 = vmatpush2.msra.mxu0 0.0
    %2845 = vmatprep.subr.mxu0 0.0
    %2846 = vmatpush2.msra.mxu0 0.0
    %2847 = vmatprep.subr.mxu0 0.0
    %2848 = vmatpush2.msra.mxu0 0.0
    %2849 = vmatprep.subr.mxu0 0.0
    %2850 = vmatpush2.msra.mxu0 0.0
    %2851 = vmatprep.mubr.f32.mxu0 0.0
    %2852 = vmatmul.mubr.f32.gmra.mxu0 %v2747
    %v2853 = vpop.f32.mrf.mxu0
    %v2854 = vadd.f32 %v2785, %v2853
    %v2855 = vpop.f32.mrf.mxu0
    %2856 = vdwg.mxu0
    %v2857 = vmul.f32 %v2854, 0.5
    %v2858 = vmul.f32 %v2854, 0.70710677
    %v2859 = verf.f32.pop %v2858
    %v2860 = vadd.f32 %v2859, 1.0
    %v2861 = vmul.f32 %v2857, %v2860
    %v2862 = vld [vmem:[%s7] sm:$0xf]
    %v2863 = vld [vmem:[%s7 + $0x4] sm:$0xf]
    %v2864 = vld [vmem:[%s7 + $0x8] sm:$0xf]
    %v2865 = vld [vmem:[%s7 + $0xc] sm:$0xf]
    %v2866 = vld [vmem:[%s7 + $0x10] sm:$0xf]
    %v2867 = vld [vmem:[%s7 + $0x14] sm:$0xf]
    %v2868 = vld [vmem:[%s7 + $0x18] sm:$0xf]
    %v2869 = vld [vmem:[%s7 + $0x1c] sm:$0xf]
    %v2870 = vunpack.c.l.bf16 %v2862
    %v2871 = vunpack.c.l.bf16 %v2863
    %v2872 = vunpack.c.l.bf16 %v2864
    %v2873 = vunpack.c.l.bf16 %v2865
    %v2874 = vunpack.c.l.bf16 %v2866
    %v2875 = vunpack.c.l.bf16 %v2867
    %v2876 = vunpack.c.l.bf16 %v2868
    %v2877 = vunpack.c.l.bf16 %v2869
    %v2878 = vld [vmem:[#allocation2] sm:$0x1]
    %v2880 = vlaneseq
    %v2881 = vshrl.u32 %v2880, 7
    %v2882 = vsub.s32 0, %v2881
    %v2883 = vrot.slane %v2878, %v2882
    %vm2885 = vcmask 523264
    %v2887 = vsel %vm2885, %v2861, 0
    %2889 = vmatprep.subr.mxu0 0.0
    %2890 = vmatpush1.msra.mxu0 0.0
    %2891 = vmatprep.subr.mxu0 0.0
    %2892 = vmatpush1.msra.mxu0 0.0
    %2893 = vmatprep.subr.mxu0 0.0
    %2894 = vmatpush1.msra.mxu0 0.0
    %2895 = vmatprep.subr.mxu0 0.0
    %2896 = vmatpush1.msra.mxu0 0.0
    %2897 = vmatprep.subr.mxu0 0.0
    %2898 = vmatpush1.msra.mxu0 0.0
    %2899 = vmatprep.subr.mxu0 0.0
    %2900 = vmatpush1.msra.mxu0 0.0
    %2901 = vmatprep.subr.mxu0 0.0
    %2902 = vmatpush1.msra.mxu0 0.0
    %2903 = vmatprep.subr.mxu0 0.0
    %2904 = vmatpush1.msra.mxu0 0.0
    %2905 = vmatprep.subr.mxu0 0.0
    %2906 = vmatpush1.msra.mxu0 %v2877
    %2907 = vmatprep.subr.mxu0 0.0
    %2908 = vmatpush1.msra.mxu0 %v2876
    %2909 = vmatprep.subr.mxu0 0.0
    %2910 = vmatpush1.msra.mxu0 %v2875
    %2911 = vmatprep.subr.mxu0 0.0
    %2912 = vmatpush1.msra.mxu0 %v2874
    %2913 = vmatprep.subr.mxu0 0.0
    %2914 = vmatpush1.msra.mxu0 %v2873
    %2915 = vmatprep.subr.mxu0 0.0
    %2916 = vmatpush1.msra.mxu0 %v2872
    %2917 = vmatprep.subr.mxu0 0.0
    %2918 = vmatpush1.msra.mxu0 %v2871
    %2919 = vmatprep.subr.mxu0 0.0
    %2920 = vmatpush1.msra.mxu0 %v2870
    %2921 = vmatprep.subr.mxu0 0.0
    %2922 = vmatpush2.msra.mxu0 0.0
    %2923 = vmatprep.subr.mxu0 0.0
    %2924 = vmatpush2.msra.mxu0 0.0
    %2925 = vmatprep.subr.mxu0 0.0
    %2926 = vmatpush2.msra.mxu0 0.0
    %2927 = vmatprep.subr.mxu0 0.0
    %2928 = vmatpush2.msra.mxu0 0.0
    %2929 = vmatprep.subr.mxu0 0.0
    %2930 = vmatpush2.msra.mxu0 0.0
    %2931 = vmatprep.subr.mxu0 0.0
    %2932 = vmatpush2.msra.mxu0 0.0
    %2933 = vmatprep.subr.mxu0 0.0
    %2934 = vmatpush2.msra.mxu0 0.0
    %2935 = vmatprep.subr.mxu0 0.0
    %2936 = vmatpush2.msra.mxu0 0.0
    %2937 = vmatprep.subr.mxu0 0.0
    %2938 = vmatpush2.msra.mxu0 0.0
    %2939 = vmatprep.subr.mxu0 0.0
    %2940 = vmatpush2.msra.mxu0 0.0
    %2941 = vmatprep.subr.mxu0 0.0
    %2942 = vmatpush2.msra.mxu0 0.0
    %2943 = vmatprep.subr.mxu0 0.0
    %2944 = vmatpush2.msra.mxu0 0.0
    %2945 = vmatprep.subr.mxu0 0.0
    %2946 = vmatpush2.msra.mxu0 0.0
    %2947 = vmatprep.subr.mxu0 0.0
    %2948 = vmatpush2.msra.mxu0 0.0
    %2949 = vmatprep.subr.mxu0 0.0
    %2950 = vmatpush2.msra.mxu0 0.0
    %2951 = vmatprep.subr.mxu0 0.0
    %2952 = vmatpush2.msra.mxu0 0.0
    %2953 = vmatprep.mubr.f32.mxu0 0.0
    %2954 = vmatmul.mubr.f32.gmra.mxu0 %v2887
    %v2955 = vpop.f32.mrf.mxu0
    %v2956 = vadd.f32 %v2883, %v2955
    %v2957 = vpop.f32.mrf.mxu0
    %2958 = vdwg.mxu0
    %vm2959 = vcmask 7168
    %2960 = vst.msk [vmem:[%s9] sm:$0xff] %vm2959, %v2956
    // Predicated region
    $region62: #{tpu_custom_call.1} parent=1 // pred_check
      _
    $region63: #{tpu_custom_call.1} parent=1 // pred_check_branch
      %2962 = sbr.rel (0) target = $region65
    $region64: #{tpu_custom_call.1} parent=1 // pred_region
      _
    $region65: #{tpu_custom_call.1} parent=1 // pred_fallthru
      _
    // Predicated region
    $region66: #{tpu_custom_call.1} parent=1 // pred_check
      _
    $region67: #{tpu_custom_call.1} parent=1 // pred_check_branch
      %2964 = sbr.rel (0) target = $region69
    $region68: #{tpu_custom_call.1} parent=1 // pred_region
      _
    $region69: #{tpu_custom_call.1} parent=1 // pred_fallthru
      _
    %2965 = vsyncpa [#allocation4], 1
    %2966 = vsyncpa [#allocation6], 1
    %2967 = vsyncpa [#allocation9], 1
    %2968 = vsyncpa [#allocation12], 1

</llo_original>
